<compile_context>
chip_gen: v7x
topology: tpu7x:2x2x1
jax: 0.10.0
libtpu: 0.0.40
codegen_flags: <defaults>
</compile_context>

<pallas_src>
import jax
import jax.numpy as jnp
from jax.experimental import pallas as pl

NUM_HEADS = 4
MASK_VALUE = -1e30  # finite sentinel instead of -inf (keeps fully masked rows finite)


# ----------------------------------------------------------------------------
# Fused kernel: backbone(1x1) -> ReLU -> img_embedding -> text self-attn ->
#               cross-attn -> residual -> pool -> ReLU -> classifier
# All intermediates stay in VMEM; no grid (everything is resident), B unrolled.
# ----------------------------------------------------------------------------
def fused_forward_kernel(
    xT_ref,        # (B, Cin, HW)   image, channel-major
    text_ref,      # (B, S, D)      text hidden states (row form)
    mask_row_ref,  # (B, 1, S)      additive key mask, keys-on-lanes (self-attn)
    mask_col_ref,  # (B, S, 1)      additive key mask, keys-on-sublanes (cross-attn)
    wconv_ref, bconv_ref,          # (Cemb, Cin), (Cemb, 1)
    we_ref, be_ref,                # (D, Cemb),  (D, 1)
    sa_wq_ref, sa_bq_ref, sa_wk_ref, sa_bk_ref,
    sa_wv_ref, sa_bv_ref, sa_wo_ref, sa_bo_ref,      # row-form self-attn (W^T, row biases)
    ca_wq_ref, ca_bq_ref, ca_wk_ref, ca_bk_ref,
    ca_wv_ref, ca_bv_ref, ca_wo_ref, ca_bo_ref,      # transposed-layout cross-attn
    wc_ref, bc_ref,                # (nc, D) scaled by 1/HW, (nc, 1)
    o_ref,                         # (nc, B)
):
    B, _, HW = xT_ref.shape
    S = text_ref.shape[1]
    D = we_ref.shape[0]
    dh = D // NUM_HEADS

    # Load every weight exactly once (reused across the unrolled batch loop).
    wconv, bconv = wconv_ref[...], bconv_ref[...]
    we, be = we_ref[...], be_ref[...]
    sa_wq, sa_bq = sa_wq_ref[...], sa_bq_ref[...]
    sa_wk, sa_bk = sa_wk_ref[...], sa_bk_ref[...]
    sa_wv, sa_bv = sa_wv_ref[...], sa_bv_ref[...]
    sa_wo, sa_bo = sa_wo_ref[...], sa_bo_ref[...]
    ca_wq, ca_bq = ca_wq_ref[...], ca_bq_ref[...]
    ca_wk, ca_bk = ca_wk_ref[...], ca_bk_ref[...]
    ca_wv, ca_bv = ca_wv_ref[...], ca_bv_ref[...]
    ca_wo, ca_bo = ca_wo_ref[...], ca_bo_ref[...]
    wc, bc = wc_ref[...], bc_ref[...]

    # --- text self-attention, plain row form (tiny: (8, 32) = one vreg) -------
    def self_attn_rows(t, m_row):
        q = jnp.dot(t, sa_wq, preferred_element_type=jnp.float32) + sa_bq  # (S, D), scale folded
        k = jnp.dot(t, sa_wk, preferred_element_type=jnp.float32) + sa_bk
        v = jnp.dot(t, sa_wv, preferred_element_type=jnp.float32) + sa_bv
        mask_b = jnp.broadcast_to(m_row, (S, S))        # hoisted out of the head loop
        heads = []
        for h in range(NUM_HEADS):
            sl = slice(h * dh, (h + 1) * dh)
            s = jax.lax.dot_general(q[:, sl], k[:, sl],
                                    (((1,), (1,)), ((), ())),
                                    preferred_element_type=jnp.float32)    # (S, S)
            s = s + mask_b
            s = s - jnp.max(s, axis=-1, keepdims=True)
            p = jnp.exp(s)
            p = p * pl.reciprocal(jnp.sum(p, axis=-1, keepdims=True), approx=True)
            heads.append(jnp.dot(p, v[:, sl], preferred_element_type=jnp.float32))
        o = jnp.concatenate(heads, axis=1)                                 # (S, D)
        return jnp.dot(o, sa_wo, preferred_element_type=jnp.float32) + sa_bo

    # --- cross-attention, transposed query/output path ------------------------
    # qT: (D, Lq) features-on-sublanes; kv_rows: (S, D); m_col: (S, 1)
    def cross_attn_T(qT, kv_rows, m_col):
        Lq = qT.shape[1]
        QT = jnp.dot(ca_wq, qT, preferred_element_type=jnp.float32) + ca_bq     # (D, Lq), scaled
        K = jnp.dot(kv_rows, ca_wk, preferred_element_type=jnp.float32) + ca_bk  # (S, D)  rows
        VT = jax.lax.dot_general(ca_wv, kv_rows, (((1,), (1,)), ((), ())),
                                 preferred_element_type=jnp.float32) + ca_bv     # (D, S)  NT form
        mask_b = jnp.broadcast_to(m_col, (S, Lq))       # hoisted out of the head loop
        heads = []
        for h in range(NUM_HEADS):
            sl = slice(h * dh, (h + 1) * dh)
            # scores^T: keys on sublanes, queries on lanes -> (S, Lq), lane-dense
            s = jnp.dot(K[:, sl], QT[sl, :], preferred_element_type=jnp.float32)
            s = s + mask_b
            s = s - jnp.max(s, axis=0, keepdims=True)
            p = jnp.exp(s)
            p = p * pl.reciprocal(jnp.sum(p, axis=0, keepdims=True), approx=True)
            heads.append(jnp.dot(VT[sl, :], p, preferred_element_type=jnp.float32))  # (dh, Lq)
        OT = jnp.concatenate(heads, axis=0)                                      # (D, Lq)
        return jnp.dot(ca_wo, OT, preferred_element_type=jnp.float32) + ca_bo    # (D, Lq)

    pooled_cols = []
    for b in range(B):  # B is small & static: unrolled, weights stay live
        xT = xT_ref[b]             # (Cin, HW)
        t = text_ref[b]            # (S, D)
        m_row = mask_row_ref[b]    # (1, S)
        m_col = mask_col_ref[b]    # (S, 1)

        # relu(img_backbone(img)) -> img_embedding, all in (feat, HW) layout
        hT = jnp.maximum(
            jnp.dot(wconv, xT, preferred_element_type=jnp.float32) + bconv, 0.0)  # (Cemb, HW)
        img_projT = jnp.dot(we, hT, preferred_element_type=jnp.float32) + be      # (D, HW)

        text_sa = self_attn_rows(t, m_row)                  # (S, D)
        crossT = cross_attn_T(img_projT, text_sa, m_col)    # (D, HW)

        residT = img_projT + crossT                         # (D, HW)
        # Unnormalized pool (1/HW folded into wc); lane-axis reduce -> XLU slot.
        pooled_cols.append(jnp.sum(residT, axis=1, keepdims=True))   # (D, 1)

    pooled = jnp.concatenate(pooled_cols, axis=1)           # (D, B)
    pooled = jnp.maximum(pooled, 0.0)
    o_ref[...] = jnp.dot(wc, pooled, preferred_element_type=jnp.float32) + bc  # (nc, B)


def _fused_call(kp, xT, text, mask_row, mask_col):
    B = xT.shape[0]
    nc = kp["wc"].shape[0]
    # No grid: every operand (< 1 MiB total) is resident in VMEM for the whole
    # call; default BlockSpecs map the full arrays.  Logits come out as (nc, B)
    # (batch on lanes) so the kernel never transposes a column vector.
    return pl.pallas_call(
        fused_forward_kernel,
        out_shape=jax.ShapeDtypeStruct((nc, B), jnp.float32),
    )(xT, text, mask_row, mask_col,
      kp["wconv"], kp["bconv"], kp["we"], kp["be"],
      kp["sa"]["wq_t"], kp["sa"]["bq"], kp["sa"]["wk_t"], kp["sa"]["bk"],
      kp["sa"]["wv_t"], kp["sa"]["bv"], kp["sa"]["wo_t"], kp["sa"]["bo"],
      kp["ca"]["wq"], kp["ca"]["bq"], kp["ca"]["wk_t"], kp["ca"]["bk"],
      kp["ca"]["wv"], kp["ca"]["bv"], kp["ca"]["wo"], kp["ca"]["bo"],
      kp["wc"], kp["bc"])


# ----------------------------------------------------------------------------
# Host-side weight preparation — called ONCE, outside the jitted forward.
# (PyTorch-layout weights in; kernel-layout weights out.)
# ----------------------------------------------------------------------------
def prepare_kernel_params(p, hw):
    d = p["we"].shape[0]
    dh = d // NUM_HEADS
    scale = 1.0 / (dh ** 0.5)

    wq, wk, wv, bq, bk, bv, wo, bo = p["self_attn"]
    sa = dict(                                   # row-form attention: y = x @ W^T + b
        wq_t=wq.T * scale, bq=bq * scale,        # softmax scale folded into q
        wk_t=wk.T, bk=bk,
        wv_t=wv.T, bv=bv,
        wo_t=wo.T, bo=bo,
    )

    wq, wk, wv, bq, bk, bv, wo, bo = p["cross_attn"]
    ca = dict(                                   # transposed layout: y^T = W @ x^T + b_col
        wq=wq * scale, bq=(bq * scale).T,        # (D, D), (D, 1)
        wk_t=wk.T, bk=bk,                        # K stays in row form
        wv=wv, bv=bv.T,                          # V^T via NT dot_general
        wo=wo, bo=bo.T,
    )

    return dict(
        wconv=p["wconv"], bconv=p["bconv"].T,    # (Cemb, Cin), (Cemb, 1)
        we=p["we"], be=p["be"].T,                # (D, Cemb),  (D, 1)
        sa=sa, ca=ca,
        wc=p["wc"] / hw, bc=p["bc"].T,           # mean-pool 1/HW folded into classifier
        emb_table=p["emb_table"],
    )


# ----------------------------------------------------------------------------
# Forward pass (glue in plain JAX; all compute in the single Pallas kernel)
# ----------------------------------------------------------------------------
def discriminator_forward(kp, img, tokens, key_padding_mask):
    B, Cin, H, W = img.shape
    # view(B, C, H*W): keep channel-major — no permute needed for the kernel.
    xT = img.reshape(B, Cin, H * W)                                        # (B, Cin, HW)
    # text_encoder(tokenized_caption).last_hidden_state (stand-in: embedding lookup)
    # TODO(synk): replace with the real external text encoder.
    text = jnp.take(kp["emb_table"], tokens, axis=0)                       # (B, S, D)
    # PyTorch bool key_padding_mask: True => ignore -> large finite additive mask,
    # provided in both orientations so neither attention needs an in-kernel transpose.
    add_mask = jnp.where(key_padding_mask, MASK_VALUE, 0.0).astype(jnp.float32)
    mask_row = add_mask[:, None, :]                                        # (B, 1, S)
    mask_col = add_mask[:, :, None]                                        # (B, S, 1)
    logits_t = _fused_call(kp, xT, text, mask_row, mask_col)               # (nc, B)
    return logits_t.T                                                      # (B, nc)


# ----------------------------------------------------------------------------
# Pure-JAX reference (PyTorch-layout weights) for correctness checking
# ----------------------------------------------------------------------------
def reference_forward(params, img, tokens, key_padding_mask):
    B, Cin, H, W = img.shape
    wconv, bconv = params["wconv"], params["bconv"]
    feat = jnp.einsum("bchw,ec->behw", img, wconv) + bconv[0][None, :, None, None]
    feat = jnp.maximum(feat, 0.0)
    x = jnp.transpose(feat.reshape(B, feat.shape[1], H * W), (0, 2, 1))
    img_proj = x @ params["we"].T + params["be"]
    text = jnp.take(params["emb_table"], tokens, axis=0)
    add_mask = jnp.where(key_padding_mask, MASK_VALUE, 0.0)[:, None, :]

    def mha(q_in, kv_in, p):
        wq, wk, wv, bq, bk, bv, wo, bo = p
        d = q_in.shape[-1]
        dh = d // NUM_HEADS
        scale = 1.0 / (dh ** 0.5)
        q = q_in @ wq.T + bq
        k = kv_in @ wk.T + bk
        v = kv_in @ wv.T + bv
        Bq, Lq, _ = q.shape
        Lk = k.shape[1]
        qh = q.reshape(Bq, Lq, NUM_HEADS, dh).transpose(0, 2, 1, 3)
        kh = k.reshape(Bq, Lk, NUM_HEADS, dh).transpose(0, 2, 1, 3)
        vh = v.reshape(Bq, Lk, NUM_HEADS, dh).transpose(0, 2, 1, 3)
        s = jnp.einsum("bhqd,bhkd->bhqk", qh, kh) * scale + add_mask[:, None, :, :]
        a = jax.nn.softmax(s, axis=-1)
        o = jnp.einsum("bhqk,bhkd->bhqd", a, vh)
        o = o.transpose(0, 2, 1, 3).reshape(Bq, Lq, d)
        return o @ wo.T + bo

    text_sa = mha(text, text, params["self_attn"])
    cross = mha(img_proj, text_sa, params["cross_attn"])
    resid = img_proj + cross
    pooled = jnp.maximum(jnp.mean(resid, axis=1), 0.0)
    return pooled @ params["wc"].T + params["bc"]


def init_params(key, cin, img_embed_dim, text_embed_dim, vocab, num_classes):
    ks = jax.random.split(key, 16)
    d = text_embed_dim

    def mha_params(k):
        kk = jax.random.split(k, 8)
        return (
            0.05 * jax.random.normal(kk[0], (d, d), jnp.float32),   # wq
            0.05 * jax.random.normal(kk[1], (d, d), jnp.float32),   # wk
            0.05 * jax.random.normal(kk[2], (d, d), jnp.float32),   # wv
            0.05 * jax.random.normal(kk[3], (1, d), jnp.float32),   # bq
            0.05 * jax.random.normal(kk[4], (1, d), jnp.float32),   # bk
            0.05 * jax.random.normal(kk[5], (1, d), jnp.float32),   # bv
            0.05 * jax.random.normal(kk[6], (d, d), jnp.float32),   # wo
            0.05 * jax.random.normal(kk[7], (1, d), jnp.float32),   # bo
        )

    return {
        "wconv": 0.1 * jax.random.normal(ks[0], (img_embed_dim, cin), jnp.float32),
        "bconv": 0.1 * jax.random.normal(ks[1], (1, img_embed_dim), jnp.float32),
        "emb_table": 0.1 * jax.random.normal(ks[2], (vocab, d), jnp.float32),
        "we": 0.1 * jax.random.normal(ks[3], (d, img_embed_dim), jnp.float32),
        "be": 0.1 * jax.random.normal(ks[4], (1, d), jnp.float32),
        "self_attn": mha_params(ks[5]),
        "cross_attn": mha_params(ks[6]),
        "wc": 0.1 * jax.random.normal(ks[7], (num_classes, d), jnp.float32),
        "bc": 0.1 * jax.random.normal(ks[8], (1, num_classes), jnp.float32),
    }


if __name__ == "__main__":
    B, Cin, H, W = 2, 4, 16, 16
    S, vocab = 8, 64
    img_embed_dim, text_embed_dim = 32, 32
    num_classes = 2

    key = jax.random.PRNGKey(0)
    k_params, k_img, k_tok = jax.random.split(key, 3)

    params = init_params(k_params, Cin, img_embed_dim, text_embed_dim, vocab, num_classes)

    img = jax.random.normal(k_img, (B, Cin, H, W), jnp.float32)            # NCHW
    tokens = jax.random.randint(k_tok, (B, S), 0, vocab, jnp.int32)
    # key_padding_mask: True = padded/ignored (PyTorch semantics); pad last 2 of row 1
    key_padding_mask = jnp.zeros((B, S), jnp.bool_).at[1, -2:].set(True)

    # One-time host-side weight prep (hoisted out of the jitted forward).
    kp = prepare_kernel_params(params, H * W)

    fwd = jax.jit(discriminator_forward)
    logits = fwd(kp, img, tokens, key_padding_mask)
    jax.block_until_ready(logits)
    assert logits.shape == (B, num_classes)

    ref = reference_forward(params, img, tokens, key_padding_mask)
    max_err = float(jnp.max(jnp.abs(logits - ref)))
    assert max_err < 5e-2, f"kernel/reference mismatch: {max_err}"

    print("KERNEL_OK")
</pallas_src>

<mosaic_0001>
module attributes {stable_mosaic.version = 11 : i64} {
  func.func @fused_forward_kernel(%arg0: memref<2x4x256xf32, #tpu.memory_space<vmem>>, %arg1: memref<2x8x32xf32, #tpu.memory_space<vmem>>, %arg2: memref<2x1x8xf32, #tpu.memory_space<vmem>>, %arg3: memref<2x8x1xf32, #tpu.memory_space<vmem>>, %arg4: memref<32x4xf32, #tpu.memory_space<vmem>>, %arg5: memref<32x1xf32, #tpu.memory_space<vmem>>, %arg6: memref<32x32xf32, #tpu.memory_space<vmem>>, %arg7: memref<32x1xf32, #tpu.memory_space<vmem>>, %arg8: memref<32x32xf32, #tpu.memory_space<vmem>>, %arg9: memref<1x32xf32, #tpu.memory_space<vmem>>, %arg10: memref<32x32xf32, #tpu.memory_space<vmem>>, %arg11: memref<1x32xf32, #tpu.memory_space<vmem>>, %arg12: memref<32x32xf32, #tpu.memory_space<vmem>>, %arg13: memref<1x32xf32, #tpu.memory_space<vmem>>, %arg14: memref<32x32xf32, #tpu.memory_space<vmem>>, %arg15: memref<1x32xf32, #tpu.memory_space<vmem>>, %arg16: memref<32x32xf32, #tpu.memory_space<vmem>>, %arg17: memref<32x1xf32, #tpu.memory_space<vmem>>, %arg18: memref<32x32xf32, #tpu.memory_space<vmem>>, %arg19: memref<1x32xf32, #tpu.memory_space<vmem>>, %arg20: memref<32x32xf32, #tpu.memory_space<vmem>>, %arg21: memref<32x1xf32, #tpu.memory_space<vmem>>, %arg22: memref<32x32xf32, #tpu.memory_space<vmem>>, %arg23: memref<32x1xf32, #tpu.memory_space<vmem>>, %arg24: memref<2x32xf32, #tpu.memory_space<vmem>>, %arg25: memref<2x1xf32, #tpu.memory_space<vmem>>, %arg26: memref<2x2xf32, #tpu.memory_space<vmem>>) attributes {dimension_semantics = [], scalar_prefetch = 0 : i64, scratch_operands = 0 : i64, tpu.core_type = #tpu.core_type<tc>} {
    %c0 = arith.constant 0 : index
    %c0_0 = arith.constant 0 : index
    %0 = vector.load %arg4[%c0, %c0_0] : memref<32x4xf32, #tpu.memory_space<vmem>>, vector<32x4xf32>
    %c0_1 = arith.constant 0 : index
    %c0_2 = arith.constant 0 : index
    %1 = vector.load %arg5[%c0_1, %c0_2] : memref<32x1xf32, #tpu.memory_space<vmem>>, vector<32x1xf32>
    %c0_3 = arith.constant 0 : index
    %c0_4 = arith.constant 0 : index
    %2 = vector.load %arg6[%c0_3, %c0_4] : memref<32x32xf32, #tpu.memory_space<vmem>>, vector<32x32xf32>
    %c0_5 = arith.constant 0 : index
    %c0_6 = arith.constant 0 : index
    %3 = vector.load %arg7[%c0_5, %c0_6] : memref<32x1xf32, #tpu.memory_space<vmem>>, vector<32x1xf32>
    %c0_7 = arith.constant 0 : index
    %c0_8 = arith.constant 0 : index
    %4 = vector.load %arg8[%c0_7, %c0_8] : memref<32x32xf32, #tpu.memory_space<vmem>>, vector<32x32xf32>
    %c0_9 = arith.constant 0 : index
    %c0_10 = arith.constant 0 : index
    %5 = vector.load %arg9[%c0_9, %c0_10] : memref<1x32xf32, #tpu.memory_space<vmem>>, vector<1x32xf32>
    %c0_11 = arith.constant 0 : index
    %c0_12 = arith.constant 0 : index
    %6 = vector.load %arg10[%c0_11, %c0_12] : memref<32x32xf32, #tpu.memory_space<vmem>>, vector<32x32xf32>
    %c0_13 = arith.constant 0 : index
    %c0_14 = arith.constant 0 : index
    %7 = vector.load %arg11[%c0_13, %c0_14] : memref<1x32xf32, #tpu.memory_space<vmem>>, vector<1x32xf32>
    %c0_15 = arith.constant 0 : index
    %c0_16 = arith.constant 0 : index
    %8 = vector.load %arg12[%c0_15, %c0_16] : memref<32x32xf32, #tpu.memory_space<vmem>>, vector<32x32xf32>
    %c0_17 = arith.constant 0 : index
    %c0_18 = arith.constant 0 : index
    %9 = vector.load %arg13[%c0_17, %c0_18] : memref<1x32xf32, #tpu.memory_space<vmem>>, vector<1x32xf32>
    %c0_19 = arith.constant 0 : index
    %c0_20 = arith.constant 0 : index
    %10 = vector.load %arg14[%c0_19, %c0_20] : memref<32x32xf32, #tpu.memory_space<vmem>>, vector<32x32xf32>
    %c0_21 = arith.constant 0 : index
    %c0_22 = arith.constant 0 : index
    %11 = vector.load %arg15[%c0_21, %c0_22] : memref<1x32xf32, #tpu.memory_space<vmem>>, vector<1x32xf32>
    %c0_23 = arith.constant 0 : index
    %c0_24 = arith.constant 0 : index
    %12 = vector.load %arg16[%c0_23, %c0_24] : memref<32x32xf32, #tpu.memory_space<vmem>>, vector<32x32xf32>
    %c0_25 = arith.constant 0 : index
    %c0_26 = arith.constant 0 : index
    %13 = vector.load %arg17[%c0_25, %c0_26] : memref<32x1xf32, #tpu.memory_space<vmem>>, vector<32x1xf32>
    %c0_27 = arith.constant 0 : index
    %c0_28 = arith.constant 0 : index
    %14 = vector.load %arg18[%c0_27, %c0_28] : memref<32x32xf32, #tpu.memory_space<vmem>>, vector<32x32xf32>
    %c0_29 = arith.constant 0 : index
    %c0_30 = arith.constant 0 : index
    %15 = vector.load %arg19[%c0_29, %c0_30] : memref<1x32xf32, #tpu.memory_space<vmem>>, vector<1x32xf32>
    %c0_31 = arith.constant 0 : index
    %c0_32 = arith.constant 0 : index
    %16 = vector.load %arg20[%c0_31, %c0_32] : memref<32x32xf32, #tpu.memory_space<vmem>>, vector<32x32xf32>
    %c0_33 = arith.constant 0 : index
    %c0_34 = arith.constant 0 : index
    %17 = vector.load %arg21[%c0_33, %c0_34] : memref<32x1xf32, #tpu.memory_space<vmem>>, vector<32x1xf32>
    %c0_35 = arith.constant 0 : index
    %c0_36 = arith.constant 0 : index
    %18 = vector.load %arg22[%c0_35, %c0_36] : memref<32x32xf32, #tpu.memory_space<vmem>>, vector<32x32xf32>
    %c0_37 = arith.constant 0 : index
    %c0_38 = arith.constant 0 : index
    %19 = vector.load %arg23[%c0_37, %c0_38] : memref<32x1xf32, #tpu.memory_space<vmem>>, vector<32x1xf32>
    %c0_39 = arith.constant 0 : index
    %c0_40 = arith.constant 0 : index
    %20 = vector.load %arg24[%c0_39, %c0_40] : memref<2x32xf32, #tpu.memory_space<vmem>>, vector<2x32xf32>
    %c0_41 = arith.constant 0 : index
    %c0_42 = arith.constant 0 : index
    %21 = vector.load %arg25[%c0_41, %c0_42] : memref<2x1xf32, #tpu.memory_space<vmem>>, vector<2x1xf32>
    %c0_43 = arith.constant 0 : index
    %c0_44 = arith.constant 0 : index
    %c0_45 = arith.constant 0 : index
    %22 = vector.load %arg0[%c0_43, %c0_44, %c0_45] : memref<2x4x256xf32, #tpu.memory_space<vmem>>, vector<1x4x256xf32>
    %23 = vector.shape_cast %22 : vector<1x4x256xf32> to vector<4x256xf32>
    %c0_46 = arith.constant 0 : index
    %c0_47 = arith.constant 0 : index
    %c0_48 = arith.constant 0 : index
    %24 = vector.load %arg1[%c0_46, %c0_47, %c0_48] : memref<2x8x32xf32, #tpu.memory_space<vmem>>, vector<1x8x32xf32>
    %25 = vector.shape_cast %24 : vector<1x8x32xf32> to vector<8x32xf32>
    %c0_49 = arith.constant 0 : index
    %c0_50 = arith.constant 0 : index
    %c0_51 = arith.constant 0 : index
    %26 = vector.load %arg2[%c0_49, %c0_50, %c0_51] : memref<2x1x8xf32, #tpu.memory_space<vmem>>, vector<1x1x8xf32>
    %27 = vector.shape_cast %26 : vector<1x1x8xf32> to vector<1x8xf32>
    %c0_52 = arith.constant 0 : index
    %c0_53 = arith.constant 0 : index
    %c0_54 = arith.constant 0 : index
    %28 = vector.load %arg3[%c0_52, %c0_53, %c0_54] : memref<2x8x1xf32, #tpu.memory_space<vmem>>, vector<1x8x1xf32>
    %29 = vector.shape_cast %28 : vector<1x8x1xf32> to vector<8x1xf32>
    %cst = arith.constant dense<0.000000e+00> : vector<32x256xf32>
    %30 = tpu.matmul %0, %23, %cst {dimension_numbers = #tpu.dot_dimension_numbers<[1], [0], [0], [1], [0, 0, 1, 1], [], []>} : vector<32x4xf32>, vector<4x256xf32>, vector<32x256xf32> -> vector<32x256xf32>
    %31 = vector.broadcast %1 : vector<32x1xf32> to vector<32x256xf32>
    %32 = arith.addf %30, %31 : vector<32x256xf32>
    %cst_55 = arith.constant 0.000000e+00 : f32
    %33 = vector.broadcast %cst_55 : f32 to vector<32x256xf32>
    %34 = arith.maximumf %32, %33 : vector<32x256xf32>
    %cst_56 = arith.constant dense<0.000000e+00> : vector<32x256xf32>
    %35 = tpu.matmul %2, %34, %cst_56 {dimension_numbers = #tpu.dot_dimension_numbers<[1], [0], [0], [1], [0, 0, 1, 1], [], []>} : vector<32x32xf32>, vector<32x256xf32>, vector<32x256xf32> -> vector<32x256xf32>
    %36 = vector.broadcast %3 : vector<32x1xf32> to vector<32x256xf32>
    %37 = arith.addf %35, %36 : vector<32x256xf32>
    %cst_57 = arith.constant dense<0.000000e+00> : vector<8x32xf32>
    %38 = tpu.matmul %25, %4, %cst_57 {dimension_numbers = #tpu.dot_dimension_numbers<[1], [0], [0], [1], [0, 0, 1, 1], [], []>} : vector<8x32xf32>, vector<32x32xf32>, vector<8x32xf32> -> vector<8x32xf32>
    %39 = vector.broadcast %5 : vector<1x32xf32> to vector<8x32xf32>
    %40 = arith.addf %38, %39 : vector<8x32xf32>
    %cst_58 = arith.constant dense<0.000000e+00> : vector<8x32xf32>
    %41 = tpu.matmul %25, %6, %cst_58 {dimension_numbers = #tpu.dot_dimension_numbers<[1], [0], [0], [1], [0, 0, 1, 1], [], []>} : vector<8x32xf32>, vector<32x32xf32>, vector<8x32xf32> -> vector<8x32xf32>
    %42 = vector.broadcast %7 : vector<1x32xf32> to vector<8x32xf32>
    %43 = arith.addf %41, %42 : vector<8x32xf32>
    %cst_59 = arith.constant dense<0.000000e+00> : vector<8x32xf32>
    %44 = tpu.matmul %25, %8, %cst_59 {dimension_numbers = #tpu.dot_dimension_numbers<[1], [0], [0], [1], [0, 0, 1, 1], [], []>} : vector<8x32xf32>, vector<32x32xf32>, vector<8x32xf32> -> vector<8x32xf32>
    %45 = vector.broadcast %9 : vector<1x32xf32> to vector<8x32xf32>
    %46 = arith.addf %44, %45 : vector<8x32xf32>
    %47 = vector.shape_cast %27 : vector<1x8xf32> to vector<1x8xf32>
    %48 = vector.broadcast %47 : vector<1x8xf32> to vector<8x8xf32>
    %49 = vector.extract_strided_slice %40 {offsets = [0, 0], sizes = [8, 8], strides = [1, 1]} : vector<8x32xf32> to vector<8x8xf32>
    %50 = vector.extract_strided_slice %43 {offsets = [0, 0], sizes = [8, 8], strides = [1, 1]} : vector<8x32xf32> to vector<8x8xf32>
    %cst_60 = arith.constant dense<0.000000e+00> : vector<8x8xf32>
    %51 = tpu.matmul %49, %50, %cst_60 {dimension_numbers = #tpu.dot_dimension_numbers<[1], [1], [0], [0], [0, 0, 1, 0], [], []>} : vector<8x8xf32>, vector<8x8xf32>, vector<8x8xf32> -> vector<8x8xf32>
    %52 = arith.addf %51, %48 : vector<8x8xf32>
    %cst_61 = arith.constant dense<0xFF800000> : vector<8xf32>
    %53 = vector.multi_reduction <maximumf>, %52, %cst_61 [1] : vector<8x8xf32> to vector<8xf32>
    %54 = vector.shape_cast %53 : vector<8xf32> to vector<8x1xf32>
    %55 = vector.broadcast %54 : vector<8x1xf32> to vector<8x8xf32>
    %56 = arith.subf %52, %55 : vector<8x8xf32>
    %57 = math.exp %56 : vector<8x8xf32>
    %cst_62 = arith.constant dense<0.000000e+00> : vector<8xf32>
    %58 = vector.multi_reduction <add>, %57, %cst_62 [1] : vector<8x8xf32> to vector<8xf32>
    %59 = vector.shape_cast %58 : vector<8xf32> to vector<8x1xf32>
    %60 = tpu.reciprocal %59 {approx = true} : vector<8x1xf32> -> vector<8x1xf32>
    %61 = vector.broadcast %60 : vector<8x1xf32> to vector<8x8xf32>
    %62 = arith.mulf %57, %61 : vector<8x8xf32>
    %63 = vector.extract_strided_slice %46 {offsets = [0, 0], sizes = [8, 8], strides = [1, 1]} : vector<8x32xf32> to vector<8x8xf32>
    %cst_63 = arith.constant dense<0.000000e+00> : vector<8x8xf32>
    %64 = tpu.matmul %62, %63, %cst_63 {dimension_numbers = #tpu.dot_dimension_numbers<[1], [0], [0], [1], [0, 0, 1, 1], [], []>} : vector<8x8xf32>, vector<8x8xf32>, vector<8x8xf32> -> vector<8x8xf32>
    %65 = vector.extract_strided_slice %40 {offsets = [0, 8], sizes = [8, 8], strides = [1, 1]} : vector<8x32xf32> to vector<8x8xf32>
    %66 = vector.extract_strided_slice %43 {offsets = [0, 8], sizes = [8, 8], strides = [1, 1]} : vector<8x32xf32> to vector<8x8xf32>
    %cst_64 = arith.constant dense<0.000000e+00> : vector<8x8xf32>
    %67 = tpu.matmul %65, %66, %cst_64 {dimension_numbers = #tpu.dot_dimension_numbers<[1], [1], [0], [0], [0, 0, 1, 0], [], []>} : vector<8x8xf32>, vector<8x8xf32>, vector<8x8xf32> -> vector<8x8xf32>
    %68 = arith.addf %67, %48 : vector<8x8xf32>
    %cst_65 = arith.constant dense<0xFF800000> : vector<8xf32>
    %69 = vector.multi_reduction <maximumf>, %68, %cst_65 [1] : vector<8x8xf32> to vector<8xf32>
    %70 = vector.shape_cast %69 : vector<8xf32> to vector<8x1xf32>
    %71 = vector.broadcast %70 : vector<8x1xf32> to vector<8x8xf32>
    %72 = arith.subf %68, %71 : vector<8x8xf32>
    %73 = math.exp %72 : vector<8x8xf32>
    %cst_66 = arith.constant dense<0.000000e+00> : vector<8xf32>
    %74 = vector.multi_reduction <add>, %73, %cst_66 [1] : vector<8x8xf32> to vector<8xf32>
    %75 = vector.shape_cast %74 : vector<8xf32> to vector<8x1xf32>
    %76 = tpu.reciprocal %75 {approx = true} : vector<8x1xf32> -> vector<8x1xf32>
    %77 = vector.broadcast %76 : vector<8x1xf32> to vector<8x8xf32>
    %78 = arith.mulf %73, %77 : vector<8x8xf32>
    %79 = vector.extract_strided_slice %46 {offsets = [0, 8], sizes = [8, 8], strides = [1, 1]} : vector<8x32xf32> to vector<8x8xf32>
    %cst_67 = arith.constant dense<0.000000e+00> : vector<8x8xf32>
    %80 = tpu.matmul %78, %79, %cst_67 {dimension_numbers = #tpu.dot_dimension_numbers<[1], [0], [0], [1], [0, 0, 1, 1], [], []>} : vector<8x8xf32>, vector<8x8xf32>, vector<8x8xf32> -> vector<8x8xf32>
    %81 = vector.extract_strided_slice %40 {offsets = [0, 16], sizes = [8, 8], strides = [1, 1]} : vector<8x32xf32> to vector<8x8xf32>
    %82 = vector.extract_strided_slice %43 {offsets = [0, 16], sizes = [8, 8], strides = [1, 1]} : vector<8x32xf32> to vector<8x8xf32>
    %cst_68 = arith.constant dense<0.000000e+00> : vector<8x8xf32>
    %83 = tpu.matmul %81, %82, %cst_68 {dimension_numbers = #tpu.dot_dimension_numbers<[1], [1], [0], [0], [0, 0, 1, 0], [], []>} : vector<8x8xf32>, vector<8x8xf32>, vector<8x8xf32> -> vector<8x8xf32>
    %84 = arith.addf %83, %48 : vector<8x8xf32>
    %cst_69 = arith.constant dense<0xFF800000> : vector<8xf32>
    %85 = vector.multi_reduction <maximumf>, %84, %cst_69 [1] : vector<8x8xf32> to vector<8xf32>
    %86 = vector.shape_cast %85 : vector<8xf32> to vector<8x1xf32>
    %87 = vector.broadcast %86 : vector<8x1xf32> to vector<8x8xf32>
    %88 = arith.subf %84, %87 : vector<8x8xf32>
    %89 = math.exp %88 : vector<8x8xf32>
    %cst_70 = arith.constant dense<0.000000e+00> : vector<8xf32>
    %90 = vector.multi_reduction <add>, %89, %cst_70 [1] : vector<8x8xf32> to vector<8xf32>
    %91 = vector.shape_cast %90 : vector<8xf32> to vector<8x1xf32>
    %92 = tpu.reciprocal %91 {approx = true} : vector<8x1xf32> -> vector<8x1xf32>
    %93 = vector.broadcast %92 : vector<8x1xf32> to vector<8x8xf32>
    %94 = arith.mulf %89, %93 : vector<8x8xf32>
    %95 = vector.extract_strided_slice %46 {offsets = [0, 16], sizes = [8, 8], strides = [1, 1]} : vector<8x32xf32> to vector<8x8xf32>
    %cst_71 = arith.constant dense<0.000000e+00> : vector<8x8xf32>
    %96 = tpu.matmul %94, %95, %cst_71 {dimension_numbers = #tpu.dot_dimension_numbers<[1], [0], [0], [1], [0, 0, 1, 1], [], []>} : vector<8x8xf32>, vector<8x8xf32>, vector<8x8xf32> -> vector<8x8xf32>
    %97 = vector.extract_strided_slice %40 {offsets = [0, 24], sizes = [8, 8], strides = [1, 1]} : vector<8x32xf32> to vector<8x8xf32>
    %98 = vector.extract_strided_slice %43 {offsets = [0, 24], sizes = [8, 8], strides = [1, 1]} : vector<8x32xf32> to vector<8x8xf32>
    %cst_72 = arith.constant dense<0.000000e+00> : vector<8x8xf32>
    %99 = tpu.matmul %97, %98, %cst_72 {dimension_numbers = #tpu.dot_dimension_numbers<[1], [1], [0], [0], [0, 0, 1, 0], [], []>} : vector<8x8xf32>, vector<8x8xf32>, vector<8x8xf32> -> vector<8x8xf32>
    %100 = arith.addf %99, %48 : vector<8x8xf32>
    %cst_73 = arith.constant dense<0xFF800000> : vector<8xf32>
    %101 = vector.multi_reduction <maximumf>, %100, %cst_73 [1] : vector<8x8xf32> to vector<8xf32>
    %102 = vector.shape_cast %101 : vector<8xf32> to vector<8x1xf32>
    %103 = vector.broadcast %102 : vector<8x1xf32> to vector<8x8xf32>
    %104 = arith.subf %100, %103 : vector<8x8xf32>
    %105 = math.exp %104 : vector<8x8xf32>
    %cst_74 = arith.constant dense<0.000000e+00> : vector<8xf32>
    %106 = vector.multi_reduction <add>, %105, %cst_74 [1] : vector<8x8xf32> to vector<8xf32>
    %107 = vector.shape_cast %106 : vector<8xf32> to vector<8x1xf32>
    %108 = tpu.reciprocal %107 {approx = true} : vector<8x1xf32> -> vector<8x1xf32>
    %109 = vector.broadcast %108 : vector<8x1xf32> to vector<8x8xf32>
    %110 = arith.mulf %105, %109 : vector<8x8xf32>
    %111 = vector.extract_strided_slice %46 {offsets = [0, 24], sizes = [8, 8], strides = [1, 1]} : vector<8x32xf32> to vector<8x8xf32>
    %cst_75 = arith.constant dense<0.000000e+00> : vector<8x8xf32>
    %112 = tpu.matmul %110, %111, %cst_75 {dimension_numbers = #tpu.dot_dimension_numbers<[1], [0], [0], [1], [0, 0, 1, 1], [], []>} : vector<8x8xf32>, vector<8x8xf32>, vector<8x8xf32> -> vector<8x8xf32>
    %113 = tpu.concatenate %64, %80, %96, %112 in 1 : vector<8x8xf32>, vector<8x8xf32>, vector<8x8xf32>, vector<8x8xf32> -> vector<8x32xf32>
    %cst_76 = arith.constant dense<0.000000e+00> : vector<8x32xf32>
    %114 = tpu.matmul %113, %10, %cst_76 {dimension_numbers = #tpu.dot_dimension_numbers<[1], [0], [0], [1], [0, 0, 1, 1], [], []>} : vector<8x32xf32>, vector<32x32xf32>, vector<8x32xf32> -> vector<8x32xf32>
    %115 = vector.broadcast %11 : vector<1x32xf32> to vector<8x32xf32>
    %116 = arith.addf %114, %115 : vector<8x32xf32>
    %cst_77 = arith.constant dense<0.000000e+00> : vector<32x256xf32>
    %117 = tpu.matmul %12, %37, %cst_77 {dimension_numbers = #tpu.dot_dimension_numbers<[1], [0], [0], [1], [0, 0, 1, 1], [], []>} : vector<32x32xf32>, vector<32x256xf32>, vector<32x256xf32> -> vector<32x256xf32>
    %118 = vector.broadcast %13 : vector<32x1xf32> to vector<32x256xf32>
    %119 = arith.addf %117, %118 : vector<32x256xf32>
    %cst_78 = arith.constant dense<0.000000e+00> : vector<8x32xf32>
    %120 = tpu.matmul %116, %14, %cst_78 {dimension_numbers = #tpu.dot_dimension_numbers<[1], [0], [0], [1], [0, 0, 1, 1], [], []>} : vector<8x32xf32>, vector<32x32xf32>, vector<8x32xf32> -> vector<8x32xf32>
    %121 = vector.broadcast %15 : vector<1x32xf32> to vector<8x32xf32>
    %122 = arith.addf %120, %121 : vector<8x32xf32>
    %cst_79 = arith.constant dense<0.000000e+00> : vector<32x8xf32>
    %123 = tpu.matmul %16, %116, %cst_79 {dimension_numbers = #tpu.dot_dimension_numbers<[1], [1], [0], [0], [0, 0, 1, 0], [], []>} : vector<32x32xf32>, vector<8x32xf32>, vector<32x8xf32> -> vector<32x8xf32>
    %124 = vector.broadcast %17 : vector<32x1xf32> to vector<32x8xf32>
    %125 = arith.addf %123, %124 : vector<32x8xf32>
    %126 = vector.shape_cast %29 : vector<8x1xf32> to vector<8x1xf32>
    %127 = vector.broadcast %126 : vector<8x1xf32> to vector<8x256xf32>
    %128 = vector.extract_strided_slice %122 {offsets = [0, 0], sizes = [8, 8], strides = [1, 1]} : vector<8x32xf32> to vector<8x8xf32>
    %129 = vector.extract_strided_slice %119 {offsets = [0, 0], sizes = [8, 256], strides = [1, 1]} : vector<32x256xf32> to vector<8x256xf32>
    %cst_80 = arith.constant dense<0.000000e+00> : vector<8x256xf32>
    %130 = tpu.matmul %128, %129, %cst_80 {dimension_numbers = #tpu.dot_dimension_numbers<[1], [0], [0], [1], [0, 0, 1, 1], [], []>} : vector<8x8xf32>, vector<8x256xf32>, vector<8x256xf32> -> vector<8x256xf32>
    %131 = arith.addf %130, %127 : vector<8x256xf32>
    %cst_81 = arith.constant dense<0xFF800000> : vector<256xf32>
    %132 = vector.multi_reduction <maximumf>, %131, %cst_81 [0] : vector<8x256xf32> to vector<256xf32>
    %133 = vector.shape_cast %132 : vector<256xf32> to vector<1x256xf32>
    %134 = vector.broadcast %133 : vector<1x256xf32> to vector<8x256xf32>
    %135 = arith.subf %131, %134 : vector<8x256xf32>
    %136 = math.exp %135 : vector<8x256xf32>
    %cst_82 = arith.constant dense<0.000000e+00> : vector<256xf32>
    %137 = vector.multi_reduction <add>, %136, %cst_82 [0] : vector<8x256xf32> to vector<256xf32>
    %138 = vector.shape_cast %137 : vector<256xf32> to vector<1x256xf32>
    %139 = tpu.reciprocal %138 {approx = true} : vector<1x256xf32> -> vector<1x256xf32>
    %140 = vector.broadcast %139 : vector<1x256xf32> to vector<8x256xf32>
    %141 = arith.mulf %136, %140 : vector<8x256xf32>
    %142 = vector.extract_strided_slice %125 {offsets = [0, 0], sizes = [8, 8], strides = [1, 1]} : vector<32x8xf32> to vector<8x8xf32>
    %cst_83 = arith.constant dense<0.000000e+00> : vector<8x256xf32>
    %143 = tpu.matmul %142, %141, %cst_83 {dimension_numbers = #tpu.dot_dimension_numbers<[1], [0], [0], [1], [0, 0, 1, 1], [], []>} : vector<8x8xf32>, vector<8x256xf32>, vector<8x256xf32> -> vector<8x256xf32>
    %144 = vector.extract_strided_slice %122 {offsets = [0, 8], sizes = [8, 8], strides = [1, 1]} : vector<8x32xf32> to vector<8x8xf32>
    %145 = vector.extract_strided_slice %119 {offsets = [8, 0], sizes = [8, 256], strides = [1, 1]} : vector<32x256xf32> to vector<8x256xf32>
    %cst_84 = arith.constant dense<0.000000e+00> : vector<8x256xf32>
    %146 = tpu.matmul %144, %145, %cst_84 {dimension_numbers = #tpu.dot_dimension_numbers<[1], [0], [0], [1], [0, 0, 1, 1], [], []>} : vector<8x8xf32>, vector<8x256xf32>, vector<8x256xf32> -> vector<8x256xf32>
    %147 = arith.addf %146, %127 : vector<8x256xf32>
    %cst_85 = arith.constant dense<0xFF800000> : vector<256xf32>
    %148 = vector.multi_reduction <maximumf>, %147, %cst_85 [0] : vector<8x256xf32> to vector<256xf32>
    %149 = vector.shape_cast %148 : vector<256xf32> to vector<1x256xf32>
    %150 = vector.broadcast %149 : vector<1x256xf32> to vector<8x256xf32>
    %151 = arith.subf %147, %150 : vector<8x256xf32>
    %152 = math.exp %151 : vector<8x256xf32>
    %cst_86 = arith.constant dense<0.000000e+00> : vector<256xf32>
    %153 = vector.multi_reduction <add>, %152, %cst_86 [0] : vector<8x256xf32> to vector<256xf32>
    %154 = vector.shape_cast %153 : vector<256xf32> to vector<1x256xf32>
    %155 = tpu.reciprocal %154 {approx = true} : vector<1x256xf32> -> vector<1x256xf32>
    %156 = vector.broadcast %155 : vector<1x256xf32> to vector<8x256xf32>
    %157 = arith.mulf %152, %156 : vector<8x256xf32>
    %158 = vector.extract_strided_slice %125 {offsets = [8, 0], sizes = [8, 8], strides = [1, 1]} : vector<32x8xf32> to vector<8x8xf32>
    %cst_87 = arith.constant dense<0.000000e+00> : vector<8x256xf32>
    %159 = tpu.matmul %158, %157, %cst_87 {dimension_numbers = #tpu.dot_dimension_numbers<[1], [0], [0], [1], [0, 0, 1, 1], [], []>} : vector<8x8xf32>, vector<8x256xf32>, vector<8x256xf32> -> vector<8x256xf32>
    %160 = vector.extract_strided_slice %122 {offsets = [0, 16], sizes = [8, 8], strides = [1, 1]} : vector<8x32xf32> to vector<8x8xf32>
    %161 = vector.extract_strided_slice %119 {offsets = [16, 0], sizes = [8, 256], strides = [1, 1]} : vector<32x256xf32> to vector<8x256xf32>
    %cst_88 = arith.constant dense<0.000000e+00> : vector<8x256xf32>
    %162 = tpu.matmul %160, %161, %cst_88 {dimension_numbers = #tpu.dot_dimension_numbers<[1], [0], [0], [1], [0, 0, 1, 1], [], []>} : vector<8x8xf32>, vector<8x256xf32>, vector<8x256xf32> -> vector<8x256xf32>
    %163 = arith.addf %162, %127 : vector<8x256xf32>
    %cst_89 = arith.constant dense<0xFF800000> : vector<256xf32>
    %164 = vector.multi_reduction <maximumf>, %163, %cst_89 [0] : vector<8x256xf32> to vector<256xf32>
    %165 = vector.shape_cast %164 : vector<256xf32> to vector<1x256xf32>
    %166 = vector.broadcast %165 : vector<1x256xf32> to vector<8x256xf32>
    %167 = arith.subf %163, %166 : vector<8x256xf32>
    %168 = math.exp %167 : vector<8x256xf32>
    %cst_90 = arith.constant dense<0.000000e+00> : vector<256xf32>
    %169 = vector.multi_reduction <add>, %168, %cst_90 [0] : vector<8x256xf32> to vector<256xf32>
    %170 = vector.shape_cast %169 : vector<256xf32> to vector<1x256xf32>
    %171 = tpu.reciprocal %170 {approx = true} : vector<1x256xf32> -> vector<1x256xf32>
    %172 = vector.broadcast %171 : vector<1x256xf32> to vector<8x256xf32>
    %173 = arith.mulf %168, %172 : vector<8x256xf32>
    %174 = vector.extract_strided_slice %125 {offsets = [16, 0], sizes = [8, 8], strides = [1, 1]} : vector<32x8xf32> to vector<8x8xf32>
    %cst_91 = arith.constant dense<0.000000e+00> : vector<8x256xf32>
    %175 = tpu.matmul %174, %173, %cst_91 {dimension_numbers = #tpu.dot_dimension_numbers<[1], [0], [0], [1], [0, 0, 1, 1], [], []>} : vector<8x8xf32>, vector<8x256xf32>, vector<8x256xf32> -> vector<8x256xf32>
    %176 = vector.extract_strided_slice %122 {offsets = [0, 24], sizes = [8, 8], strides = [1, 1]} : vector<8x32xf32> to vector<8x8xf32>
    %177 = vector.extract_strided_slice %119 {offsets = [24, 0], sizes = [8, 256], strides = [1, 1]} : vector<32x256xf32> to vector<8x256xf32>
    %cst_92 = arith.constant dense<0.000000e+00> : vector<8x256xf32>
    %178 = tpu.matmul %176, %177, %cst_92 {dimension_numbers = #tpu.dot_dimension_numbers<[1], [0], [0], [1], [0, 0, 1, 1], [], []>} : vector<8x8xf32>, vector<8x256xf32>, vector<8x256xf32> -> vector<8x256xf32>
    %179 = arith.addf %178, %127 : vector<8x256xf32>
    %cst_93 = arith.constant dense<0xFF800000> : vector<256xf32>
    %180 = vector.multi_reduction <maximumf>, %179, %cst_93 [0] : vector<8x256xf32> to vector<256xf32>
    %181 = vector.shape_cast %180 : vector<256xf32> to vector<1x256xf32>
    %182 = vector.broadcast %181 : vector<1x256xf32> to vector<8x256xf32>
    %183 = arith.subf %179, %182 : vector<8x256xf32>
    %184 = math.exp %183 : vector<8x256xf32>
    %cst_94 = arith.constant dense<0.000000e+00> : vector<256xf32>
    %185 = vector.multi_reduction <add>, %184, %cst_94 [0] : vector<8x256xf32> to vector<256xf32>
    %186 = vector.shape_cast %185 : vector<256xf32> to vector<1x256xf32>
    %187 = tpu.reciprocal %186 {approx = true} : vector<1x256xf32> -> vector<1x256xf32>
    %188 = vector.broadcast %187 : vector<1x256xf32> to vector<8x256xf32>
    %189 = arith.mulf %184, %188 : vector<8x256xf32>
    %190 = vector.extract_strided_slice %125 {offsets = [24, 0], sizes = [8, 8], strides = [1, 1]} : vector<32x8xf32> to vector<8x8xf32>
    %cst_95 = arith.constant dense<0.000000e+00> : vector<8x256xf32>
    %191 = tpu.matmul %190, %189, %cst_95 {dimension_numbers = #tpu.dot_dimension_numbers<[1], [0], [0], [1], [0, 0, 1, 1], [], []>} : vector<8x8xf32>, vector<8x256xf32>, vector<8x256xf32> -> vector<8x256xf32>
    %192 = tpu.concatenate %143, %159, %175, %191 in 0 : vector<8x256xf32>, vector<8x256xf32>, vector<8x256xf32>, vector<8x256xf32> -> vector<32x256xf32>
    %cst_96 = arith.constant dense<0.000000e+00> : vector<32x256xf32>
    %193 = tpu.matmul %18, %192, %cst_96 {dimension_numbers = #tpu.dot_dimension_numbers<[1], [0], [0], [1], [0, 0, 1, 1], [], []>} : vector<32x32xf32>, vector<32x256xf32>, vector<32x256xf32> -> vector<32x256xf32>
    %194 = vector.broadcast %19 : vector<32x1xf32> to vector<32x256xf32>
    %195 = arith.addf %193, %194 : vector<32x256xf32>
    %196 = arith.addf %37, %195 : vector<32x256xf32>
    %cst_97 = arith.constant dense<0.000000e+00> : vector<32xf32>
    %197 = vector.multi_reduction <add>, %196, %cst_97 [1] : vector<32x256xf32> to vector<32xf32>
    %198 = vector.shape_cast %197 : vector<32xf32> to vector<32x1xf32>
    %c1 = arith.constant 1 : index
    %c0_98 = arith.constant 0 : index
    %c0_99 = arith.constant 0 : index
    %199 = vector.load %arg0[%c1, %c0_98, %c0_99] : memref<2x4x256xf32, #tpu.memory_space<vmem>>, vector<1x4x256xf32>
    %200 = vector.shape_cast %199 : vector<1x4x256xf32> to vector<4x256xf32>
    %c1_100 = arith.constant 1 : index
    %c0_101 = arith.constant 0 : index
    %c0_102 = arith.constant 0 : index
    %201 = vector.load %arg1[%c1_100, %c0_101, %c0_102] : memref<2x8x32xf32, #tpu.memory_space<vmem>>, vector<1x8x32xf32>
    %202 = vector.shape_cast %201 : vector<1x8x32xf32> to vector<8x32xf32>
    %c1_103 = arith.constant 1 : index
    %c0_104 = arith.constant 0 : index
    %c0_105 = arith.constant 0 : index
    %203 = vector.load %arg2[%c1_103, %c0_104, %c0_105] : memref<2x1x8xf32, #tpu.memory_space<vmem>>, vector<1x1x8xf32>
    %204 = vector.shape_cast %203 : vector<1x1x8xf32> to vector<1x8xf32>
    %c1_106 = arith.constant 1 : index
    %c0_107 = arith.constant 0 : index
    %c0_108 = arith.constant 0 : index
    %205 = vector.load %arg3[%c1_106, %c0_107, %c0_108] : memref<2x8x1xf32, #tpu.memory_space<vmem>>, vector<1x8x1xf32>
    %206 = vector.shape_cast %205 : vector<1x8x1xf32> to vector<8x1xf32>
    %cst_109 = arith.constant dense<0.000000e+00> : vector<32x256xf32>
    %207 = tpu.matmul %0, %200, %cst_109 {dimension_numbers = #tpu.dot_dimension_numbers<[1], [0], [0], [1], [0, 0, 1, 1], [], []>} : vector<32x4xf32>, vector<4x256xf32>, vector<32x256xf32> -> vector<32x256xf32>
    %208 = vector.broadcast %1 : vector<32x1xf32> to vector<32x256xf32>
    %209 = arith.addf %207, %208 : vector<32x256xf32>
    %cst_110 = arith.constant 0.000000e+00 : f32
    %210 = vector.broadcast %cst_110 : f32 to vector<32x256xf32>
    %211 = arith.maximumf %209, %210 : vector<32x256xf32>
    %cst_111 = arith.constant dense<0.000000e+00> : vector<32x256xf32>
    %212 = tpu.matmul %2, %211, %cst_111 {dimension_numbers = #tpu.dot_dimension_numbers<[1], [0], [0], [1], [0, 0, 1, 1], [], []>} : vector<32x32xf32>, vector<32x256xf32>, vector<32x256xf32> -> vector<32x256xf32>
    %213 = vector.broadcast %3 : vector<32x1xf32> to vector<32x256xf32>
    %214 = arith.addf %212, %213 : vector<32x256xf32>
    %cst_112 = arith.constant dense<0.000000e+00> : vector<8x32xf32>
    %215 = tpu.matmul %202, %4, %cst_112 {dimension_numbers = #tpu.dot_dimension_numbers<[1], [0], [0], [1], [0, 0, 1, 1], [], []>} : vector<8x32xf32>, vector<32x32xf32>, vector<8x32xf32> -> vector<8x32xf32>
    %216 = vector.broadcast %5 : vector<1x32xf32> to vector<8x32xf32>
    %217 = arith.addf %215, %216 : vector<8x32xf32>
    %cst_113 = arith.constant dense<0.000000e+00> : vector<8x32xf32>
    %218 = tpu.matmul %202, %6, %cst_113 {dimension_numbers = #tpu.dot_dimension_numbers<[1], [0], [0], [1], [0, 0, 1, 1], [], []>} : vector<8x32xf32>, vector<32x32xf32>, vector<8x32xf32> -> vector<8x32xf32>
    %219 = vector.broadcast %7 : vector<1x32xf32> to vector<8x32xf32>
    %220 = arith.addf %218, %219 : vector<8x32xf32>
    %cst_114 = arith.constant dense<0.000000e+00> : vector<8x32xf32>
    %221 = tpu.matmul %202, %8, %cst_114 {dimension_numbers = #tpu.dot_dimension_numbers<[1], [0], [0], [1], [0, 0, 1, 1], [], []>} : vector<8x32xf32>, vector<32x32xf32>, vector<8x32xf32> -> vector<8x32xf32>
    %222 = vector.broadcast %9 : vector<1x32xf32> to vector<8x32xf32>
    %223 = arith.addf %221, %222 : vector<8x32xf32>
    %224 = vector.shape_cast %204 : vector<1x8xf32> to vector<1x8xf32>
    %225 = vector.broadcast %224 : vector<1x8xf32> to vector<8x8xf32>
    %226 = vector.extract_strided_slice %217 {offsets = [0, 0], sizes = [8, 8], strides = [1, 1]} : vector<8x32xf32> to vector<8x8xf32>
    %227 = vector.extract_strided_slice %220 {offsets = [0, 0], sizes = [8, 8], strides = [1, 1]} : vector<8x32xf32> to vector<8x8xf32>
    %cst_115 = arith.constant dense<0.000000e+00> : vector<8x8xf32>
    %228 = tpu.matmul %226, %227, %cst_115 {dimension_numbers = #tpu.dot_dimension_numbers<[1], [1], [0], [0], [0, 0, 1, 0], [], []>} : vector<8x8xf32>, vector<8x8xf32>, vector<8x8xf32> -> vector<8x8xf32>
    %229 = arith.addf %228, %225 : vector<8x8xf32>
    %cst_116 = arith.constant dense<0xFF800000> : vector<8xf32>
    %230 = vector.multi_reduction <maximumf>, %229, %cst_116 [1] : vector<8x8xf32> to vector<8xf32>
    %231 = vector.shape_cast %230 : vector<8xf32> to vector<8x1xf32>
    %232 = vector.broadcast %231 : vector<8x1xf32> to vector<8x8xf32>
    %233 = arith.subf %229, %232 : vector<8x8xf32>
    %234 = math.exp %233 : vector<8x8xf32>
    %cst_117 = arith.constant dense<0.000000e+00> : vector<8xf32>
    %235 = vector.multi_reduction <add>, %234, %cst_117 [1] : vector<8x8xf32> to vector<8xf32>
    %236 = vector.shape_cast %235 : vector<8xf32> to vector<8x1xf32>
    %237 = tpu.reciprocal %236 {approx = true} : vector<8x1xf32> -> vector<8x1xf32>
    %238 = vector.broadcast %237 : vector<8x1xf32> to vector<8x8xf32>
    %239 = arith.mulf %234, %238 : vector<8x8xf32>
    %240 = vector.extract_strided_slice %223 {offsets = [0, 0], sizes = [8, 8], strides = [1, 1]} : vector<8x32xf32> to vector<8x8xf32>
    %cst_118 = arith.constant dense<0.000000e+00> : vector<8x8xf32>
    %241 = tpu.matmul %239, %240, %cst_118 {dimension_numbers = #tpu.dot_dimension_numbers<[1], [0], [0], [1], [0, 0, 1, 1], [], []>} : vector<8x8xf32>, vector<8x8xf32>, vector<8x8xf32> -> vector<8x8xf32>
    %242 = vector.extract_strided_slice %217 {offsets = [0, 8], sizes = [8, 8], strides = [1, 1]} : vector<8x32xf32> to vector<8x8xf32>
    %243 = vector.extract_strided_slice %220 {offsets = [0, 8], sizes = [8, 8], strides = [1, 1]} : vector<8x32xf32> to vector<8x8xf32>
    %cst_119 = arith.constant dense<0.000000e+00> : vector<8x8xf32>
    %244 = tpu.matmul %242, %243, %cst_119 {dimension_numbers = #tpu.dot_dimension_numbers<[1], [1], [0], [0], [0, 0, 1, 0], [], []>} : vector<8x8xf32>, vector<8x8xf32>, vector<8x8xf32> -> vector<8x8xf32>
    %245 = arith.addf %244, %225 : vector<8x8xf32>
    %cst_120 = arith.constant dense<0xFF800000> : vector<8xf32>
    %246 = vector.multi_reduction <maximumf>, %245, %cst_120 [1] : vector<8x8xf32> to vector<8xf32>
    %247 = vector.shape_cast %246 : vector<8xf32> to vector<8x1xf32>
    %248 = vector.broadcast %247 : vector<8x1xf32> to vector<8x8xf32>
    %249 = arith.subf %245, %248 : vector<8x8xf32>
    %250 = math.exp %249 : vector<8x8xf32>
    %cst_121 = arith.constant dense<0.000000e+00> : vector<8xf32>
    %251 = vector.multi_reduction <add>, %250, %cst_121 [1] : vector<8x8xf32> to vector<8xf32>
    %252 = vector.shape_cast %251 : vector<8xf32> to vector<8x1xf32>
    %253 = tpu.reciprocal %252 {approx = true} : vector<8x1xf32> -> vector<8x1xf32>
    %254 = vector.broadcast %253 : vector<8x1xf32> to vector<8x8xf32>
    %255 = arith.mulf %250, %254 : vector<8x8xf32>
    %256 = vector.extract_strided_slice %223 {offsets = [0, 8], sizes = [8, 8], strides = [1, 1]} : vector<8x32xf32> to vector<8x8xf32>
    %cst_122 = arith.constant dense<0.000000e+00> : vector<8x8xf32>
    %257 = tpu.matmul %255, %256, %cst_122 {dimension_numbers = #tpu.dot_dimension_numbers<[1], [0], [0], [1], [0, 0, 1, 1], [], []>} : vector<8x8xf32>, vector<8x8xf32>, vector<8x8xf32> -> vector<8x8xf32>
    %258 = vector.extract_strided_slice %217 {offsets = [0, 16], sizes = [8, 8], strides = [1, 1]} : vector<8x32xf32> to vector<8x8xf32>
    %259 = vector.extract_strided_slice %220 {offsets = [0, 16], sizes = [8, 8], strides = [1, 1]} : vector<8x32xf32> to vector<8x8xf32>
    %cst_123 = arith.constant dense<0.000000e+00> : vector<8x8xf32>
    %260 = tpu.matmul %258, %259, %cst_123 {dimension_numbers = #tpu.dot_dimension_numbers<[1], [1], [0], [0], [0, 0, 1, 0], [], []>} : vector<8x8xf32>, vector<8x8xf32>, vector<8x8xf32> -> vector<8x8xf32>
    %261 = arith.addf %260, %225 : vector<8x8xf32>
    %cst_124 = arith.constant dense<0xFF800000> : vector<8xf32>
    %262 = vector.multi_reduction <maximumf>, %261, %cst_124 [1] : vector<8x8xf32> to vector<8xf32>
    %263 = vector.shape_cast %262 : vector<8xf32> to vector<8x1xf32>
    %264 = vector.broadcast %263 : vector<8x1xf32> to vector<8x8xf32>
    %265 = arith.subf %261, %264 : vector<8x8xf32>
    %266 = math.exp %265 : vector<8x8xf32>
    %cst_125 = arith.constant dense<0.000000e+00> : vector<8xf32>
    %267 = vector.multi_reduction <add>, %266, %cst_125 [1] : vector<8x8xf32> to vector<8xf32>
    %268 = vector.shape_cast %267 : vector<8xf32> to vector<8x1xf32>
    %269 = tpu.reciprocal %268 {approx = true} : vector<8x1xf32> -> vector<8x1xf32>
    %270 = vector.broadcast %269 : vector<8x1xf32> to vector<8x8xf32>
    %271 = arith.mulf %266, %270 : vector<8x8xf32>
    %272 = vector.extract_strided_slice %223 {offsets = [0, 16], sizes = [8, 8], strides = [1, 1]} : vector<8x32xf32> to vector<8x8xf32>
    %cst_126 = arith.constant dense<0.000000e+00> : vector<8x8xf32>
    %273 = tpu.matmul %271, %272, %cst_126 {dimension_numbers = #tpu.dot_dimension_numbers<[1], [0], [0], [1], [0, 0, 1, 1], [], []>} : vector<8x8xf32>, vector<8x8xf32>, vector<8x8xf32> -> vector<8x8xf32>
    %274 = vector.extract_strided_slice %217 {offsets = [0, 24], sizes = [8, 8], strides = [1, 1]} : vector<8x32xf32> to vector<8x8xf32>
    %275 = vector.extract_strided_slice %220 {offsets = [0, 24], sizes = [8, 8], strides = [1, 1]} : vector<8x32xf32> to vector<8x8xf32>
    %cst_127 = arith.constant dense<0.000000e+00> : vector<8x8xf32>
    %276 = tpu.matmul %274, %275, %cst_127 {dimension_numbers = #tpu.dot_dimension_numbers<[1], [1], [0], [0], [0, 0, 1, 0], [], []>} : vector<8x8xf32>, vector<8x8xf32>, vector<8x8xf32> -> vector<8x8xf32>
    %277 = arith.addf %276, %225 : vector<8x8xf32>
    %cst_128 = arith.constant dense<0xFF800000> : vector<8xf32>
    %278 = vector.multi_reduction <maximumf>, %277, %cst_128 [1] : vector<8x8xf32> to vector<8xf32>
    %279 = vector.shape_cast %278 : vector<8xf32> to vector<8x1xf32>
    %280 = vector.broadcast %279 : vector<8x1xf32> to vector<8x8xf32>
    %281 = arith.subf %277, %280 : vector<8x8xf32>
    %282 = math.exp %281 : vector<8x8xf32>
    %cst_129 = arith.constant dense<0.000000e+00> : vector<8xf32>
    %283 = vector.multi_reduction <add>, %282, %cst_129 [1] : vector<8x8xf32> to vector<8xf32>
    %284 = vector.shape_cast %283 : vector<8xf32> to vector<8x1xf32>
    %285 = tpu.reciprocal %284 {approx = true} : vector<8x1xf32> -> vector<8x1xf32>
    %286 = vector.broadcast %285 : vector<8x1xf32> to vector<8x8xf32>
    %287 = arith.mulf %282, %286 : vector<8x8xf32>
    %288 = vector.extract_strided_slice %223 {offsets = [0, 24], sizes = [8, 8], strides = [1, 1]} : vector<8x32xf32> to vector<8x8xf32>
    %cst_130 = arith.constant dense<0.000000e+00> : vector<8x8xf32>
    %289 = tpu.matmul %287, %288, %cst_130 {dimension_numbers = #tpu.dot_dimension_numbers<[1], [0], [0], [1], [0, 0, 1, 1], [], []>} : vector<8x8xf32>, vector<8x8xf32>, vector<8x8xf32> -> vector<8x8xf32>
    %290 = tpu.concatenate %241, %257, %273, %289 in 1 : vector<8x8xf32>, vector<8x8xf32>, vector<8x8xf32>, vector<8x8xf32> -> vector<8x32xf32>
    %cst_131 = arith.constant dense<0.000000e+00> : vector<8x32xf32>
    %291 = tpu.matmul %290, %10, %cst_131 {dimension_numbers = #tpu.dot_dimension_numbers<[1], [0], [0], [1], [0, 0, 1, 1], [], []>} : vector<8x32xf32>, vector<32x32xf32>, vector<8x32xf32> -> vector<8x32xf32>
    %292 = vector.broadcast %11 : vector<1x32xf32> to vector<8x32xf32>
    %293 = arith.addf %291, %292 : vector<8x32xf32>
    %cst_132 = arith.constant dense<0.000000e+00> : vector<32x256xf32>
    %294 = tpu.matmul %12, %214, %cst_132 {dimension_numbers = #tpu.dot_dimension_numbers<[1], [0], [0], [1], [0, 0, 1, 1], [], []>} : vector<32x32xf32>, vector<32x256xf32>, vector<32x256xf32> -> vector<32x256xf32>
    %295 = vector.broadcast %13 : vector<32x1xf32> to vector<32x256xf32>
    %296 = arith.addf %294, %295 : vector<32x256xf32>
    %cst_133 = arith.constant dense<0.000000e+00> : vector<8x32xf32>
    %297 = tpu.matmul %293, %14, %cst_133 {dimension_numbers = #tpu.dot_dimension_numbers<[1], [0], [0], [1], [0, 0, 1, 1], [], []>} : vector<8x32xf32>, vector<32x32xf32>, vector<8x32xf32> -> vector<8x32xf32>
    %298 = vector.broadcast %15 : vector<1x32xf32> to vector<8x32xf32>
    %299 = arith.addf %297, %298 : vector<8x32xf32>
    %cst_134 = arith.constant dense<0.000000e+00> : vector<32x8xf32>
    %300 = tpu.matmul %16, %293, %cst_134 {dimension_numbers = #tpu.dot_dimension_numbers<[1], [1], [0], [0], [0, 0, 1, 0], [], []>} : vector<32x32xf32>, vector<8x32xf32>, vector<32x8xf32> -> vector<32x8xf32>
    %301 = vector.broadcast %17 : vector<32x1xf32> to vector<32x8xf32>
    %302 = arith.addf %300, %301 : vector<32x8xf32>
    %303 = vector.shape_cast %206 : vector<8x1xf32> to vector<8x1xf32>
    %304 = vector.broadcast %303 : vector<8x1xf32> to vector<8x256xf32>
    %305 = vector.extract_strided_slice %299 {offsets = [0, 0], sizes = [8, 8], strides = [1, 1]} : vector<8x32xf32> to vector<8x8xf32>
    %306 = vector.extract_strided_slice %296 {offsets = [0, 0], sizes = [8, 256], strides = [1, 1]} : vector<32x256xf32> to vector<8x256xf32>
    %cst_135 = arith.constant dense<0.000000e+00> : vector<8x256xf32>
    %307 = tpu.matmul %305, %306, %cst_135 {dimension_numbers = #tpu.dot_dimension_numbers<[1], [0], [0], [1], [0, 0, 1, 1], [], []>} : vector<8x8xf32>, vector<8x256xf32>, vector<8x256xf32> -> vector<8x256xf32>
    %308 = arith.addf %307, %304 : vector<8x256xf32>
    %cst_136 = arith.constant dense<0xFF800000> : vector<256xf32>
    %309 = vector.multi_reduction <maximumf>, %308, %cst_136 [0] : vector<8x256xf32> to vector<256xf32>
    %310 = vector.shape_cast %309 : vector<256xf32> to vector<1x256xf32>
    %311 = vector.broadcast %310 : vector<1x256xf32> to vector<8x256xf32>
    %312 = arith.subf %308, %311 : vector<8x256xf32>
    %313 = math.exp %312 : vector<8x256xf32>
    %cst_137 = arith.constant dense<0.000000e+00> : vector<256xf32>
    %314 = vector.multi_reduction <add>, %313, %cst_137 [0] : vector<8x256xf32> to vector<256xf32>
    %315 = vector.shape_cast %314 : vector<256xf32> to vector<1x256xf32>
    %316 = tpu.reciprocal %315 {approx = true} : vector<1x256xf32> -> vector<1x256xf32>
    %317 = vector.broadcast %316 : vector<1x256xf32> to vector<8x256xf32>
    %318 = arith.mulf %313, %317 : vector<8x256xf32>
    %319 = vector.extract_strided_slice %302 {offsets = [0, 0], sizes = [8, 8], strides = [1, 1]} : vector<32x8xf32> to vector<8x8xf32>
    %cst_138 = arith.constant dense<0.000000e+00> : vector<8x256xf32>
    %320 = tpu.matmul %319, %318, %cst_138 {dimension_numbers = #tpu.dot_dimension_numbers<[1], [0], [0], [1], [0, 0, 1, 1], [], []>} : vector<8x8xf32>, vector<8x256xf32>, vector<8x256xf32> -> vector<8x256xf32>
    %321 = vector.extract_strided_slice %299 {offsets = [0, 8], sizes = [8, 8], strides = [1, 1]} : vector<8x32xf32> to vector<8x8xf32>
    %322 = vector.extract_strided_slice %296 {offsets = [8, 0], sizes = [8, 256], strides = [1, 1]} : vector<32x256xf32> to vector<8x256xf32>
    %cst_139 = arith.constant dense<0.000000e+00> : vector<8x256xf32>
    %323 = tpu.matmul %321, %322, %cst_139 {dimension_numbers = #tpu.dot_dimension_numbers<[1], [0], [0], [1], [0, 0, 1, 1], [], []>} : vector<8x8xf32>, vector<8x256xf32>, vector<8x256xf32> -> vector<8x256xf32>
    %324 = arith.addf %323, %304 : vector<8x256xf32>
    %cst_140 = arith.constant dense<0xFF800000> : vector<256xf32>
    %325 = vector.multi_reduction <maximumf>, %324, %cst_140 [0] : vector<8x256xf32> to vector<256xf32>
    %326 = vector.shape_cast %325 : vector<256xf32> to vector<1x256xf32>
    %327 = vector.broadcast %326 : vector<1x256xf32> to vector<8x256xf32>
    %328 = arith.subf %324, %327 : vector<8x256xf32>
    %329 = math.exp %328 : vector<8x256xf32>
    %cst_141 = arith.constant dense<0.000000e+00> : vector<256xf32>
    %330 = vector.multi_reduction <add>, %329, %cst_141 [0] : vector<8x256xf32> to vector<256xf32>
    %331 = vector.shape_cast %330 : vector<256xf32> to vector<1x256xf32>
    %332 = tpu.reciprocal %331 {approx = true} : vector<1x256xf32> -> vector<1x256xf32>
    %333 = vector.broadcast %332 : vector<1x256xf32> to vector<8x256xf32>
    %334 = arith.mulf %329, %333 : vector<8x256xf32>
    %335 = vector.extract_strided_slice %302 {offsets = [8, 0], sizes = [8, 8], strides = [1, 1]} : vector<32x8xf32> to vector<8x8xf32>
    %cst_142 = arith.constant dense<0.000000e+00> : vector<8x256xf32>
    %336 = tpu.matmul %335, %334, %cst_142 {dimension_numbers = #tpu.dot_dimension_numbers<[1], [0], [0], [1], [0, 0, 1, 1], [], []>} : vector<8x8xf32>, vector<8x256xf32>, vector<8x256xf32> -> vector<8x256xf32>
    %337 = vector.extract_strided_slice %299 {offsets = [0, 16], sizes = [8, 8], strides = [1, 1]} : vector<8x32xf32> to vector<8x8xf32>
    %338 = vector.extract_strided_slice %296 {offsets = [16, 0], sizes = [8, 256], strides = [1, 1]} : vector<32x256xf32> to vector<8x256xf32>
    %cst_143 = arith.constant dense<0.000000e+00> : vector<8x256xf32>
    %339 = tpu.matmul %337, %338, %cst_143 {dimension_numbers = #tpu.dot_dimension_numbers<[1], [0], [0], [1], [0, 0, 1, 1], [], []>} : vector<8x8xf32>, vector<8x256xf32>, vector<8x256xf32> -> vector<8x256xf32>
    %340 = arith.addf %339, %304 : vector<8x256xf32>
    %cst_144 = arith.constant dense<0xFF800000> : vector<256xf32>
    %341 = vector.multi_reduction <maximumf>, %340, %cst_144 [0] : vector<8x256xf32> to vector<256xf32>
    %342 = vector.shape_cast %341 : vector<256xf32> to vector<1x256xf32>
    %343 = vector.broadcast %342 : vector<1x256xf32> to vector<8x256xf32>
    %344 = arith.subf %340, %343 : vector<8x256xf32>
    %345 = math.exp %344 : vector<8x256xf32>
    %cst_145 = arith.constant dense<0.000000e+00> : vector<256xf32>
    %346 = vector.multi_reduction <add>, %345, %cst_145 [0] : vector<8x256xf32> to vector<256xf32>
    %347 = vector.shape_cast %346 : vector<256xf32> to vector<1x256xf32>
    %348 = tpu.reciprocal %347 {approx = true} : vector<1x256xf32> -> vector<1x256xf32>
    %349 = vector.broadcast %348 : vector<1x256xf32> to vector<8x256xf32>
    %350 = arith.mulf %345, %349 : vector<8x256xf32>
    %351 = vector.extract_strided_slice %302 {offsets = [16, 0], sizes = [8, 8], strides = [1, 1]} : vector<32x8xf32> to vector<8x8xf32>
    %cst_146 = arith.constant dense<0.000000e+00> : vector<8x256xf32>
    %352 = tpu.matmul %351, %350, %cst_146 {dimension_numbers = #tpu.dot_dimension_numbers<[1], [0], [0], [1], [0, 0, 1, 1], [], []>} : vector<8x8xf32>, vector<8x256xf32>, vector<8x256xf32> -> vector<8x256xf32>
    %353 = vector.extract_strided_slice %299 {offsets = [0, 24], sizes = [8, 8], strides = [1, 1]} : vector<8x32xf32> to vector<8x8xf32>
    %354 = vector.extract_strided_slice %296 {offsets = [24, 0], sizes = [8, 256], strides = [1, 1]} : vector<32x256xf32> to vector<8x256xf32>
    %cst_147 = arith.constant dense<0.000000e+00> : vector<8x256xf32>
    %355 = tpu.matmul %353, %354, %cst_147 {dimension_numbers = #tpu.dot_dimension_numbers<[1], [0], [0], [1], [0, 0, 1, 1], [], []>} : vector<8x8xf32>, vector<8x256xf32>, vector<8x256xf32> -> vector<8x256xf32>
    %356 = arith.addf %355, %304 : vector<8x256xf32>
    %cst_148 = arith.constant dense<0xFF800000> : vector<256xf32>
    %357 = vector.multi_reduction <maximumf>, %356, %cst_148 [0] : vector<8x256xf32> to vector<256xf32>
    %358 = vector.shape_cast %357 : vector<256xf32> to vector<1x256xf32>
    %359 = vector.broadcast %358 : vector<1x256xf32> to vector<8x256xf32>
    %360 = arith.subf %356, %359 : vector<8x256xf32>
    %361 = math.exp %360 : vector<8x256xf32>
    %cst_149 = arith.constant dense<0.000000e+00> : vector<256xf32>
    %362 = vector.multi_reduction <add>, %361, %cst_149 [0] : vector<8x256xf32> to vector<256xf32>
    %363 = vector.shape_cast %362 : vector<256xf32> to vector<1x256xf32>
    %364 = tpu.reciprocal %363 {approx = true} : vector<1x256xf32> -> vector<1x256xf32>
    %365 = vector.broadcast %364 : vector<1x256xf32> to vector<8x256xf32>
    %366 = arith.mulf %361, %365 : vector<8x256xf32>
    %367 = vector.extract_strided_slice %302 {offsets = [24, 0], sizes = [8, 8], strides = [1, 1]} : vector<32x8xf32> to vector<8x8xf32>
    %cst_150 = arith.constant dense<0.000000e+00> : vector<8x256xf32>
    %368 = tpu.matmul %367, %366, %cst_150 {dimension_numbers = #tpu.dot_dimension_numbers<[1], [0], [0], [1], [0, 0, 1, 1], [], []>} : vector<8x8xf32>, vector<8x256xf32>, vector<8x256xf32> -> vector<8x256xf32>
    %369 = tpu.concatenate %320, %336, %352, %368 in 0 : vector<8x256xf32>, vector<8x256xf32>, vector<8x256xf32>, vector<8x256xf32> -> vector<32x256xf32>
    %cst_151 = arith.constant dense<0.000000e+00> : vector<32x256xf32>
    %370 = tpu.matmul %18, %369, %cst_151 {dimension_numbers = #tpu.dot_dimension_numbers<[1], [0], [0], [1], [0, 0, 1, 1], [], []>} : vector<32x32xf32>, vector<32x256xf32>, vector<32x256xf32> -> vector<32x256xf32>
    %371 = vector.broadcast %19 : vector<32x1xf32> to vector<32x256xf32>
    %372 = arith.addf %370, %371 : vector<32x256xf32>
    %373 = arith.addf %214, %372 : vector<32x256xf32>
    %cst_152 = arith.constant dense<0.000000e+00> : vector<32xf32>
    %374 = vector.multi_reduction <add>, %373, %cst_152 [1] : vector<32x256xf32> to vector<32xf32>
    %375 = vector.shape_cast %374 : vector<32xf32> to vector<32x1xf32>
    %376 = tpu.concatenate %198, %375 in 1 : vector<32x1xf32>, vector<32x1xf32> -> vector<32x2xf32>
    %cst_153 = arith.constant 0.000000e+00 : f32
    %377 = vector.broadcast %cst_153 : f32 to vector<32x2xf32>
    %378 = arith.maximumf %376, %377 : vector<32x2xf32>
    %cst_154 = arith.constant dense<0.000000e+00> : vector<2x2xf32>
    %379 = tpu.matmul %20, %378, %cst_154 {dimension_numbers = #tpu.dot_dimension_numbers<[1], [0], [0], [1], [0, 0, 1, 1], [], []>} : vector<2x32xf32>, vector<32x2xf32>, vector<2x2xf32> -> vector<2x2xf32>
    %380 = vector.broadcast %21 : vector<2x1xf32> to vector<2x2xf32>
    %381 = arith.addf %379, %380 : vector<2x2xf32>
    %c0_155 = arith.constant 0 : index
    %c0_156 = arith.constant 0 : index
    %382 = vector.load %arg26[%c0_155, %c0_156] : memref<2x2xf32, #tpu.memory_space<vmem>>, vector<2x2xf32>
    tpu.vector_store %arg26[%c0_155, %c0_156], %381 {strides = array<i32>} : memref<2x2xf32, #tpu.memory_space<vmem>>, vector<2x2xf32>,
    return
  }
}

</mosaic_0001>

<llo_original>
// kernel: discriminator_forward.1
$region0: #{discriminator_forward.1}
  #allocation0 [shape = 'u32[]', space=smem, size = 0x4, offset = 0x4, fixed_abs, tag = 'smem constant byte address 0x4 - core index']
  #allocation1 [shape = 'u32[144,128]{1,0:T(1,128)}', space=vmem, size = 0x12000, scoped, tag = 'internal scratch']
  %s0 = inlined_call_operand.vmem [shape: f32[2,4,256], index: 0, kind: input, shape index: {}]
  %s1 = inlined_call_operand.vmem [shape: f32[2,8,32], index: 1, kind: input, shape index: {}]
  %s2 = inlined_call_operand.vmem [shape: f32[2,1,8], index: 2, kind: input, shape index: {}]
  %s3 = inlined_call_operand.vmem [shape: f32[2,8,1], index: 3, kind: input, shape index: {}]
  %s4 = inlined_call_operand.vmem [shape: f32[32,4], index: 4, kind: input, shape index: {}]
  %s5 = inlined_call_operand.vmem [shape: f32[32,1], index: 5, kind: input, shape index: {}]
  %s6 = inlined_call_operand.vmem [shape: f32[32,32], index: 6, kind: input, shape index: {}]
  %s7 = inlined_call_operand.vmem [shape: f32[32,1], index: 7, kind: input, shape index: {}]
  %s8 = inlined_call_operand.vmem [shape: f32[32,32], index: 8, kind: input, shape index: {}]
  %s9 = inlined_call_operand.vmem [shape: f32[1,32], index: 9, kind: input, shape index: {}]
  %s10 = inlined_call_operand.vmem [shape: f32[32,32], index: 10, kind: input, shape index: {}]
  %s11 = inlined_call_operand.vmem [shape: f32[1,32], index: 11, kind: input, shape index: {}]
  %s12 = inlined_call_operand.vmem [shape: f32[32,32], index: 12, kind: input, shape index: {}]
  %s13 = inlined_call_operand.vmem [shape: f32[1,32], index: 13, kind: input, shape index: {}]
  %s14 = inlined_call_operand.vmem [shape: f32[32,32], index: 14, kind: input, shape index: {}]
  %s15 = inlined_call_operand.vmem [shape: f32[1,32], index: 15, kind: input, shape index: {}]
  %s16 = inlined_call_operand.vmem [shape: f32[32,32], index: 16, kind: input, shape index: {}]
  %s17 = inlined_call_operand.vmem [shape: f32[32,1], index: 17, kind: input, shape index: {}]
  %s18 = inlined_call_operand.vmem [shape: f32[32,32], index: 18, kind: input, shape index: {}]
  %s19 = inlined_call_operand.vmem [shape: f32[1,32], index: 19, kind: input, shape index: {}]
  %s20 = inlined_call_operand.vmem [shape: f32[32,32], index: 20, kind: input, shape index: {}]
  %s21 = inlined_call_operand.vmem [shape: f32[32,1], index: 21, kind: input, shape index: {}]
  %s22 = inlined_call_operand.vmem [shape: f32[32,32], index: 22, kind: input, shape index: {}]
  %s23 = inlined_call_operand.vmem [shape: f32[32,1], index: 23, kind: input, shape index: {}]
  %s24 = inlined_call_operand.vmem [shape: f32[2,32], index: 24, kind: input, shape index: {}]
  %s25 = inlined_call_operand.vmem [shape: f32[2,1], index: 25, kind: input, shape index: {}]
  %s26 = inlined_call_operand.vmem [shape: f32[2,2], index: 26, kind: output, shape index: {}]
  %s27 = sld [smem:[#allocation0]]
  $region114: #{discriminator_forward.1} parent=0
    _
  %s29 = ssub.s32 1, %s27
  %s30 = scalar_select 0, %s29, %s27
  // Predicated region
  $region2: #{discriminator_forward.1} parent=0 // pred_check
    _
  $region3: #{discriminator_forward.1} parent=0 // pred_check_branch
    %32 = sbr.rel (0) target = $region5
  $region4: #{discriminator_forward.1} parent=0 // pred_region
    _
  $region5: #{discriminator_forward.1} parent=0 // pred_fallthru
    _
  // Predicated region
  $region6: #{discriminator_forward.1} parent=0 // pred_check
    _
  $region7: #{discriminator_forward.1} parent=0 // pred_check_branch
    %34 = sbr.rel (0) target = $region9
  $region8: #{discriminator_forward.1} parent=0 // pred_region
    _
  $region9: #{discriminator_forward.1} parent=0 // pred_fallthru
    _
  // Predicated region
  $region10: #{discriminator_forward.1} parent=0 // pred_check
    _
  $region11: #{discriminator_forward.1} parent=0 // pred_check_branch
    %36 = sbr.rel (0) target = $region13
  $region12: #{discriminator_forward.1} parent=0 // pred_region
    _
  $region13: #{discriminator_forward.1} parent=0 // pred_fallthru
    _
  // Predicated region
  $region14: #{discriminator_forward.1} parent=0 // pred_check
    _
  $region15: #{discriminator_forward.1} parent=0 // pred_check_branch
    %38 = sbr.rel (0) target = $region17
  $region16: #{discriminator_forward.1} parent=0 // pred_region
    _
  $region17: #{discriminator_forward.1} parent=0 // pred_fallthru
    _
  // Predicated region
  $region18: #{discriminator_forward.1} parent=0 // pred_check
    _
  $region19: #{discriminator_forward.1} parent=0 // pred_check_branch
    %40 = sbr.rel (0) target = $region21
  $region20: #{discriminator_forward.1} parent=0 // pred_region
    _
  $region21: #{discriminator_forward.1} parent=0 // pred_fallthru
    _
  // Predicated region
  $region22: #{discriminator_forward.1} parent=0 // pred_check
    _
  $region23: #{discriminator_forward.1} parent=0 // pred_check_branch
    %42 = sbr.rel (0) target = $region25
  $region24: #{discriminator_forward.1} parent=0 // pred_region
    _
  $region25: #{discriminator_forward.1} parent=0 // pred_fallthru
    _
  // Predicated region
  $region26: #{discriminator_forward.1} parent=0 // pred_check
    _
  $region27: #{discriminator_forward.1} parent=0 // pred_check_branch
    %44 = sbr.rel (0) target = $region29
  $region28: #{discriminator_forward.1} parent=0 // pred_region
    _
  $region29: #{discriminator_forward.1} parent=0 // pred_fallthru
    _
  // Predicated region
  $region30: #{discriminator_forward.1} parent=0 // pred_check
    _
  $region31: #{discriminator_forward.1} parent=0 // pred_check_branch
    %46 = sbr.rel (0) target = $region33
  $region32: #{discriminator_forward.1} parent=0 // pred_region
    _
  $region33: #{discriminator_forward.1} parent=0 // pred_fallthru
    _
  // Predicated region
  $region34: #{discriminator_forward.1} parent=0 // pred_check
    _
  $region35: #{discriminator_forward.1} parent=0 // pred_check_branch
    %48 = sbr.rel (0) target = $region37
  $region36: #{discriminator_forward.1} parent=0 // pred_region
    _
  $region37: #{discriminator_forward.1} parent=0 // pred_fallthru
    _
  // Predicated region
  $region38: #{discriminator_forward.1} parent=0 // pred_check
    _
  $region39: #{discriminator_forward.1} parent=0 // pred_check_branch
    %50 = sbr.rel (0) target = $region41
  $region40: #{discriminator_forward.1} parent=0 // pred_region
    _
  $region41: #{discriminator_forward.1} parent=0 // pred_fallthru
    _
  // Predicated region
  $region42: #{discriminator_forward.1} parent=0 // pred_check
    _
  $region43: #{discriminator_forward.1} parent=0 // pred_check_branch
    %52 = sbr.rel (0) target = $region45
  $region44: #{discriminator_forward.1} parent=0 // pred_region
    _
  $region45: #{discriminator_forward.1} parent=0 // pred_fallthru
    _
  // Predicated region
  $region46: #{discriminator_forward.1} parent=0 // pred_check
    _
  $region47: #{discriminator_forward.1} parent=0 // pred_check_branch
    %54 = sbr.rel (0) target = $region49
  $region48: #{discriminator_forward.1} parent=0 // pred_region
    _
  $region49: #{discriminator_forward.1} parent=0 // pred_fallthru
    _
  // Predicated region
  $region50: #{discriminator_forward.1} parent=0 // pred_check
    _
  $region51: #{discriminator_forward.1} parent=0 // pred_check_branch
    %56 = sbr.rel (0) target = $region53
  $region52: #{discriminator_forward.1} parent=0 // pred_region
    _
  $region53: #{discriminator_forward.1} parent=0 // pred_fallthru
    _
  // Predicated region
  $region54: #{discriminator_forward.1} parent=0 // pred_check
    _
  $region55: #{discriminator_forward.1} parent=0 // pred_check_branch
    %58 = sbr.rel (0) target = $region57
  $region56: #{discriminator_forward.1} parent=0 // pred_region
    _
  $region57: #{discriminator_forward.1} parent=0 // pred_fallthru
    _
  // Predicated region
  $region58: #{discriminator_forward.1} parent=0 // pred_check
    _
  $region59: #{discriminator_forward.1} parent=0 // pred_check_branch
    %60 = sbr.rel (0) target = $region61
  $region60: #{discriminator_forward.1} parent=0 // pred_region
    _
  $region61: #{discriminator_forward.1} parent=0 // pred_fallthru
    _
  // Predicated region
  $region62: #{discriminator_forward.1} parent=0 // pred_check
    _
  $region63: #{discriminator_forward.1} parent=0 // pred_check_branch
    %62 = sbr.rel (0) target = $region65
  $region64: #{discriminator_forward.1} parent=0 // pred_region
    _
  $region65: #{discriminator_forward.1} parent=0 // pred_fallthru
    _
  // Predicated region
  $region66: #{discriminator_forward.1} parent=0 // pred_check
    _
  $region67: #{discriminator_forward.1} parent=0 // pred_check_branch
    %64 = sbr.rel (0) target = $region69
  $region68: #{discriminator_forward.1} parent=0 // pred_region
    _
  $region69: #{discriminator_forward.1} parent=0 // pred_fallthru
    _
  // Predicated region
  $region70: #{discriminator_forward.1} parent=0 // pred_check
    _
  $region71: #{discriminator_forward.1} parent=0 // pred_check_branch
    %66 = sbr.rel (0) target = $region73
  $region72: #{discriminator_forward.1} parent=0 // pred_region
    _
  $region73: #{discriminator_forward.1} parent=0 // pred_fallthru
    _
  // Predicated region
  $region74: #{discriminator_forward.1} parent=0 // pred_check
    _
  $region75: #{discriminator_forward.1} parent=0 // pred_check_branch
    %68 = sbr.rel (0) target = $region77
  $region76: #{discriminator_forward.1} parent=0 // pred_region
    _
  $region77: #{discriminator_forward.1} parent=0 // pred_fallthru
    _
  // Predicated region
  $region78: #{discriminator_forward.1} parent=0 // pred_check
    _
  $region79: #{discriminator_forward.1} parent=0 // pred_check_branch
    %70 = sbr.rel (0) target = $region81
  $region80: #{discriminator_forward.1} parent=0 // pred_region
    _
  $region81: #{discriminator_forward.1} parent=0 // pred_fallthru
    _
  // Predicated region
  $region82: #{discriminator_forward.1} parent=0 // pred_check
    _
  $region83: #{discriminator_forward.1} parent=0 // pred_check_branch
    %72 = sbr.rel (0) target = $region85
  $region84: #{discriminator_forward.1} parent=0 // pred_region
    _
  $region85: #{discriminator_forward.1} parent=0 // pred_fallthru
    _
  // Predicated region
  $region86: #{discriminator_forward.1} parent=0 // pred_check
    _
  $region87: #{discriminator_forward.1} parent=0 // pred_check_branch
    %74 = sbr.rel (0) target = $region89
  $region88: #{discriminator_forward.1} parent=0 // pred_region
    _
  $region89: #{discriminator_forward.1} parent=0 // pred_fallthru
    _
  // Predicated region
  $region90: #{discriminator_forward.1} parent=0 // pred_check
    _
  $region91: #{discriminator_forward.1} parent=0 // pred_check_branch
    %76 = sbr.rel (0) target = $region93
  $region92: #{discriminator_forward.1} parent=0 // pred_region
    _
  $region93: #{discriminator_forward.1} parent=0 // pred_fallthru
    _
  // Predicated region
  $region94: #{discriminator_forward.1} parent=0 // pred_check
    _
  $region95: #{discriminator_forward.1} parent=0 // pred_check_branch
    %78 = sbr.rel (0) target = $region97
  $region96: #{discriminator_forward.1} parent=0 // pred_region
    _
  $region97: #{discriminator_forward.1} parent=0 // pred_fallthru
    _
  // Predicated region
  $region98: #{discriminator_forward.1} parent=0 // pred_check
    _
  $region99: #{discriminator_forward.1} parent=0 // pred_check_branch
    %80 = sbr.rel (0) target = $region101
  $region100: #{discriminator_forward.1} parent=0 // pred_region
    _
  $region101: #{discriminator_forward.1} parent=0 // pred_fallthru
    _
  // Predicated region
  $region102: #{discriminator_forward.1} parent=0 // pred_check
    _
  $region103: #{discriminator_forward.1} parent=0 // pred_check_branch
    %82 = sbr.rel (0) target = $region105
  $region104: #{discriminator_forward.1} parent=0 // pred_region
    _
  $region105: #{discriminator_forward.1} parent=0 // pred_fallthru
    _
  %v83 = vld [vmem:[%s4] sm:$0xff]
  %v84 = vld [vmem:[%s4 + $0x8] sm:$0xff]
  %v85 = vld [vmem:[%s4 + $0x10] sm:$0xff]
  %v86 = vld [vmem:[%s4 + $0x18] sm:$0xff]
  %v87 = vld [vmem:[%s5] sm:$0xff]
  %v88 = vld [vmem:[%s5 + $0x8] sm:$0xff]
  %v89 = vld [vmem:[%s5 + $0x10] sm:$0xff]
  %v90 = vld [vmem:[%s5 + $0x18] sm:$0xff]
  %v91 = vld [vmem:[%s6] sm:$0xff]
  %v92 = vld [vmem:[%s6 + $0x8] sm:$0xff]
  %v93 = vld [vmem:[%s6 + $0x10] sm:$0xff]
  %v94 = vld [vmem:[%s6 + $0x18] sm:$0xff]
  %v95 = vld [vmem:[%s7] sm:$0xff]
  %v96 = vld [vmem:[%s7 + $0x8] sm:$0xff]
  %v97 = vld [vmem:[%s7 + $0x10] sm:$0xff]
  %v98 = vld [vmem:[%s7 + $0x18] sm:$0xff]
  %v99 = vld [vmem:[%s8] sm:$0xff]
  %v100 = vld [vmem:[%s8 + $0x8] sm:$0xff]
  %v101 = vld [vmem:[%s8 + $0x10] sm:$0xff]
  %v102 = vld [vmem:[%s8 + $0x18] sm:$0xff]
  %v103 = vld [vmem:[%s9] sm:$0x1]
  %v104 = vld [vmem:[%s10] sm:$0xff]
  %v105 = vld [vmem:[%s10 + $0x8] sm:$0xff]
  %v106 = vld [vmem:[%s10 + $0x10] sm:$0xff]
  %v107 = vld [vmem:[%s10 + $0x18] sm:$0xff]
  %v108 = vld [vmem:[%s11] sm:$0x1]
  %v109 = vld [vmem:[%s12] sm:$0xff]
  %v110 = vld [vmem:[%s12 + $0x8] sm:$0xff]
  %v111 = vld [vmem:[%s12 + $0x10] sm:$0xff]
  %v112 = vld [vmem:[%s12 + $0x18] sm:$0xff]
  %v113 = vld [vmem:[%s13] sm:$0x1]
  %v114 = vld [vmem:[%s14] sm:$0xff]
  %v115 = vld [vmem:[%s14 + $0x8] sm:$0xff]
  %v116 = vld [vmem:[%s14 + $0x10] sm:$0xff]
  %v117 = vld [vmem:[%s14 + $0x18] sm:$0xff]
  %v118 = vld [vmem:[%s15] sm:$0x1]
  %v119 = vld [vmem:[%s16] sm:$0xff]
  %v120 = vld [vmem:[%s16 + $0x8] sm:$0xff]
  %v121 = vld [vmem:[%s16 + $0x10] sm:$0xff]
  %v122 = vld [vmem:[%s16 + $0x18] sm:$0xff]
  %v123 = vld [vmem:[%s17] sm:$0xff]
  %v124 = vld [vmem:[%s17 + $0x8] sm:$0xff]
  %v125 = vld [vmem:[%s17 + $0x10] sm:$0xff]
  %v126 = vld [vmem:[%s17 + $0x18] sm:$0xff]
  %v127 = vld [vmem:[%s18] sm:$0xff]
  %v128 = vld [vmem:[%s18 + $0x8] sm:$0xff]
  %v129 = vld [vmem:[%s18 + $0x10] sm:$0xff]
  %v130 = vld [vmem:[%s18 + $0x18] sm:$0xff]
  %v131 = vld [vmem:[%s19] sm:$0x1]
  %v132 = vld [vmem:[%s20] sm:$0xff]
  %v133 = vld [vmem:[%s20 + $0x8] sm:$0xff]
  %v134 = vld [vmem:[%s20 + $0x10] sm:$0xff]
  %v135 = vld [vmem:[%s20 + $0x18] sm:$0xff]
  %v136 = vld [vmem:[%s21] sm:$0xff]
  %v137 = vld [vmem:[%s21 + $0x8] sm:$0xff]
  %v138 = vld [vmem:[%s21 + $0x10] sm:$0xff]
  %v139 = vld [vmem:[%s21 + $0x18] sm:$0xff]
  %v140 = vld [vmem:[%s22] sm:$0xff]
  %v141 = vld [vmem:[%s22 + $0x8] sm:$0xff]
  %v142 = vld [vmem:[%s22 + $0x10] sm:$0xff]
  %v143 = vld [vmem:[%s22 + $0x18] sm:$0xff]
  %v144 = vld [vmem:[%s23] sm:$0xff]
  %v145 = vld [vmem:[%s23 + $0x8] sm:$0xff]
  %v146 = vld [vmem:[%s23 + $0x10] sm:$0xff]
  %v147 = vld [vmem:[%s23 + $0x18] sm:$0xff]
  %v148 = vld [vmem:[%s24] sm:$0x3]
  %v149 = vld [vmem:[%s25] sm:$0x3]
  %v150 = vld [vmem:[%s0] sm:$0xff]
  %v151 = vld [vmem:[%s1] sm:$0xff]
  %v152 = vld [vmem:[%s2] sm:$0x1]
  %v153 = vld [vmem:[%s3] sm:$0xff]
  %155 = vset.pattern.permute.xlu0 0
  %156 = vperm.xlu0 %155, %v87
  %v157 = vpop.permute.xlu0 %156
  %160 = vset.pattern.permute.xlu0 0
  %161 = vperm.xlu0 %160, %v88
  %v162 = vpop.permute.xlu0 %161
  %165 = vset.pattern.permute.xlu0 0
  %166 = vperm.xlu0 %165, %v89
  %v167 = vpop.permute.xlu0 %166
  %170 = vset.pattern.permute.xlu0 0
  %171 = vperm.xlu0 %170, %v90
  %v172 = vpop.permute.xlu0 %171
  %v175 = vcombine.high %v150, %v150
  %vm176 = vcmask 31744
  %v178 = vsel %vm176, %v83, 0
  %v181 = vsel %vm176, %v84, 0
  %v184 = vsel %vm176, %v85, 0
  %v187 = vsel %vm176, %v86, 0
  %vm189 = vcmask 1043456
  %v190 = vsel %vm189, %v150, 0
  %v192 = vsel %vm189, %v175, 0
  %194 = vmatprep.subr.mxu0 %v192
  %195 = vmatpush1.msra.mxu0 %v190
  %196 = vmatprep.subr.mxu0 0.0
  %197 = vmatpush1.msra.mxu0 0.0
  %198 = vmatprep.subr.mxu0 0.0
  %199 = vmatpush1.msra.mxu0 0.0
  %200 = vmatprep.subr.mxu0 0.0
  %201 = vmatpush1.msra.mxu0 0.0
  %202 = vmatprep.subr.mxu0 0.0
  %203 = vmatpush1.msra.mxu0 0.0
  %204 = vmatprep.subr.mxu0 0.0
  %205 = vmatpush1.msra.mxu0 0.0
  %206 = vmatprep.subr.mxu0 0.0
  %207 = vmatpush1.msra.mxu0 0.0
  %208 = vmatprep.subr.mxu0 0.0
  %209 = vmatpush1.msra.mxu0 0.0
  %210 = vmatprep.subr.mxu0 0.0
  %211 = vmatpush1.msra.mxu0 0.0
  %212 = vmatprep.subr.mxu0 0.0
  %213 = vmatpush1.msra.mxu0 0.0
  %214 = vmatprep.subr.mxu0 0.0
  %215 = vmatpush1.msra.mxu0 0.0
  %216 = vmatprep.subr.mxu0 0.0
  %217 = vmatpush1.msra.mxu0 0.0
  %218 = vmatprep.subr.mxu0 0.0
  %219 = vmatpush1.msra.mxu0 0.0
  %220 = vmatprep.subr.mxu0 0.0
  %221 = vmatpush1.msra.mxu0 0.0
  %222 = vmatprep.subr.mxu0 0.0
  %223 = vmatpush1.msra.mxu0 0.0
  %224 = vmatprep.subr.mxu0 0.0
  %225 = vmatpush1.msra.mxu0 0.0
  %226 = vmatprep.subr.mxu0 0.0
  %227 = vmatpush1.msra.mxu0 0.0
  %228 = vmatprep.subr.mxu0 0.0
  %229 = vmatpush1.msra.mxu0 0.0
  %230 = vmatprep.subr.mxu0 0.0
  %231 = vmatpush1.msra.mxu0 0.0
  %232 = vmatprep.subr.mxu0 0.0
  %233 = vmatpush1.msra.mxu0 0.0
  %234 = vmatprep.subr.mxu0 0.0
  %235 = vmatpush1.msra.mxu0 0.0
  %236 = vmatprep.subr.mxu0 0.0
  %237 = vmatpush1.msra.mxu0 0.0
  %238 = vmatprep.subr.mxu0 0.0
  %239 = vmatpush1.msra.mxu0 0.0
  %240 = vmatprep.subr.mxu0 0.0
  %241 = vmatpush1.msra.mxu0 0.0
  %242 = vmatprep.subr.mxu0 0.0
  %243 = vmatpush1.msra.mxu0 0.0
  %244 = vmatprep.subr.mxu0 0.0
  %245 = vmatpush1.msra.mxu0 0.0
  %246 = vmatprep.subr.mxu0 0.0
  %247 = vmatpush1.msra.mxu0 0.0
  %248 = vmatprep.subr.mxu0 0.0
  %249 = vmatpush1.msra.mxu0 0.0
  %250 = vmatprep.subr.mxu0 0.0
  %251 = vmatpush1.msra.mxu0 0.0
  %252 = vmatprep.subr.mxu0 0.0
  %253 = vmatpush1.msra.mxu0 0.0
  %254 = vmatprep.subr.mxu0 0.0
  %255 = vmatpush1.msra.mxu0 0.0
  %256 = vmatprep.subr.mxu0 0.0
  %257 = vmatpush1.msra.mxu0 0.0
  %258 = vmatprep.mubr.f32.mxu0 0.0
  %259 = vmatmul.mubr.f32.gmra.mrb[0].mxu0 %v178
  %v260 = vpop.f32.mrb[0].mxu0
  %v261 = vadd.f32 %v157, %v260
  %v262 = vpop.f32.mrb[0].mxu0
  %v263 = vadd.f32 %v157, %v262
  %264 = vmatprep.mubr.f32.mxu0 0.0
  %265 = vmatmul.mubr.f32.gmra.mrb[0].mxu0 %v181
  %v266 = vpop.f32.mrb[0].mxu0
  %v267 = vadd.f32 %v162, %v266
  %v268 = vpop.f32.mrb[0].mxu0
  %v269 = vadd.f32 %v162, %v268
  %270 = vmatprep.mubr.f32.mxu0 0.0
  %271 = vmatmul.mubr.f32.gmra.mrb[0].mxu0 %v184
  %v272 = vpop.f32.mrb[0].mxu0
  %v273 = vadd.f32 %v167, %v272
  %v274 = vpop.f32.mrb[0].mxu0
  %v275 = vadd.f32 %v167, %v274
  %276 = vmatprep.mubr.f32.mxu0 0.0
  %277 = vmatmul.mubr.f32.gmra.mrb[0].mxu0 %v187
  %v278 = vpop.f32.mrb[0].mxu0
  %v279 = vadd.f32 %v172, %v278
  %v280 = vpop.f32.mrb[0].mxu0
  %v281 = vadd.f32 %v172, %v280
  %282 = vdwg.mxu0
  %v283 = vmax.f32 %v261, 0.0
  %v284 = vmax.f32 %v263, 0.0
  %v285 = vmax.f32 %v267, 0.0
  %v286 = vmax.f32 %v269, 0.0
  %v287 = vmax.f32 %v273, 0.0
  %v288 = vmax.f32 %v275, 0.0
  %v289 = vmax.f32 %v279, 0.0
  %v290 = vmax.f32 %v281, 0.0
  %292 = vset.pattern.permute.xlu0 0
  %293 = vperm.xlu0 %292, %v95
  %v294 = vpop.permute.xlu0 %293
  %297 = vset.pattern.permute.xlu0 0
  %298 = vperm.xlu0 %297, %v96
  %v299 = vpop.permute.xlu0 %298
  %302 = vset.pattern.permute.xlu0 0
  %303 = vperm.xlu0 %302, %v97
  %v304 = vpop.permute.xlu0 %303
  %307 = vset.pattern.permute.xlu0 0
  %308 = vperm.xlu0 %307, %v98
  %v309 = vpop.permute.xlu0 %308
  %vm311 = vcmask 261120
  %v313 = vsel %vm311, %v91, 0
  %v316 = vsel %vm311, %v92, 0
  %v319 = vsel %vm311, %v93, 0
  %v322 = vsel %vm311, %v94, 0
  %324 = vmatprep.subr.mxu0 %v284
  %325 = vmatpush1.msra.mxu0 %v283
  %326 = vmatprep.subr.mxu0 %v286
  %327 = vmatpush1.msra.mxu0 %v285
  %328 = vmatprep.subr.mxu0 %v288
  %329 = vmatpush1.msra.mxu0 %v287
  %330 = vmatprep.subr.mxu0 %v290
  %331 = vmatpush1.msra.mxu0 %v289
  %332 = vmatprep.subr.mxu0 0.0
  %333 = vmatpush1.msra.mxu0 0.0
  %334 = vmatprep.subr.mxu0 0.0
  %335 = vmatpush1.msra.mxu0 0.0
  %336 = vmatprep.subr.mxu0 0.0
  %337 = vmatpush1.msra.mxu0 0.0
  %338 = vmatprep.subr.mxu0 0.0
  %339 = vmatpush1.msra.mxu0 0.0
  %340 = vmatprep.subr.mxu0 0.0
  %341 = vmatpush1.msra.mxu0 0.0
  %342 = vmatprep.subr.mxu0 0.0
  %343 = vmatpush1.msra.mxu0 0.0
  %344 = vmatprep.subr.mxu0 0.0
  %345 = vmatpush1.msra.mxu0 0.0
  %346 = vmatprep.subr.mxu0 0.0
  %347 = vmatpush1.msra.mxu0 0.0
  %348 = vmatprep.subr.mxu0 0.0
  %349 = vmatpush1.msra.mxu0 0.0
  %350 = vmatprep.subr.mxu0 0.0
  %351 = vmatpush1.msra.mxu0 0.0
  %352 = vmatprep.subr.mxu0 0.0
  %353 = vmatpush1.msra.mxu0 0.0
  %354 = vmatprep.subr.mxu0 0.0
  %355 = vmatpush1.msra.mxu0 0.0
  %356 = vmatprep.subr.mxu0 0.0
  %357 = vmatpush1.msra.mxu0 0.0
  %358 = vmatprep.subr.mxu0 0.0
  %359 = vmatpush1.msra.mxu0 0.0
  %360 = vmatprep.subr.mxu0 0.0
  %361 = vmatpush1.msra.mxu0 0.0
  %362 = vmatprep.subr.mxu0 0.0
  %363 = vmatpush1.msra.mxu0 0.0
  %364 = vmatprep.subr.mxu0 0.0
  %365 = vmatpush1.msra.mxu0 0.0
  %366 = vmatprep.subr.mxu0 0.0
  %367 = vmatpush1.msra.mxu0 0.0
  %368 = vmatprep.subr.mxu0 0.0
  %369 = vmatpush1.msra.mxu0 0.0
  %370 = vmatprep.subr.mxu0 0.0
  %371 = vmatpush1.msra.mxu0 0.0
  %372 = vmatprep.subr.mxu0 0.0
  %373 = vmatpush1.msra.mxu0 0.0
  %374 = vmatprep.subr.mxu0 0.0
  %375 = vmatpush1.msra.mxu0 0.0
  %376 = vmatprep.subr.mxu0 0.0
  %377 = vmatpush1.msra.mxu0 0.0
  %378 = vmatprep.subr.mxu0 0.0
  %379 = vmatpush1.msra.mxu0 0.0
  %380 = vmatprep.subr.mxu0 0.0
  %381 = vmatpush1.msra.mxu0 0.0
  %382 = vmatprep.subr.mxu0 0.0
  %383 = vmatpush1.msra.mxu0 0.0
  %384 = vmatprep.subr.mxu0 0.0
  %385 = vmatpush1.msra.mxu0 0.0
  %386 = vmatprep.subr.mxu0 0.0
  %387 = vmatpush1.msra.mxu0 0.0
  %388 = vmatprep.mubr.f32.mxu0 0.0
  %389 = vmatmul.mubr.f32.gmra.mrb[0].mxu0 %v313
  %v390 = vpop.f32.mrb[0].mxu0
  %v391 = vadd.f32 %v294, %v390
  %v392 = vpop.f32.mrb[0].mxu0
  %v393 = vadd.f32 %v294, %v392
  %394 = vmatprep.mubr.f32.mxu0 0.0
  %395 = vmatmul.mubr.f32.gmra.mrb[0].mxu0 %v316
  %v396 = vpop.f32.mrb[0].mxu0
  %v397 = vadd.f32 %v299, %v396
  %v398 = vpop.f32.mrb[0].mxu0
  %v399 = vadd.f32 %v299, %v398
  %400 = vmatprep.mubr.f32.mxu0 0.0
  %401 = vmatmul.mubr.f32.gmra.mrb[0].mxu0 %v319
  %v402 = vpop.f32.mrb[0].mxu0
  %v403 = vadd.f32 %v304, %v402
  %v404 = vpop.f32.mrb[0].mxu0
  %v405 = vadd.f32 %v304, %v404
  %406 = vmatprep.mubr.f32.mxu0 0.0
  %407 = vmatmul.mubr.f32.gmra.mrb[0].mxu0 %v322
  %v408 = vpop.f32.mrb[0].mxu0
  %v409 = vadd.f32 %v309, %v408
  %v410 = vpop.f32.mrb[0].mxu0
  %v411 = vadd.f32 %v309, %v410
  %412 = vdwg.mxu0
  %v414 = vlaneseq
  %v415 = vshrl.u32 %v414, 7
  %v416 = vsub.s32 0, %v415
  %v417 = vrot.slane %v103, %v416
  %v420 = vsel %vm311, %v151, 0
  %422 = vmatprep.subr.mxu0 0.0
  %423 = vmatpush1.msra.mxu0 %v99
  %424 = vmatprep.subr.mxu0 0.0
  %425 = vmatpush1.msra.mxu0 %v100
  %426 = vmatprep.subr.mxu0 0.0
  %427 = vmatpush1.msra.mxu0 %v101
  %428 = vmatprep.subr.mxu0 0.0
  %429 = vmatpush1.msra.mxu0 %v102
  %430 = vmatprep.subr.mxu0 0.0
  %431 = vmatpush1.msra.mxu0 0.0
  %432 = vmatprep.subr.mxu0 0.0
  %433 = vmatpush1.msra.mxu0 0.0
  %434 = vmatprep.subr.mxu0 0.0
  %435 = vmatpush1.msra.mxu0 0.0
  %436 = vmatprep.subr.mxu0 0.0
  %437 = vmatpush1.msra.mxu0 0.0
  %438 = vmatprep.subr.mxu0 0.0
  %439 = vmatpush1.msra.mxu0 0.0
  %440 = vmatprep.subr.mxu0 0.0
  %441 = vmatpush1.msra.mxu0 0.0
  %442 = vmatprep.subr.mxu0 0.0
  %443 = vmatpush1.msra.mxu0 0.0
  %444 = vmatprep.subr.mxu0 0.0
  %445 = vmatpush1.msra.mxu0 0.0
  %446 = vmatprep.subr.mxu0 0.0
  %447 = vmatpush1.msra.mxu0 0.0
  %448 = vmatprep.subr.mxu0 0.0
  %449 = vmatpush1.msra.mxu0 0.0
  %450 = vmatprep.subr.mxu0 0.0
  %451 = vmatpush1.msra.mxu0 0.0
  %452 = vmatprep.subr.mxu0 0.0
  %453 = vmatpush1.msra.mxu0 0.0
  %454 = vmatprep.subr.mxu0 0.0
  %455 = vmatpush1.msra.mxu0 0.0
  %456 = vmatprep.subr.mxu0 0.0
  %457 = vmatpush1.msra.mxu0 0.0
  %458 = vmatprep.subr.mxu0 0.0
  %459 = vmatpush1.msra.mxu0 0.0
  %460 = vmatprep.subr.mxu0 0.0
  %461 = vmatpush1.msra.mxu0 0.0
  %462 = vmatprep.subr.mxu0 0.0
  %463 = vmatpush1.msra.mxu0 0.0
  %464 = vmatprep.subr.mxu0 0.0
  %465 = vmatpush1.msra.mxu0 0.0
  %466 = vmatprep.subr.mxu0 0.0
  %467 = vmatpush1.msra.mxu0 0.0
  %468 = vmatprep.subr.mxu0 0.0
  %469 = vmatpush1.msra.mxu0 0.0
  %470 = vmatprep.subr.mxu0 0.0
  %471 = vmatpush1.msra.mxu0 0.0
  %472 = vmatprep.subr.mxu0 0.0
  %473 = vmatpush1.msra.mxu0 0.0
  %474 = vmatprep.subr.mxu0 0.0
  %475 = vmatpush1.msra.mxu0 0.0
  %476 = vmatprep.subr.mxu0 0.0
  %477 = vmatpush1.msra.mxu0 0.0
  %478 = vmatprep.subr.mxu0 0.0
  %479 = vmatpush1.msra.mxu0 0.0
  %480 = vmatprep.subr.mxu0 0.0
  %481 = vmatpush1.msra.mxu0 0.0
  %482 = vmatprep.subr.mxu0 0.0
  %483 = vmatpush1.msra.mxu0 0.0
  %484 = vmatprep.subr.mxu0 0.0
  %485 = vmatpush1.msra.mxu0 0.0
  %486 = vmatprep.mubr.f32.mxu0 0.0
  %487 = vmatmul.mubr.f32.gmra.mrb[0].mxu0 %v420
  %v488 = vpop.f32.mrb[0].mxu0
  %v489 = vadd.f32 %v417, %v488
  %v490 = vpop.f32.mrb[0].mxu0
  %491 = vdwg.mxu0
  %v493 = vlaneseq
  %v494 = vshrl.u32 %v493, 7
  %v495 = vsub.s32 0, %v494
  %v496 = vrot.slane %v108, %v495
  %498 = vmatprep.subr.mxu0 0.0
  %499 = vmatpush1.msra.mxu0 %v104
  %500 = vmatprep.subr.mxu0 0.0
  %501 = vmatpush1.msra.mxu0 %v105
  %502 = vmatprep.subr.mxu0 0.0
  %503 = vmatpush1.msra.mxu0 %v106
  %504 = vmatprep.subr.mxu0 0.0
  %505 = vmatpush1.msra.mxu0 %v107
  %506 = vmatprep.subr.mxu0 0.0
  %507 = vmatpush1.msra.mxu0 0.0
  %508 = vmatprep.subr.mxu0 0.0
  %509 = vmatpush1.msra.mxu0 0.0
  %510 = vmatprep.subr.mxu0 0.0
  %511 = vmatpush1.msra.mxu0 0.0
  %512 = vmatprep.subr.mxu0 0.0
  %513 = vmatpush1.msra.mxu0 0.0
  %514 = vmatprep.subr.mxu0 0.0
  %515 = vmatpush1.msra.mxu0 0.0
  %516 = vmatprep.subr.mxu0 0.0
  %517 = vmatpush1.msra.mxu0 0.0
  %518 = vmatprep.subr.mxu0 0.0
  %519 = vmatpush1.msra.mxu0 0.0
  %520 = vmatprep.subr.mxu0 0.0
  %521 = vmatpush1.msra.mxu0 0.0
  %522 = vmatprep.subr.mxu0 0.0
  %523 = vmatpush1.msra.mxu0 0.0
  %524 = vmatprep.subr.mxu0 0.0
  %525 = vmatpush1.msra.mxu0 0.0
  %526 = vmatprep.subr.mxu0 0.0
  %527 = vmatpush1.msra.mxu0 0.0
  %528 = vmatprep.subr.mxu0 0.0
  %529 = vmatpush1.msra.mxu0 0.0
  %530 = vmatprep.subr.mxu0 0.0
  %531 = vmatpush1.msra.mxu0 0.0
  %532 = vmatprep.subr.mxu0 0.0
  %533 = vmatpush1.msra.mxu0 0.0
  %534 = vmatprep.subr.mxu0 0.0
  %535 = vmatpush1.msra.mxu0 0.0
  %536 = vmatprep.subr.mxu0 0.0
  %537 = vmatpush1.msra.mxu0 0.0
  %538 = vmatprep.subr.mxu0 0.0
  %539 = vmatpush1.msra.mxu0 0.0
  %540 = vmatprep.subr.mxu0 0.0
  %541 = vmatpush1.msra.mxu0 0.0
  %542 = vmatprep.subr.mxu0 0.0
  %543 = vmatpush1.msra.mxu0 0.0
  %544 = vmatprep.subr.mxu0 0.0
  %545 = vmatpush1.msra.mxu0 0.0
  %546 = vmatprep.subr.mxu0 0.0
  %547 = vmatpush1.msra.mxu0 0.0
  %548 = vmatprep.subr.mxu0 0.0
  %549 = vmatpush1.msra.mxu0 0.0
  %550 = vmatprep.subr.mxu0 0.0
  %551 = vmatpush1.msra.mxu0 0.0
  %552 = vmatprep.subr.mxu0 0.0
  %553 = vmatpush1.msra.mxu0 0.0
  %554 = vmatprep.subr.mxu0 0.0
  %555 = vmatpush1.msra.mxu0 0.0
  %556 = vmatprep.subr.mxu0 0.0
  %557 = vmatpush1.msra.mxu0 0.0
  %558 = vmatprep.subr.mxu0 0.0
  %559 = vmatpush1.msra.mxu0 0.0
  %560 = vmatprep.subr.mxu0 0.0
  %561 = vmatpush1.msra.mxu0 0.0
  %562 = vmatprep.mubr.f32.mxu0 0.0
  %563 = vmatmul.mubr.f32.gmra.mrb[0].mxu0 %v420
  %v564 = vpop.f32.mrb[0].mxu0
  %v565 = vadd.f32 %v496, %v564
  %v566 = vpop.f32.mrb[0].mxu0
  %567 = vdwg.mxu0
  %v569 = vlaneseq
  %v570 = vshrl.u32 %v569, 7
  %v571 = vsub.s32 0, %v570
  %v572 = vrot.slane %v113, %v571
  %574 = vmatprep.subr.mxu0 0.0
  %575 = vmatpush1.msra.mxu0 %v109
  %576 = vmatprep.subr.mxu0 0.0
  %577 = vmatpush1.msra.mxu0 %v110
  %578 = vmatprep.subr.mxu0 0.0
  %579 = vmatpush1.msra.mxu0 %v111
  %580 = vmatprep.subr.mxu0 0.0
  %581 = vmatpush1.msra.mxu0 %v112
  %582 = vmatprep.subr.mxu0 0.0
  %583 = vmatpush1.msra.mxu0 0.0
  %584 = vmatprep.subr.mxu0 0.0
  %585 = vmatpush1.msra.mxu0 0.0
  %586 = vmatprep.subr.mxu0 0.0
  %587 = vmatpush1.msra.mxu0 0.0
  %588 = vmatprep.subr.mxu0 0.0
  %589 = vmatpush1.msra.mxu0 0.0
  %590 = vmatprep.subr.mxu0 0.0
  %591 = vmatpush1.msra.mxu0 0.0
  %592 = vmatprep.subr.mxu0 0.0
  %593 = vmatpush1.msra.mxu0 0.0
  %594 = vmatprep.subr.mxu0 0.0
  %595 = vmatpush1.msra.mxu0 0.0
  %596 = vmatprep.subr.mxu0 0.0
  %597 = vmatpush1.msra.mxu0 0.0
  %598 = vmatprep.subr.mxu0 0.0
  %599 = vmatpush1.msra.mxu0 0.0
  %600 = vmatprep.subr.mxu0 0.0
  %601 = vmatpush1.msra.mxu0 0.0
  %602 = vmatprep.subr.mxu0 0.0
  %603 = vmatpush1.msra.mxu0 0.0
  %604 = vmatprep.subr.mxu0 0.0
  %605 = vmatpush1.msra.mxu0 0.0
  %606 = vmatprep.subr.mxu0 0.0
  %607 = vmatpush1.msra.mxu0 0.0
  %608 = vmatprep.subr.mxu0 0.0
  %609 = vmatpush1.msra.mxu0 0.0
  %610 = vmatprep.subr.mxu0 0.0
  %611 = vmatpush1.msra.mxu0 0.0
  %612 = vmatprep.subr.mxu0 0.0
  %613 = vmatpush1.msra.mxu0 0.0
  %614 = vmatprep.subr.mxu0 0.0
  %615 = vmatpush1.msra.mxu0 0.0
  %616 = vmatprep.subr.mxu0 0.0
  %617 = vmatpush1.msra.mxu0 0.0
  %618 = vmatprep.subr.mxu0 0.0
  %619 = vmatpush1.msra.mxu0 0.0
  %620 = vmatprep.subr.mxu0 0.0
  %621 = vmatpush1.msra.mxu0 0.0
  %622 = vmatprep.subr.mxu0 0.0
  %623 = vmatpush1.msra.mxu0 0.0
  %624 = vmatprep.subr.mxu0 0.0
  %625 = vmatpush1.msra.mxu0 0.0
  %626 = vmatprep.subr.mxu0 0.0
  %627 = vmatpush1.msra.mxu0 0.0
  %628 = vmatprep.subr.mxu0 0.0
  %629 = vmatpush1.msra.mxu0 0.0
  %630 = vmatprep.subr.mxu0 0.0
  %631 = vmatpush1.msra.mxu0 0.0
  %632 = vmatprep.subr.mxu0 0.0
  %633 = vmatpush1.msra.mxu0 0.0
  %634 = vmatprep.subr.mxu0 0.0
  %635 = vmatpush1.msra.mxu0 0.0
  %636 = vmatprep.subr.mxu0 0.0
  %637 = vmatpush1.msra.mxu0 0.0
  %638 = vmatprep.mubr.f32.mxu0 0.0
  %639 = vmatmul.mubr.f32.gmra.mrb[0].mxu0 %v420
  %v640 = vpop.f32.mrb[0].mxu0
  %v641 = vadd.f32 %v572, %v640
  %v642 = vpop.f32.mrb[0].mxu0
  %643 = vdwg.mxu0
  %v645 = vlaneseq
  %v646 = vshrl.u32 %v645, 7
  %v647 = vsub.s32 0, %v646
  %v648 = vrot.slane %v152, %v647
  %vm650 = vcmask 64512
  %v652 = vsel %vm650, %v489, 0
  %v655 = vsel %vm650, %v565, 0
  %657 = vmatprep.subr.mxu0 0.0
  %658 = vmatpush1.xpose.msra.mxu0 %v655
  %659 = vmatprep.subr.mxu0 0.0
  %660 = vmatpush1.xpose.msra.mxu0 0.0
  %661 = vmatprep.subr.mxu0 0.0
  %662 = vmatpush1.xpose.msra.mxu0 0.0
  %663 = vmatprep.subr.mxu0 0.0
  %664 = vmatpush1.xpose.msra.mxu0 0.0
  %665 = vmatprep.subr.mxu0 0.0
  %666 = vmatpush1.xpose.msra.mxu0 0.0
  %667 = vmatprep.subr.mxu0 0.0
  %668 = vmatpush1.xpose.msra.mxu0 0.0
  %669 = vmatprep.subr.mxu0 0.0
  %670 = vmatpush1.xpose.msra.mxu0 0.0
  %671 = vmatprep.subr.mxu0 0.0
  %672 = vmatpush1.xpose.msra.mxu0 0.0
  %673 = vmatprep.subr.mxu0 0.0
  %674 = vmatpush1.xpose.msra.mxu0 0.0
  %675 = vmatprep.subr.mxu0 0.0
  %676 = vmatpush1.xpose.msra.mxu0 0.0
  %677 = vmatprep.subr.mxu0 0.0
  %678 = vmatpush1.xpose.msra.mxu0 0.0
  %679 = vmatprep.subr.mxu0 0.0
  %680 = vmatpush1.xpose.msra.mxu0 0.0
  %681 = vmatprep.subr.mxu0 0.0
  %682 = vmatpush1.xpose.msra.mxu0 0.0
  %683 = vmatprep.subr.mxu0 0.0
  %684 = vmatpush1.xpose.msra.mxu0 0.0
  %685 = vmatprep.subr.mxu0 0.0
  %686 = vmatpush1.xpose.msra.mxu0 0.0
  %687 = vmatprep.subr.mxu0 0.0
  %688 = vmatpush1.xpose.msra.mxu0 0.0
  %689 = vmatprep.subr.mxu0 0.0
  %690 = vmatpush1.xpose.msra.mxu0 0.0
  %691 = vmatprep.subr.mxu0 0.0
  %692 = vmatpush1.xpose.msra.mxu0 0.0
  %693 = vmatprep.subr.mxu0 0.0
  %694 = vmatpush1.xpose.msra.mxu0 0.0
  %695 = vmatprep.subr.mxu0 0.0
  %696 = vmatpush1.xpose.msra.mxu0 0.0
  %697 = vmatprep.subr.mxu0 0.0
  %698 = vmatpush1.xpose.msra.mxu0 0.0
  %699 = vmatprep.subr.mxu0 0.0
  %700 = vmatpush1.xpose.msra.mxu0 0.0
  %701 = vmatprep.subr.mxu0 0.0
  %702 = vmatpush1.xpose.msra.mxu0 0.0
  %703 = vmatprep.subr.mxu0 0.0
  %704 = vmatpush1.xpose.msra.mxu0 0.0
  %705 = vmatprep.subr.mxu0 0.0
  %706 = vmatpush1.xpose.msra.mxu0 0.0
  %707 = vmatprep.subr.mxu0 0.0
  %708 = vmatpush1.xpose.msra.mxu0 0.0
  %709 = vmatprep.subr.mxu0 0.0
  %710 = vmatpush1.xpose.msra.mxu0 0.0
  %711 = vmatprep.subr.mxu0 0.0
  %712 = vmatpush1.xpose.msra.mxu0 0.0
  %713 = vmatprep.subr.mxu0 0.0
  %714 = vmatpush1.xpose.msra.mxu0 0.0
  %715 = vmatprep.subr.mxu0 0.0
  %716 = vmatpush1.xpose.msra.mxu0 0.0
  %717 = vmatprep.subr.mxu0 0.0
  %718 = vmatpush1.xpose.msra.mxu0 0.0
  %719 = vmatprep.subr.mxu0 0.0
  %720 = vmatpush1.xpose.msra.mxu0 0.0
  %721 = vmatprep.mubr.f32.mxu0 0.0
  %722 = vmatmul.mubr.f32.gmra.mrb[0].mxu0 %v652
  %v723 = vpop.f32.mrb[0].mxu0
  %v724 = vadd.f32 %v648, %v723
  %v725 = vpop.f32.mrb[0].mxu0
  %726 = vdwg.mxu0
  %v727 = vsel %vm650, %v724, -inf
  %728 = vmax.xlane.f32.xlu0 %v727
  %v729 = vpop.xlane.xlu0 %728
  %v730 = vsub.f32 %v724, %v729
  %v731 = vmul.f32 %v730, 1.442695
  %v732 = vpow.pop %v731
  %v733 = vsel %vm650, %v732, 0.0
  %734 = vadd.xlane.f32.xlu0 %v733
  %v735 = vpop.xlane.xlu0 %734
  %v736 = vrcp.pop %v735
  %v737 = vmul.f32 %v732, %v736
  %v739 = vsel %vm650, %v737, 0
  %741 = vmatprep.subr.mxu0 0.0
  %742 = vmatpush1.msra.mxu0 %v641
  %743 = vmatprep.subr.mxu0 0.0
  %744 = vmatpush1.msra.mxu0 0.0
  %745 = vmatprep.subr.mxu0 0.0
  %746 = vmatpush1.msra.mxu0 0.0
  %747 = vmatprep.subr.mxu0 0.0
  %748 = vmatpush1.msra.mxu0 0.0
  %749 = vmatprep.subr.mxu0 0.0
  %750 = vmatpush1.msra.mxu0 0.0
  %751 = vmatprep.subr.mxu0 0.0
  %752 = vmatpush1.msra.mxu0 0.0
  %753 = vmatprep.subr.mxu0 0.0
  %754 = vmatpush1.msra.mxu0 0.0
  %755 = vmatprep.subr.mxu0 0.0
  %756 = vmatpush1.msra.mxu0 0.0
  %757 = vmatprep.subr.mxu0 0.0
  %758 = vmatpush1.msra.mxu0 0.0
  %759 = vmatprep.subr.mxu0 0.0
  %760 = vmatpush1.msra.mxu0 0.0
  %761 = vmatprep.subr.mxu0 0.0
  %762 = vmatpush1.msra.mxu0 0.0
  %763 = vmatprep.subr.mxu0 0.0
  %764 = vmatpush1.msra.mxu0 0.0
  %765 = vmatprep.subr.mxu0 0.0
  %766 = vmatpush1.msra.mxu0 0.0
  %767 = vmatprep.subr.mxu0 0.0
  %768 = vmatpush1.msra.mxu0 0.0
  %769 = vmatprep.subr.mxu0 0.0
  %770 = vmatpush1.msra.mxu0 0.0
  %771 = vmatprep.subr.mxu0 0.0
  %772 = vmatpush1.msra.mxu0 0.0
  %773 = vmatprep.subr.mxu0 0.0
  %774 = vmatpush1.msra.mxu0 0.0
  %775 = vmatprep.subr.mxu0 0.0
  %776 = vmatpush1.msra.mxu0 0.0
  %777 = vmatprep.subr.mxu0 0.0
  %778 = vmatpush1.msra.mxu0 0.0
  %779 = vmatprep.subr.mxu0 0.0
  %780 = vmatpush1.msra.mxu0 0.0
  %781 = vmatprep.subr.mxu0 0.0
  %782 = vmatpush1.msra.mxu0 0.0
  %783 = vmatprep.subr.mxu0 0.0
  %784 = vmatpush1.msra.mxu0 0.0
  %785 = vmatprep.subr.mxu0 0.0
  %786 = vmatpush1.msra.mxu0 0.0
  %787 = vmatprep.subr.mxu0 0.0
  %788 = vmatpush1.msra.mxu0 0.0
  %789 = vmatprep.subr.mxu0 0.0
  %790 = vmatpush1.msra.mxu0 0.0
  %791 = vmatprep.subr.mxu0 0.0
  %792 = vmatpush1.msra.mxu0 0.0
  %793 = vmatprep.subr.mxu0 0.0
  %794 = vmatpush1.msra.mxu0 0.0
  %795 = vmatprep.subr.mxu0 0.0
  %796 = vmatpush1.msra.mxu0 0.0
  %797 = vmatprep.subr.mxu0 0.0
  %798 = vmatpush1.msra.mxu0 0.0
  %799 = vmatprep.subr.mxu0 0.0
  %800 = vmatpush1.msra.mxu0 0.0
  %801 = vmatprep.subr.mxu0 0.0
  %802 = vmatpush1.msra.mxu0 0.0
  %803 = vmatprep.subr.mxu0 0.0
  %804 = vmatpush1.msra.mxu0 0.0
  %805 = vmatprep.mubr.f32.mxu0 0.0
  %806 = vmatmul.mubr.f32.gmra.mrb[0].mxu0 %v739
  %v807 = vpop.f32.mrb[0].mxu0
  %v808 = vadd.f32 0.0, %v807
  %v809 = vpop.f32.mrb[0].mxu0
  %810 = vdwg.mxu0
  %811 = vrot.lane.b32.xlu0 %v489, 120
  %v812 = vpop.permute.xlu0 %811
  %813 = vrot.lane.b32.xlu0 %v565, 120
  %v814 = vpop.permute.xlu0 %813
  %v815 = vsel %vm650, %v812, 0
  %v817 = vsel %vm650, %v814, 0
  %819 = vmatprep.subr.mxu0 0.0
  %820 = vmatpush1.xpose.msra.mxu0 %v817
  %821 = vmatprep.subr.mxu0 0.0
  %822 = vmatpush1.xpose.msra.mxu0 0.0
  %823 = vmatprep.subr.mxu0 0.0
  %824 = vmatpush1.xpose.msra.mxu0 0.0
  %825 = vmatprep.subr.mxu0 0.0
  %826 = vmatpush1.xpose.msra.mxu0 0.0
  %827 = vmatprep.subr.mxu0 0.0
  %828 = vmatpush1.xpose.msra.mxu0 0.0
  %829 = vmatprep.subr.mxu0 0.0
  %830 = vmatpush1.xpose.msra.mxu0 0.0
  %831 = vmatprep.subr.mxu0 0.0
  %832 = vmatpush1.xpose.msra.mxu0 0.0
  %833 = vmatprep.subr.mxu0 0.0
  %834 = vmatpush1.xpose.msra.mxu0 0.0
  %835 = vmatprep.subr.mxu0 0.0
  %836 = vmatpush1.xpose.msra.mxu0 0.0
  %837 = vmatprep.subr.mxu0 0.0
  %838 = vmatpush1.xpose.msra.mxu0 0.0
  %839 = vmatprep.subr.mxu0 0.0
  %840 = vmatpush1.xpose.msra.mxu0 0.0
  %841 = vmatprep.subr.mxu0 0.0
  %842 = vmatpush1.xpose.msra.mxu0 0.0
  %843 = vmatprep.subr.mxu0 0.0
  %844 = vmatpush1.xpose.msra.mxu0 0.0
  %845 = vmatprep.subr.mxu0 0.0
  %846 = vmatpush1.xpose.msra.mxu0 0.0
  %847 = vmatprep.subr.mxu0 0.0
  %848 = vmatpush1.xpose.msra.mxu0 0.0
  %849 = vmatprep.subr.mxu0 0.0
  %850 = vmatpush1.xpose.msra.mxu0 0.0
  %851 = vmatprep.subr.mxu0 0.0
  %852 = vmatpush1.xpose.msra.mxu0 0.0
  %853 = vmatprep.subr.mxu0 0.0
  %854 = vmatpush1.xpose.msra.mxu0 0.0
  %855 = vmatprep.subr.mxu0 0.0
  %856 = vmatpush1.xpose.msra.mxu0 0.0
  %857 = vmatprep.subr.mxu0 0.0
  %858 = vmatpush1.xpose.msra.mxu0 0.0
  %859 = vmatprep.subr.mxu0 0.0
  %860 = vmatpush1.xpose.msra.mxu0 0.0
  %861 = vmatprep.subr.mxu0 0.0
  %862 = vmatpush1.xpose.msra.mxu0 0.0
  %863 = vmatprep.subr.mxu0 0.0
  %864 = vmatpush1.xpose.msra.mxu0 0.0
  %865 = vmatprep.subr.mxu0 0.0
  %866 = vmatpush1.xpose.msra.mxu0 0.0
  %867 = vmatprep.subr.mxu0 0.0
  %868 = vmatpush1.xpose.msra.mxu0 0.0
  %869 = vmatprep.subr.mxu0 0.0
  %870 = vmatpush1.xpose.msra.mxu0 0.0
  %871 = vmatprep.subr.mxu0 0.0
  %872 = vmatpush1.xpose.msra.mxu0 0.0
  %873 = vmatprep.subr.mxu0 0.0
  %874 = vmatpush1.xpose.msra.mxu0 0.0
  %875 = vmatprep.subr.mxu0 0.0
  %876 = vmatpush1.xpose.msra.mxu0 0.0
  %877 = vmatprep.subr.mxu0 0.0
  %878 = vmatpush1.xpose.msra.mxu0 0.0
  %879 = vmatprep.subr.mxu0 0.0
  %880 = vmatpush1.xpose.msra.mxu0 0.0
  %881 = vmatprep.subr.mxu0 0.0
  %882 = vmatpush1.xpose.msra.mxu0 0.0
  %883 = vmatprep.mubr.f32.mxu0 0.0
  %884 = vmatmul.mubr.f32.gmra.mrb[0].mxu0 %v815
  %v885 = vpop.f32.mrb[0].mxu0
  %v886 = vadd.f32 %v648, %v885
  %v887 = vpop.f32.mrb[0].mxu0
  %888 = vdwg.mxu0
  %v889 = vsel %vm650, %v886, -inf
  %890 = vmax.xlane.f32.xlu0 %v889
  %v891 = vpop.xlane.xlu0 %890
  %v892 = vsub.f32 %v886, %v891
  %v893 = vmul.f32 %v892, 1.442695
  %v894 = vpow.pop %v893
  %v895 = vsel %vm650, %v894, 0.0
  %896 = vadd.xlane.f32.xlu0 %v895
  %v897 = vpop.xlane.xlu0 %896
  %v898 = vrcp.pop %v897
  %v899 = vmul.f32 %v894, %v898
  %901 = vrot.lane.b32.xlu0 %v641, 120
  %v902 = vpop.permute.xlu0 %901
  %v905 = vsel %vm650, %v899, 0
  %907 = vmatprep.subr.mxu0 0.0
  %908 = vmatpush1.msra.mxu0 %v902
  %909 = vmatprep.subr.mxu0 0.0
  %910 = vmatpush1.msra.mxu0 0.0
  %911 = vmatprep.subr.mxu0 0.0
  %912 = vmatpush1.msra.mxu0 0.0
  %913 = vmatprep.subr.mxu0 0.0
  %914 = vmatpush1.msra.mxu0 0.0
  %915 = vmatprep.subr.mxu0 0.0
  %916 = vmatpush1.msra.mxu0 0.0
  %917 = vmatprep.subr.mxu0 0.0
  %918 = vmatpush1.msra.mxu0 0.0
  %919 = vmatprep.subr.mxu0 0.0
  %920 = vmatpush1.msra.mxu0 0.0
  %921 = vmatprep.subr.mxu0 0.0
  %922 = vmatpush1.msra.mxu0 0.0
  %923 = vmatprep.subr.mxu0 0.0
  %924 = vmatpush1.msra.mxu0 0.0
  %925 = vmatprep.subr.mxu0 0.0
  %926 = vmatpush1.msra.mxu0 0.0
  %927 = vmatprep.subr.mxu0 0.0
  %928 = vmatpush1.msra.mxu0 0.0
  %929 = vmatprep.subr.mxu0 0.0
  %930 = vmatpush1.msra.mxu0 0.0
  %931 = vmatprep.subr.mxu0 0.0
  %932 = vmatpush1.msra.mxu0 0.0
  %933 = vmatprep.subr.mxu0 0.0
  %934 = vmatpush1.msra.mxu0 0.0
  %935 = vmatprep.subr.mxu0 0.0
  %936 = vmatpush1.msra.mxu0 0.0
  %937 = vmatprep.subr.mxu0 0.0
  %938 = vmatpush1.msra.mxu0 0.0
  %939 = vmatprep.subr.mxu0 0.0
  %940 = vmatpush1.msra.mxu0 0.0
  %941 = vmatprep.subr.mxu0 0.0
  %942 = vmatpush1.msra.mxu0 0.0
  %943 = vmatprep.subr.mxu0 0.0
  %944 = vmatpush1.msra.mxu0 0.0
  %945 = vmatprep.subr.mxu0 0.0
  %946 = vmatpush1.msra.mxu0 0.0
  %947 = vmatprep.subr.mxu0 0.0
  %948 = vmatpush1.msra.mxu0 0.0
  %949 = vmatprep.subr.mxu0 0.0
  %950 = vmatpush1.msra.mxu0 0.0
  %951 = vmatprep.subr.mxu0 0.0
  %952 = vmatpush1.msra.mxu0 0.0
  %953 = vmatprep.subr.mxu0 0.0
  %954 = vmatpush1.msra.mxu0 0.0
  %955 = vmatprep.subr.mxu0 0.0
  %956 = vmatpush1.msra.mxu0 0.0
  %957 = vmatprep.subr.mxu0 0.0
  %958 = vmatpush1.msra.mxu0 0.0
  %959 = vmatprep.subr.mxu0 0.0
  %960 = vmatpush1.msra.mxu0 0.0
  %961 = vmatprep.subr.mxu0 0.0
  %962 = vmatpush1.msra.mxu0 0.0
  %963 = vmatprep.subr.mxu0 0.0
  %964 = vmatpush1.msra.mxu0 0.0
  %965 = vmatprep.subr.mxu0 0.0
  %966 = vmatpush1.msra.mxu0 0.0
  %967 = vmatprep.subr.mxu0 0.0
  %968 = vmatpush1.msra.mxu0 0.0
  %969 = vmatprep.subr.mxu0 0.0
  %970 = vmatpush1.msra.mxu0 0.0
  %971 = vmatprep.mubr.f32.mxu0 0.0
  %972 = vmatmul.mubr.f32.gmra.mrb[0].mxu0 %v905
  %v973 = vpop.f32.mrb[0].mxu0
  %v974 = vadd.f32 0.0, %v973
  %v975 = vpop.f32.mrb[0].mxu0
  %976 = vdwg.mxu0
  %977 = vrot.lane.b32.xlu0 %v489, 112
  %v978 = vpop.permute.xlu0 %977
  %979 = vrot.lane.b32.xlu0 %v565, 112
  %v980 = vpop.permute.xlu0 %979
  %v981 = vsel %vm650, %v978, 0
  %v983 = vsel %vm650, %v980, 0
  %985 = vmatprep.subr.mxu0 0.0
  %986 = vmatpush1.xpose.msra.mxu0 %v983
  %987 = vmatprep.subr.mxu0 0.0
  %988 = vmatpush1.xpose.msra.mxu0 0.0
  %989 = vmatprep.subr.mxu0 0.0
  %990 = vmatpush1.xpose.msra.mxu0 0.0
  %991 = vmatprep.subr.mxu0 0.0
  %992 = vmatpush1.xpose.msra.mxu0 0.0
  %993 = vmatprep.subr.mxu0 0.0
  %994 = vmatpush1.xpose.msra.mxu0 0.0
  %995 = vmatprep.subr.mxu0 0.0
  %996 = vmatpush1.xpose.msra.mxu0 0.0
  %997 = vmatprep.subr.mxu0 0.0
  %998 = vmatpush1.xpose.msra.mxu0 0.0
  %999 = vmatprep.subr.mxu0 0.0
  %1000 = vmatpush1.xpose.msra.mxu0 0.0
  %1001 = vmatprep.subr.mxu0 0.0
  %1002 = vmatpush1.xpose.msra.mxu0 0.0
  %1003 = vmatprep.subr.mxu0 0.0
  %1004 = vmatpush1.xpose.msra.mxu0 0.0
  %1005 = vmatprep.subr.mxu0 0.0
  %1006 = vmatpush1.xpose.msra.mxu0 0.0
  %1007 = vmatprep.subr.mxu0 0.0
  %1008 = vmatpush1.xpose.msra.mxu0 0.0
  %1009 = vmatprep.subr.mxu0 0.0
  %1010 = vmatpush1.xpose.msra.mxu0 0.0
  %1011 = vmatprep.subr.mxu0 0.0
  %1012 = vmatpush1.xpose.msra.mxu0 0.0
  %1013 = vmatprep.subr.mxu0 0.0
  %1014 = vmatpush1.xpose.msra.mxu0 0.0
  %1015 = vmatprep.subr.mxu0 0.0
  %1016 = vmatpush1.xpose.msra.mxu0 0.0
  %1017 = vmatprep.subr.mxu0 0.0
  %1018 = vmatpush1.xpose.msra.mxu0 0.0
  %1019 = vmatprep.subr.mxu0 0.0
  %1020 = vmatpush1.xpose.msra.mxu0 0.0
  %1021 = vmatprep.subr.mxu0 0.0
  %1022 = vmatpush1.xpose.msra.mxu0 0.0
  %1023 = vmatprep.subr.mxu0 0.0
  %1024 = vmatpush1.xpose.msra.mxu0 0.0
  %1025 = vmatprep.subr.mxu0 0.0
  %1026 = vmatpush1.xpose.msra.mxu0 0.0
  %1027 = vmatprep.subr.mxu0 0.0
  %1028 = vmatpush1.xpose.msra.mxu0 0.0
  %1029 = vmatprep.subr.mxu0 0.0
  %1030 = vmatpush1.xpose.msra.mxu0 0.0
  %1031 = vmatprep.subr.mxu0 0.0
  %1032 = vmatpush1.xpose.msra.mxu0 0.0
  %1033 = vmatprep.subr.mxu0 0.0
  %1034 = vmatpush1.xpose.msra.mxu0 0.0
  %1035 = vmatprep.subr.mxu0 0.0
  %1036 = vmatpush1.xpose.msra.mxu0 0.0
  %1037 = vmatprep.subr.mxu0 0.0
  %1038 = vmatpush1.xpose.msra.mxu0 0.0
  %1039 = vmatprep.subr.mxu0 0.0
  %1040 = vmatpush1.xpose.msra.mxu0 0.0
  %1041 = vmatprep.subr.mxu0 0.0
  %1042 = vmatpush1.xpose.msra.mxu0 0.0
  %1043 = vmatprep.subr.mxu0 0.0
  %1044 = vmatpush1.xpose.msra.mxu0 0.0
  %1045 = vmatprep.subr.mxu0 0.0
  %1046 = vmatpush1.xpose.msra.mxu0 0.0
  %1047 = vmatprep.subr.mxu0 0.0
  %1048 = vmatpush1.xpose.msra.mxu0 0.0
  %1049 = vmatprep.mubr.f32.mxu0 0.0
  %1050 = vmatmul.mubr.f32.gmra.mrb[0].mxu0 %v981
  %v1051 = vpop.f32.mrb[0].mxu0
  %v1052 = vadd.f32 %v648, %v1051
  %v1053 = vpop.f32.mrb[0].mxu0
  %1054 = vdwg.mxu0
  %v1055 = vsel %vm650, %v1052, -inf
  %1056 = vmax.xlane.f32.xlu0 %v1055
  %v1057 = vpop.xlane.xlu0 %1056
  %v1058 = vsub.f32 %v1052, %v1057
  %v1059 = vmul.f32 %v1058, 1.442695
  %v1060 = vpow.pop %v1059
  %v1061 = vsel %vm650, %v1060, 0.0
  %1062 = vadd.xlane.f32.xlu0 %v1061
  %v1063 = vpop.xlane.xlu0 %1062
  %v1064 = vrcp.pop %v1063
  %v1065 = vmul.f32 %v1060, %v1064
  %1066 = vrot.lane.b32.xlu0 %v641, 112
  %v1067 = vpop.permute.xlu0 %1066
  %v1070 = vsel %vm650, %v1065, 0
  %1072 = vmatprep.subr.mxu0 0.0
  %1073 = vmatpush1.msra.mxu0 %v1067
  %1074 = vmatprep.subr.mxu0 0.0
  %1075 = vmatpush1.msra.mxu0 0.0
  %1076 = vmatprep.subr.mxu0 0.0
  %1077 = vmatpush1.msra.mxu0 0.0
  %1078 = vmatprep.subr.mxu0 0.0
  %1079 = vmatpush1.msra.mxu0 0.0
  %1080 = vmatprep.subr.mxu0 0.0
  %1081 = vmatpush1.msra.mxu0 0.0
  %1082 = vmatprep.subr.mxu0 0.0
  %1083 = vmatpush1.msra.mxu0 0.0
  %1084 = vmatprep.subr.mxu0 0.0
  %1085 = vmatpush1.msra.mxu0 0.0
  %1086 = vmatprep.subr.mxu0 0.0
  %1087 = vmatpush1.msra.mxu0 0.0
  %1088 = vmatprep.subr.mxu0 0.0
  %1089 = vmatpush1.msra.mxu0 0.0
  %1090 = vmatprep.subr.mxu0 0.0
  %1091 = vmatpush1.msra.mxu0 0.0
  %1092 = vmatprep.subr.mxu0 0.0
  %1093 = vmatpush1.msra.mxu0 0.0
  %1094 = vmatprep.subr.mxu0 0.0
  %1095 = vmatpush1.msra.mxu0 0.0
  %1096 = vmatprep.subr.mxu0 0.0
  %1097 = vmatpush1.msra.mxu0 0.0
  %1098 = vmatprep.subr.mxu0 0.0
  %1099 = vmatpush1.msra.mxu0 0.0
  %1100 = vmatprep.subr.mxu0 0.0
  %1101 = vmatpush1.msra.mxu0 0.0
  %1102 = vmatprep.subr.mxu0 0.0
  %1103 = vmatpush1.msra.mxu0 0.0
  %1104 = vmatprep.subr.mxu0 0.0
  %1105 = vmatpush1.msra.mxu0 0.0
  %1106 = vmatprep.subr.mxu0 0.0
  %1107 = vmatpush1.msra.mxu0 0.0
  %1108 = vmatprep.subr.mxu0 0.0
  %1109 = vmatpush1.msra.mxu0 0.0
  %1110 = vmatprep.subr.mxu0 0.0
  %1111 = vmatpush1.msra.mxu0 0.0
  %1112 = vmatprep.subr.mxu0 0.0
  %1113 = vmatpush1.msra.mxu0 0.0
  %1114 = vmatprep.subr.mxu0 0.0
  %1115 = vmatpush1.msra.mxu0 0.0
  %1116 = vmatprep.subr.mxu0 0.0
  %1117 = vmatpush1.msra.mxu0 0.0
  %1118 = vmatprep.subr.mxu0 0.0
  %1119 = vmatpush1.msra.mxu0 0.0
  %1120 = vmatprep.subr.mxu0 0.0
  %1121 = vmatpush1.msra.mxu0 0.0
  %1122 = vmatprep.subr.mxu0 0.0
  %1123 = vmatpush1.msra.mxu0 0.0
  %1124 = vmatprep.subr.mxu0 0.0
  %1125 = vmatpush1.msra.mxu0 0.0
  %1126 = vmatprep.subr.mxu0 0.0
  %1127 = vmatpush1.msra.mxu0 0.0
  %1128 = vmatprep.subr.mxu0 0.0
  %1129 = vmatpush1.msra.mxu0 0.0
  %1130 = vmatprep.subr.mxu0 0.0
  %1131 = vmatpush1.msra.mxu0 0.0
  %1132 = vmatprep.subr.mxu0 0.0
  %1133 = vmatpush1.msra.mxu0 0.0
  %1134 = vmatprep.subr.mxu0 0.0
  %1135 = vmatpush1.msra.mxu0 0.0
  %1136 = vmatprep.mubr.f32.mxu0 0.0
  %1137 = vmatmul.mubr.f32.gmra.mrb[0].mxu0 %v1070
  %v1138 = vpop.f32.mrb[0].mxu0
  %v1139 = vadd.f32 0.0, %v1138
  %v1140 = vpop.f32.mrb[0].mxu0
  %1141 = vdwg.mxu0
  %1142 = vrot.lane.b32.xlu0 %v489, 104
  %v1143 = vpop.permute.xlu0 %1142
  %1144 = vrot.lane.b32.xlu0 %v565, 104
  %v1145 = vpop.permute.xlu0 %1144
  %v1146 = vsel %vm650, %v1143, 0
  %v1148 = vsel %vm650, %v1145, 0
  %1150 = vmatprep.subr.mxu0 0.0
  %1151 = vmatpush1.xpose.msra.mxu0 %v1148
  %1152 = vmatprep.subr.mxu0 0.0
  %1153 = vmatpush1.xpose.msra.mxu0 0.0
  %1154 = vmatprep.subr.mxu0 0.0
  %1155 = vmatpush1.xpose.msra.mxu0 0.0
  %1156 = vmatprep.subr.mxu0 0.0
  %1157 = vmatpush1.xpose.msra.mxu0 0.0
  %1158 = vmatprep.subr.mxu0 0.0
  %1159 = vmatpush1.xpose.msra.mxu0 0.0
  %1160 = vmatprep.subr.mxu0 0.0
  %1161 = vmatpush1.xpose.msra.mxu0 0.0
  %1162 = vmatprep.subr.mxu0 0.0
  %1163 = vmatpush1.xpose.msra.mxu0 0.0
  %1164 = vmatprep.subr.mxu0 0.0
  %1165 = vmatpush1.xpose.msra.mxu0 0.0
  %1166 = vmatprep.subr.mxu0 0.0
  %1167 = vmatpush1.xpose.msra.mxu0 0.0
  %1168 = vmatprep.subr.mxu0 0.0
  %1169 = vmatpush1.xpose.msra.mxu0 0.0
  %1170 = vmatprep.subr.mxu0 0.0
  %1171 = vmatpush1.xpose.msra.mxu0 0.0
  %1172 = vmatprep.subr.mxu0 0.0
  %1173 = vmatpush1.xpose.msra.mxu0 0.0
  %1174 = vmatprep.subr.mxu0 0.0
  %1175 = vmatpush1.xpose.msra.mxu0 0.0
  %1176 = vmatprep.subr.mxu0 0.0
  %1177 = vmatpush1.xpose.msra.mxu0 0.0
  %1178 = vmatprep.subr.mxu0 0.0
  %1179 = vmatpush1.xpose.msra.mxu0 0.0
  %1180 = vmatprep.subr.mxu0 0.0
  %1181 = vmatpush1.xpose.msra.mxu0 0.0
  %1182 = vmatprep.subr.mxu0 0.0
  %1183 = vmatpush1.xpose.msra.mxu0 0.0
  %1184 = vmatprep.subr.mxu0 0.0
  %1185 = vmatpush1.xpose.msra.mxu0 0.0
  %1186 = vmatprep.subr.mxu0 0.0
  %1187 = vmatpush1.xpose.msra.mxu0 0.0
  %1188 = vmatprep.subr.mxu0 0.0
  %1189 = vmatpush1.xpose.msra.mxu0 0.0
  %1190 = vmatprep.subr.mxu0 0.0
  %1191 = vmatpush1.xpose.msra.mxu0 0.0
  %1192 = vmatprep.subr.mxu0 0.0
  %1193 = vmatpush1.xpose.msra.mxu0 0.0
  %1194 = vmatprep.subr.mxu0 0.0
  %1195 = vmatpush1.xpose.msra.mxu0 0.0
  %1196 = vmatprep.subr.mxu0 0.0
  %1197 = vmatpush1.xpose.msra.mxu0 0.0
  %1198 = vmatprep.subr.mxu0 0.0
  %1199 = vmatpush1.xpose.msra.mxu0 0.0
  %1200 = vmatprep.subr.mxu0 0.0
  %1201 = vmatpush1.xpose.msra.mxu0 0.0
  %1202 = vmatprep.subr.mxu0 0.0
  %1203 = vmatpush1.xpose.msra.mxu0 0.0
  %1204 = vmatprep.subr.mxu0 0.0
  %1205 = vmatpush1.xpose.msra.mxu0 0.0
  %1206 = vmatprep.subr.mxu0 0.0
  %1207 = vmatpush1.xpose.msra.mxu0 0.0
  %1208 = vmatprep.subr.mxu0 0.0
  %1209 = vmatpush1.xpose.msra.mxu0 0.0
  %1210 = vmatprep.subr.mxu0 0.0
  %1211 = vmatpush1.xpose.msra.mxu0 0.0
  %1212 = vmatprep.subr.mxu0 0.0
  %1213 = vmatpush1.xpose.msra.mxu0 0.0
  %1214 = vmatprep.mubr.f32.mxu0 0.0
  %1215 = vmatmul.mubr.f32.gmra.mrb[0].mxu0 %v1146
  %v1216 = vpop.f32.mrb[0].mxu0
  %v1217 = vadd.f32 %v648, %v1216
  %v1218 = vpop.f32.mrb[0].mxu0
  %1219 = vdwg.mxu0
  %v1220 = vsel %vm650, %v1217, -inf
  %1221 = vmax.xlane.f32.xlu0 %v1220
  %v1222 = vpop.xlane.xlu0 %1221
  %v1223 = vsub.f32 %v1217, %v1222
  %v1224 = vmul.f32 %v1223, 1.442695
  %v1225 = vpow.pop %v1224
  %v1226 = vsel %vm650, %v1225, 0.0
  %1227 = vadd.xlane.f32.xlu0 %v1226
  %v1228 = vpop.xlane.xlu0 %1227
  %v1229 = vrcp.pop %v1228
  %v1230 = vmul.f32 %v1225, %v1229
  %1231 = vrot.lane.b32.xlu0 %v641, 104
  %v1232 = vpop.permute.xlu0 %1231
  %v1235 = vsel %vm650, %v1230, 0
  %1237 = vmatprep.subr.mxu0 0.0
  %1238 = vmatpush1.msra.mxu0 %v1232
  %1239 = vmatprep.subr.mxu0 0.0
  %1240 = vmatpush1.msra.mxu0 0.0
  %1241 = vmatprep.subr.mxu0 0.0
  %1242 = vmatpush1.msra.mxu0 0.0
  %1243 = vmatprep.subr.mxu0 0.0
  %1244 = vmatpush1.msra.mxu0 0.0
  %1245 = vmatprep.subr.mxu0 0.0
  %1246 = vmatpush1.msra.mxu0 0.0
  %1247 = vmatprep.subr.mxu0 0.0
  %1248 = vmatpush1.msra.mxu0 0.0
  %1249 = vmatprep.subr.mxu0 0.0
  %1250 = vmatpush1.msra.mxu0 0.0
  %1251 = vmatprep.subr.mxu0 0.0
  %1252 = vmatpush1.msra.mxu0 0.0
  %1253 = vmatprep.subr.mxu0 0.0
  %1254 = vmatpush1.msra.mxu0 0.0
  %1255 = vmatprep.subr.mxu0 0.0
  %1256 = vmatpush1.msra.mxu0 0.0
  %1257 = vmatprep.subr.mxu0 0.0
  %1258 = vmatpush1.msra.mxu0 0.0
  %1259 = vmatprep.subr.mxu0 0.0
  %1260 = vmatpush1.msra.mxu0 0.0
  %1261 = vmatprep.subr.mxu0 0.0
  %1262 = vmatpush1.msra.mxu0 0.0
  %1263 = vmatprep.subr.mxu0 0.0
  %1264 = vmatpush1.msra.mxu0 0.0
  %1265 = vmatprep.subr.mxu0 0.0
  %1266 = vmatpush1.msra.mxu0 0.0
  %1267 = vmatprep.subr.mxu0 0.0
  %1268 = vmatpush1.msra.mxu0 0.0
  %1269 = vmatprep.subr.mxu0 0.0
  %1270 = vmatpush1.msra.mxu0 0.0
  %1271 = vmatprep.subr.mxu0 0.0
  %1272 = vmatpush1.msra.mxu0 0.0
  %1273 = vmatprep.subr.mxu0 0.0
  %1274 = vmatpush1.msra.mxu0 0.0
  %1275 = vmatprep.subr.mxu0 0.0
  %1276 = vmatpush1.msra.mxu0 0.0
  %1277 = vmatprep.subr.mxu0 0.0
  %1278 = vmatpush1.msra.mxu0 0.0
  %1279 = vmatprep.subr.mxu0 0.0
  %1280 = vmatpush1.msra.mxu0 0.0
  %1281 = vmatprep.subr.mxu0 0.0
  %1282 = vmatpush1.msra.mxu0 0.0
  %1283 = vmatprep.subr.mxu0 0.0
  %1284 = vmatpush1.msra.mxu0 0.0
  %1285 = vmatprep.subr.mxu0 0.0
  %1286 = vmatpush1.msra.mxu0 0.0
  %1287 = vmatprep.subr.mxu0 0.0
  %1288 = vmatpush1.msra.mxu0 0.0
  %1289 = vmatprep.subr.mxu0 0.0
  %1290 = vmatpush1.msra.mxu0 0.0
  %1291 = vmatprep.subr.mxu0 0.0
  %1292 = vmatpush1.msra.mxu0 0.0
  %1293 = vmatprep.subr.mxu0 0.0
  %1294 = vmatpush1.msra.mxu0 0.0
  %1295 = vmatprep.subr.mxu0 0.0
  %1296 = vmatpush1.msra.mxu0 0.0
  %1297 = vmatprep.subr.mxu0 0.0
  %1298 = vmatpush1.msra.mxu0 0.0
  %1299 = vmatprep.subr.mxu0 0.0
  %1300 = vmatpush1.msra.mxu0 0.0
  %1301 = vmatprep.mubr.f32.mxu0 0.0
  %1302 = vmatmul.mubr.f32.gmra.mrb[0].mxu0 %v1235
  %v1303 = vpop.f32.mrb[0].mxu0
  %v1304 = vadd.f32 0.0, %v1303
  %v1305 = vpop.f32.mrb[0].mxu0
  %1306 = vdwg.mxu0
  %1308 = vrot.lane.b32.xlu0 %v974, 8
  %v1309 = vpop.permute.xlu0 %1308
  %1312 = vrot.lane.b32.xlu0 %v1139, 16
  %v1313 = vpop.permute.xlu0 %1312
  %1316 = vrot.lane.b32.xlu0 %v1304, 24
  %v1317 = vpop.permute.xlu0 %1316
  %v1319 = vsel %vm650, %v808, %v1309
  %vm1320 = vcmask 130048
  %v1321 = vsel %vm1320, %v1319, %v1313
  %vm1322 = vcmask 195584
  %v1323 = vsel %vm1322, %v1321, %v1317
  %v1325 = vlaneseq
  %v1326 = vshrl.u32 %v1325, 7
  %v1327 = vsub.s32 0, %v1326
  %v1328 = vrot.slane %v118, %v1327
  %v1331 = vsel %vm311, %v1323, 0
  %1333 = vmatprep.subr.mxu0 0.0
  %1334 = vmatpush1.msra.mxu0 %v114
  %1335 = vmatprep.subr.mxu0 0.0
  %1336 = vmatpush1.msra.mxu0 %v115
  %1337 = vmatprep.subr.mxu0 0.0
  %1338 = vmatpush1.msra.mxu0 %v116
  %1339 = vmatprep.subr.mxu0 0.0
  %1340 = vmatpush1.msra.mxu0 %v117
  %1341 = vmatprep.subr.mxu0 0.0
  %1342 = vmatpush1.msra.mxu0 0.0
  %1343 = vmatprep.subr.mxu0 0.0
  %1344 = vmatpush1.msra.mxu0 0.0
  %1345 = vmatprep.subr.mxu0 0.0
  %1346 = vmatpush1.msra.mxu0 0.0
  %1347 = vmatprep.subr.mxu0 0.0
  %1348 = vmatpush1.msra.mxu0 0.0
  %1349 = vmatprep.subr.mxu0 0.0
  %1350 = vmatpush1.msra.mxu0 0.0
  %1351 = vmatprep.subr.mxu0 0.0
  %1352 = vmatpush1.msra.mxu0 0.0
  %1353 = vmatprep.subr.mxu0 0.0
  %1354 = vmatpush1.msra.mxu0 0.0
  %1355 = vmatprep.subr.mxu0 0.0
  %1356 = vmatpush1.msra.mxu0 0.0
  %1357 = vmatprep.subr.mxu0 0.0
  %1358 = vmatpush1.msra.mxu0 0.0
  %1359 = vmatprep.subr.mxu0 0.0
  %1360 = vmatpush1.msra.mxu0 0.0
  %1361 = vmatprep.subr.mxu0 0.0
  %1362 = vmatpush1.msra.mxu0 0.0
  %1363 = vmatprep.subr.mxu0 0.0
  %1364 = vmatpush1.msra.mxu0 0.0
  %1365 = vmatprep.subr.mxu0 0.0
  %1366 = vmatpush1.msra.mxu0 0.0
  %1367 = vmatprep.subr.mxu0 0.0
  %1368 = vmatpush1.msra.mxu0 0.0
  %1369 = vmatprep.subr.mxu0 0.0
  %1370 = vmatpush1.msra.mxu0 0.0
  %1371 = vmatprep.subr.mxu0 0.0
  %1372 = vmatpush1.msra.mxu0 0.0
  %1373 = vmatprep.subr.mxu0 0.0
  %1374 = vmatpush1.msra.mxu0 0.0
  %1375 = vmatprep.subr.mxu0 0.0
  %1376 = vmatpush1.msra.mxu0 0.0
  %1377 = vmatprep.subr.mxu0 0.0
  %1378 = vmatpush1.msra.mxu0 0.0
  %1379 = vmatprep.subr.mxu0 0.0
  %1380 = vmatpush1.msra.mxu0 0.0
  %1381 = vmatprep.subr.mxu0 0.0
  %1382 = vmatpush1.msra.mxu0 0.0
  %1383 = vmatprep.subr.mxu0 0.0
  %1384 = vmatpush1.msra.mxu0 0.0
  %1385 = vmatprep.subr.mxu0 0.0
  %1386 = vmatpush1.msra.mxu0 0.0
  %1387 = vmatprep.subr.mxu0 0.0
  %1388 = vmatpush1.msra.mxu0 0.0
  %1389 = vmatprep.subr.mxu0 0.0
  %1390 = vmatpush1.msra.mxu0 0.0
  %1391 = vmatprep.subr.mxu0 0.0
  %1392 = vmatpush1.msra.mxu0 0.0
  %1393 = vmatprep.subr.mxu0 0.0
  %1394 = vmatpush1.msra.mxu0 0.0
  %1395 = vmatprep.subr.mxu0 0.0
  %1396 = vmatpush1.msra.mxu0 0.0
  %1397 = vmatprep.mubr.f32.mxu0 0.0
  %1398 = vmatmul.mubr.f32.gmra.mrb[0].mxu0 %v1331
  %v1399 = vpop.f32.mrb[0].mxu0
  %v1400 = vadd.f32 %v1328, %v1399
  %v1401 = vpop.f32.mrb[0].mxu0
  %1402 = vdwg.mxu0
  %1404 = vset.pattern.permute.xlu0 0
  %1405 = vperm.xlu0 %1404, %v123
  %v1406 = vpop.permute.xlu0 %1405
  %1409 = vset.pattern.permute.xlu0 0
  %1410 = vperm.xlu0 %1409, %v124
  %v1411 = vpop.permute.xlu0 %1410
  %1414 = vset.pattern.permute.xlu0 0
  %1415 = vperm.xlu0 %1414, %v125
  %v1416 = vpop.permute.xlu0 %1415
  %1419 = vset.pattern.permute.xlu0 0
  %1420 = vperm.xlu0 %1419, %v126
  %v1421 = vpop.permute.xlu0 %1420
  %v1424 = vsel %vm311, %v119, 0
  %v1427 = vsel %vm311, %v120, 0
  %v1430 = vsel %vm311, %v121, 0
  %v1433 = vsel %vm311, %v122, 0
  %1435 = vmatprep.subr.mxu0 %v393
  %1436 = vmatpush1.msra.mxu0 %v391
  %1437 = vmatprep.subr.mxu0 %v399
  %1438 = vmatpush1.msra.mxu0 %v397
  %1439 = vmatprep.subr.mxu0 %v405
  %1440 = vmatpush1.msra.mxu0 %v403
  %1441 = vmatprep.subr.mxu0 %v411
  %1442 = vmatpush1.msra.mxu0 %v409
  %1443 = vmatprep.subr.mxu0 0.0
  %1444 = vmatpush1.msra.mxu0 0.0
  %1445 = vmatprep.subr.mxu0 0.0
  %1446 = vmatpush1.msra.mxu0 0.0
  %1447 = vmatprep.subr.mxu0 0.0
  %1448 = vmatpush1.msra.mxu0 0.0
  %1449 = vmatprep.subr.mxu0 0.0
  %1450 = vmatpush1.msra.mxu0 0.0
  %1451 = vmatprep.subr.mxu0 0.0
  %1452 = vmatpush1.msra.mxu0 0.0
  %1453 = vmatprep.subr.mxu0 0.0
  %1454 = vmatpush1.msra.mxu0 0.0
  %1455 = vmatprep.subr.mxu0 0.0
  %1456 = vmatpush1.msra.mxu0 0.0
  %1457 = vmatprep.subr.mxu0 0.0
  %1458 = vmatpush1.msra.mxu0 0.0
  %1459 = vmatprep.subr.mxu0 0.0
  %1460 = vmatpush1.msra.mxu0 0.0
  %1461 = vmatprep.subr.mxu0 0.0
  %1462 = vmatpush1.msra.mxu0 0.0
  %1463 = vmatprep.subr.mxu0 0.0
  %1464 = vmatpush1.msra.mxu0 0.0
  %1465 = vmatprep.subr.mxu0 0.0
  %1466 = vmatpush1.msra.mxu0 0.0
  %1467 = vmatprep.subr.mxu0 0.0
  %1468 = vmatpush1.msra.mxu0 0.0
  %1469 = vmatprep.subr.mxu0 0.0
  %1470 = vmatpush1.msra.mxu0 0.0
  %1471 = vmatprep.subr.mxu0 0.0
  %1472 = vmatpush1.msra.mxu0 0.0
  %1473 = vmatprep.subr.mxu0 0.0
  %1474 = vmatpush1.msra.mxu0 0.0
  %1475 = vmatprep.subr.mxu0 0.0
  %1476 = vmatpush1.msra.mxu0 0.0
  %1477 = vmatprep.subr.mxu0 0.0
  %1478 = vmatpush1.msra.mxu0 0.0
  %1479 = vmatprep.subr.mxu0 0.0
  %1480 = vmatpush1.msra.mxu0 0.0
  %1481 = vmatprep.subr.mxu0 0.0
  %1482 = vmatpush1.msra.mxu0 0.0
  %1483 = vmatprep.subr.mxu0 0.0
  %1484 = vmatpush1.msra.mxu0 0.0
  %1485 = vmatprep.subr.mxu0 0.0
  %1486 = vmatpush1.msra.mxu0 0.0
  %1487 = vmatprep.subr.mxu0 0.0
  %1488 = vmatpush1.msra.mxu0 0.0
  %1489 = vmatprep.subr.mxu0 0.0
  %1490 = vmatpush1.msra.mxu0 0.0
  %1491 = vmatprep.subr.mxu0 0.0
  %1492 = vmatpush1.msra.mxu0 0.0
  %1493 = vmatprep.subr.mxu0 0.0
  %1494 = vmatpush1.msra.mxu0 0.0
  %1495 = vmatprep.subr.mxu0 0.0
  %1496 = vmatpush1.msra.mxu0 0.0
  %1497 = vmatprep.subr.mxu0 0.0
  %1498 = vmatpush1.msra.mxu0 0.0
  %1499 = vmatprep.mubr.f32.mxu0 0.0
  %1500 = vmatmul.mubr.f32.gmra.mrb[0].mxu0 %v1424
  %v1501 = vpop.f32.mrb[0].mxu0
  %v1502 = vadd.f32 %v1406, %v1501
  %v1503 = vpop.f32.mrb[0].mxu0
  %v1504 = vadd.f32 %v1406, %v1503
  %1505 = vmatprep.mubr.f32.mxu0 0.0
  %1506 = vmatmul.mubr.f32.gmra.mrb[0].mxu0 %v1427
  %v1507 = vpop.f32.mrb[0].mxu0
  %v1508 = vadd.f32 %v1411, %v1507
  %v1509 = vpop.f32.mrb[0].mxu0
  %v1510 = vadd.f32 %v1411, %v1509
  %1511 = vmatprep.mubr.f32.mxu0 0.0
  %1512 = vmatmul.mubr.f32.gmra.mrb[0].mxu0 %v1430
  %v1513 = vpop.f32.mrb[0].mxu0
  %v1514 = vadd.f32 %v1416, %v1513
  %v1515 = vpop.f32.mrb[0].mxu0
  %v1516 = vadd.f32 %v1416, %v1515
  %1517 = vmatprep.mubr.f32.mxu0 0.0
  %1518 = vmatmul.mubr.f32.gmra.mrb[0].mxu0 %v1433
  %v1519 = vpop.f32.mrb[0].mxu0
  %v1520 = vadd.f32 %v1421, %v1519
  %v1521 = vpop.f32.mrb[0].mxu0
  %v1522 = vadd.f32 %v1421, %v1521
  %1523 = vdwg.mxu0
  %v1525 = vlaneseq
  %v1526 = vshrl.u32 %v1525, 7
  %v1527 = vsub.s32 0, %v1526
  %v1528 = vrot.slane %v131, %v1527
  %v1531 = vsel %vm311, %v1400, 0
  %1533 = vmatprep.subr.mxu0 0.0
  %1534 = vmatpush1.msra.mxu0 %v127
  %1535 = vmatprep.subr.mxu0 0.0
  %1536 = vmatpush1.msra.mxu0 %v128
  %1537 = vmatprep.subr.mxu0 0.0
  %1538 = vmatpush1.msra.mxu0 %v129
  %1539 = vmatprep.subr.mxu0 0.0
  %1540 = vmatpush1.msra.mxu0 %v130
  %1541 = vmatprep.subr.mxu0 0.0
  %1542 = vmatpush1.msra.mxu0 0.0
  %1543 = vmatprep.subr.mxu0 0.0
  %1544 = vmatpush1.msra.mxu0 0.0
  %1545 = vmatprep.subr.mxu0 0.0
  %1546 = vmatpush1.msra.mxu0 0.0
  %1547 = vmatprep.subr.mxu0 0.0
  %1548 = vmatpush1.msra.mxu0 0.0
  %1549 = vmatprep.subr.mxu0 0.0
  %1550 = vmatpush1.msra.mxu0 0.0
  %1551 = vmatprep.subr.mxu0 0.0
  %1552 = vmatpush1.msra.mxu0 0.0
  %1553 = vmatprep.subr.mxu0 0.0
  %1554 = vmatpush1.msra.mxu0 0.0
  %1555 = vmatprep.subr.mxu0 0.0
  %1556 = vmatpush1.msra.mxu0 0.0
  %1557 = vmatprep.subr.mxu0 0.0
  %1558 = vmatpush1.msra.mxu0 0.0
  %1559 = vmatprep.subr.mxu0 0.0
  %1560 = vmatpush1.msra.mxu0 0.0
  %1561 = vmatprep.subr.mxu0 0.0
  %1562 = vmatpush1.msra.mxu0 0.0
  %1563 = vmatprep.subr.mxu0 0.0
  %1564 = vmatpush1.msra.mxu0 0.0
  %1565 = vmatprep.subr.mxu0 0.0
  %1566 = vmatpush1.msra.mxu0 0.0
  %1567 = vmatprep.subr.mxu0 0.0
  %1568 = vmatpush1.msra.mxu0 0.0
  %1569 = vmatprep.subr.mxu0 0.0
  %1570 = vmatpush1.msra.mxu0 0.0
  %1571 = vmatprep.subr.mxu0 0.0
  %1572 = vmatpush1.msra.mxu0 0.0
  %1573 = vmatprep.subr.mxu0 0.0
  %1574 = vmatpush1.msra.mxu0 0.0
  %1575 = vmatprep.subr.mxu0 0.0
  %1576 = vmatpush1.msra.mxu0 0.0
  %1577 = vmatprep.subr.mxu0 0.0
  %1578 = vmatpush1.msra.mxu0 0.0
  %1579 = vmatprep.subr.mxu0 0.0
  %1580 = vmatpush1.msra.mxu0 0.0
  %1581 = vmatprep.subr.mxu0 0.0
  %1582 = vmatpush1.msra.mxu0 0.0
  %1583 = vmatprep.subr.mxu0 0.0
  %1584 = vmatpush1.msra.mxu0 0.0
  %1585 = vmatprep.subr.mxu0 0.0
  %1586 = vmatpush1.msra.mxu0 0.0
  %1587 = vmatprep.subr.mxu0 0.0
  %1588 = vmatpush1.msra.mxu0 0.0
  %1589 = vmatprep.subr.mxu0 0.0
  %1590 = vmatpush1.msra.mxu0 0.0
  %1591 = vmatprep.subr.mxu0 0.0
  %1592 = vmatpush1.msra.mxu0 0.0
  %1593 = vmatprep.subr.mxu0 0.0
  %1594 = vmatpush1.msra.mxu0 0.0
  %1595 = vmatprep.subr.mxu0 0.0
  %1596 = vmatpush1.msra.mxu0 0.0
  %1597 = vmatprep.mubr.f32.mxu0 0.0
  %1598 = vmatmul.mubr.f32.gmra.mrb[0].mxu0 %v1531
  %v1599 = vpop.f32.mrb[0].mxu0
  %v1600 = vadd.f32 %v1528, %v1599
  %v1601 = vpop.f32.mrb[0].mxu0
  %1602 = vdwg.mxu0
  %1604 = vset.pattern.permute.xlu0 0
  %1605 = vperm.xlu0 %1604, %v136
  %v1606 = vpop.permute.xlu0 %1605
  %1609 = vset.pattern.permute.xlu0 0
  %1610 = vperm.xlu0 %1609, %v137
  %v1611 = vpop.permute.xlu0 %1610
  %1614 = vset.pattern.permute.xlu0 0
  %1615 = vperm.xlu0 %1614, %v138
  %v1616 = vpop.permute.xlu0 %1615
  %1619 = vset.pattern.permute.xlu0 0
  %1620 = vperm.xlu0 %1619, %v139
  %v1621 = vpop.permute.xlu0 %1620
  %v1624 = vsel %vm311, %v132, 0
  %v1627 = vsel %vm311, %v133, 0
  %v1630 = vsel %vm311, %v134, 0
  %v1633 = vsel %vm311, %v135, 0
  %1635 = vmatprep.subr.mxu0 0.0
  %1636 = vmatpush1.xpose.msra.mxu0 %v1531
  %1637 = vmatprep.subr.mxu0 0.0
  %1638 = vmatpush1.xpose.msra.mxu0 0.0
  %1639 = vmatprep.subr.mxu0 0.0
  %1640 = vmatpush1.xpose.msra.mxu0 0.0
  %1641 = vmatprep.subr.mxu0 0.0
  %1642 = vmatpush1.xpose.msra.mxu0 0.0
  %1643 = vmatprep.subr.mxu0 0.0
  %1644 = vmatpush1.xpose.msra.mxu0 0.0
  %1645 = vmatprep.subr.mxu0 0.0
  %1646 = vmatpush1.xpose.msra.mxu0 0.0
  %1647 = vmatprep.subr.mxu0 0.0
  %1648 = vmatpush1.xpose.msra.mxu0 0.0
  %1649 = vmatprep.subr.mxu0 0.0
  %1650 = vmatpush1.xpose.msra.mxu0 0.0
  %1651 = vmatprep.subr.mxu0 0.0
  %1652 = vmatpush1.xpose.msra.mxu0 0.0
  %1653 = vmatprep.subr.mxu0 0.0
  %1654 = vmatpush1.xpose.msra.mxu0 0.0
  %1655 = vmatprep.subr.mxu0 0.0
  %1656 = vmatpush1.xpose.msra.mxu0 0.0
  %1657 = vmatprep.subr.mxu0 0.0
  %1658 = vmatpush1.xpose.msra.mxu0 0.0
  %1659 = vmatprep.subr.mxu0 0.0
  %1660 = vmatpush1.xpose.msra.mxu0 0.0
  %1661 = vmatprep.subr.mxu0 0.0
  %1662 = vmatpush1.xpose.msra.mxu0 0.0
  %1663 = vmatprep.subr.mxu0 0.0
  %1664 = vmatpush1.xpose.msra.mxu0 0.0
  %1665 = vmatprep.subr.mxu0 0.0
  %1666 = vmatpush1.xpose.msra.mxu0 0.0
  %1667 = vmatprep.subr.mxu0 0.0
  %1668 = vmatpush1.xpose.msra.mxu0 0.0
  %1669 = vmatprep.subr.mxu0 0.0
  %1670 = vmatpush1.xpose.msra.mxu0 0.0
  %1671 = vmatprep.subr.mxu0 0.0
  %1672 = vmatpush1.xpose.msra.mxu0 0.0
  %1673 = vmatprep.subr.mxu0 0.0
  %1674 = vmatpush1.xpose.msra.mxu0 0.0
  %1675 = vmatprep.subr.mxu0 0.0
  %1676 = vmatpush1.xpose.msra.mxu0 0.0
  %1677 = vmatprep.subr.mxu0 0.0
  %1678 = vmatpush1.xpose.msra.mxu0 0.0
  %1679 = vmatprep.subr.mxu0 0.0
  %1680 = vmatpush1.xpose.msra.mxu0 0.0
  %1681 = vmatprep.subr.mxu0 0.0
  %1682 = vmatpush1.xpose.msra.mxu0 0.0
  %1683 = vmatprep.subr.mxu0 0.0
  %1684 = vmatpush1.xpose.msra.mxu0 0.0
  %1685 = vmatprep.subr.mxu0 0.0
  %1686 = vmatpush1.xpose.msra.mxu0 0.0
  %1687 = vmatprep.subr.mxu0 0.0
  %1688 = vmatpush1.xpose.msra.mxu0 0.0
  %1689 = vmatprep.subr.mxu0 0.0
  %1690 = vmatpush1.xpose.msra.mxu0 0.0
  %1691 = vmatprep.subr.mxu0 0.0
  %1692 = vmatpush1.xpose.msra.mxu0 0.0
  %1693 = vmatprep.subr.mxu0 0.0
  %1694 = vmatpush1.xpose.msra.mxu0 0.0
  %1695 = vmatprep.subr.mxu0 0.0
  %1696 = vmatpush1.xpose.msra.mxu0 0.0
  %1697 = vmatprep.subr.mxu0 0.0
  %1698 = vmatpush1.xpose.msra.mxu0 0.0
  %1699 = vmatprep.mubr.f32.mxu0 0.0
  %1700 = vmatmul.mubr.f32.gmra.mrb[0].mxu0 %v1624
  %v1701 = vpop.f32.mrb[0].mxu0
  %v1702 = vadd.f32 %v1606, %v1701
  %v1703 = vpop.f32.mrb[0].mxu0
  %1704 = vmatprep.mubr.f32.mxu0 0.0
  %1705 = vmatmul.mubr.f32.gmra.mrb[0].mxu0 %v1627
  %v1706 = vpop.f32.mrb[0].mxu0
  %v1707 = vadd.f32 %v1611, %v1706
  %v1708 = vpop.f32.mrb[0].mxu0
  %1709 = vmatprep.mubr.f32.mxu0 0.0
  %1710 = vmatmul.mubr.f32.gmra.mrb[0].mxu0 %v1630
  %v1711 = vpop.f32.mrb[0].mxu0
  %v1712 = vadd.f32 %v1616, %v1711
  %v1713 = vpop.f32.mrb[0].mxu0
  %1714 = vmatprep.mubr.f32.mxu0 0.0
  %1715 = vmatmul.mubr.f32.gmra.mrb[0].mxu0 %v1633
  %v1716 = vpop.f32.mrb[0].mxu0
  %v1717 = vadd.f32 %v1621, %v1716
  %v1718 = vpop.f32.mrb[0].mxu0
  %1719 = vdwg.mxu0
  %1721 = vset.pattern.permute.xlu0 0
  %1722 = vperm.xlu0 %1721, %v153
  %v1723 = vpop.permute.xlu0 %1722
  %v1726 = vsel %vm650, %v1600, 0
  %1728 = vmatprep.subr.mxu0 %v1504
  %1729 = vmatpush1.msra.mxu0 %v1502
  %1730 = vmatprep.subr.mxu0 0.0
  %1731 = vmatpush1.msra.mxu0 0.0
  %1732 = vmatprep.subr.mxu0 0.0
  %1733 = vmatpush1.msra.mxu0 0.0
  %1734 = vmatprep.subr.mxu0 0.0
  %1735 = vmatpush1.msra.mxu0 0.0
  %1736 = vmatprep.subr.mxu0 0.0
  %1737 = vmatpush1.msra.mxu0 0.0
  %1738 = vmatprep.subr.mxu0 0.0
  %1739 = vmatpush1.msra.mxu0 0.0
  %1740 = vmatprep.subr.mxu0 0.0
  %1741 = vmatpush1.msra.mxu0 0.0
  %1742 = vmatprep.subr.mxu0 0.0
  %1743 = vmatpush1.msra.mxu0 0.0
  %1744 = vmatprep.subr.mxu0 0.0
  %1745 = vmatpush1.msra.mxu0 0.0
  %1746 = vmatprep.subr.mxu0 0.0
  %1747 = vmatpush1.msra.mxu0 0.0
  %1748 = vmatprep.subr.mxu0 0.0
  %1749 = vmatpush1.msra.mxu0 0.0
  %1750 = vmatprep.subr.mxu0 0.0
  %1751 = vmatpush1.msra.mxu0 0.0
  %1752 = vmatprep.subr.mxu0 0.0
  %1753 = vmatpush1.msra.mxu0 0.0
  %1754 = vmatprep.subr.mxu0 0.0
  %1755 = vmatpush1.msra.mxu0 0.0
  %1756 = vmatprep.subr.mxu0 0.0
  %1757 = vmatpush1.msra.mxu0 0.0
  %1758 = vmatprep.subr.mxu0 0.0
  %1759 = vmatpush1.msra.mxu0 0.0
  %1760 = vmatprep.subr.mxu0 0.0
  %1761 = vmatpush1.msra.mxu0 0.0
  %1762 = vmatprep.subr.mxu0 0.0
  %1763 = vmatpush1.msra.mxu0 0.0
  %1764 = vmatprep.subr.mxu0 0.0
  %1765 = vmatpush1.msra.mxu0 0.0
  %1766 = vmatprep.subr.mxu0 0.0
  %1767 = vmatpush1.msra.mxu0 0.0
  %1768 = vmatprep.subr.mxu0 0.0
  %1769 = vmatpush1.msra.mxu0 0.0
  %1770 = vmatprep.subr.mxu0 0.0
  %1771 = vmatpush1.msra.mxu0 0.0
  %1772 = vmatprep.subr.mxu0 0.0
  %1773 = vmatpush1.msra.mxu0 0.0
  %1774 = vmatprep.subr.mxu0 0.0
  %1775 = vmatpush1.msra.mxu0 0.0
  %1776 = vmatprep.subr.mxu0 0.0
  %1777 = vmatpush1.msra.mxu0 0.0
  %1778 = vmatprep.subr.mxu0 0.0
  %1779 = vmatpush1.msra.mxu0 0.0
  %1780 = vmatprep.subr.mxu0 0.0
  %1781 = vmatpush1.msra.mxu0 0.0
  %1782 = vmatprep.subr.mxu0 0.0
  %1783 = vmatpush1.msra.mxu0 0.0
  %1784 = vmatprep.subr.mxu0 0.0
  %1785 = vmatpush1.msra.mxu0 0.0
  %1786 = vmatprep.subr.mxu0 0.0
  %1787 = vmatpush1.msra.mxu0 0.0
  %1788 = vmatprep.subr.mxu0 0.0
  %1789 = vmatpush1.msra.mxu0 0.0
  %1790 = vmatprep.subr.mxu0 0.0
  %1791 = vmatpush1.msra.mxu0 0.0
  %1792 = vmatprep.mubr.f32.mxu0 0.0
  %1793 = vmatmul.mubr.f32.gmra.mrb[0].mxu0 %v1726
  %v1794 = vpop.f32.mrb[0].mxu0
  %v1795 = vadd.f32 %v1723, %v1794
  %v1796 = vpop.f32.mrb[0].mxu0
  %v1797 = vadd.f32 %v1723, %v1796
  %1798 = vdwg.mxu0
  %v1799 = vrot.slane %v1795, 4
  %v1800 = vmax.f32 %v1795, %v1799
  %v1801 = vrot.slane %v1800, 2
  %v1802 = vmax.f32 %v1800, %v1801
  %v1803 = vrot.slane %v1802, 1
  %v1804 = vmax.f32 %v1802, %v1803
  %v1805 = vrot.slane %v1797, 4
  %v1806 = vmax.f32 %v1797, %v1805
  %v1807 = vrot.slane %v1806, 2
  %v1808 = vmax.f32 %v1806, %v1807
  %v1809 = vrot.slane %v1808, 1
  %v1810 = vmax.f32 %v1808, %v1809
  %v1811 = vsub.f32 %v1795, %v1804
  %v1812 = vsub.f32 %v1797, %v1810
  %v1813 = vmul.f32 %v1811, 1.442695
  %v1814 = vpow.pop %v1813
  %v1815 = vmul.f32 %v1812, 1.442695
  %v1816 = vpow.pop %v1815
  %v1817 = vrot.slane %v1814, 4
  %v1818 = vadd.f32 %v1814, %v1817
  %v1819 = vrot.slane %v1818, 2
  %v1820 = vadd.f32 %v1818, %v1819
  %v1821 = vrot.slane %v1820, 1
  %v1822 = vadd.f32 %v1820, %v1821
  %v1823 = vrot.slane %v1816, 4
  %v1824 = vadd.f32 %v1816, %v1823
  %v1825 = vrot.slane %v1824, 2
  %v1826 = vadd.f32 %v1824, %v1825
  %v1827 = vrot.slane %v1826, 1
  %v1828 = vadd.f32 %v1826, %v1827
  %v1829 = vrcp.pop %v1822
  %v1830 = vrcp.pop %v1828
  %v1831 = vmul.f32 %v1814, %v1829
  %v1832 = vmul.f32 %v1816, %v1830
  %v1834 = vsel %vm650, %v1702, 0
  %1836 = vmatprep.subr.mxu0 %v1832
  %1837 = vmatpush1.msra.mxu0 %v1831
  %1838 = vmatprep.subr.mxu0 0.0
  %1839 = vmatpush1.msra.mxu0 0.0
  %1840 = vmatprep.subr.mxu0 0.0
  %1841 = vmatpush1.msra.mxu0 0.0
  %1842 = vmatprep.subr.mxu0 0.0
  %1843 = vmatpush1.msra.mxu0 0.0
  %1844 = vmatprep.subr.mxu0 0.0
  %1845 = vmatpush1.msra.mxu0 0.0
  %1846 = vmatprep.subr.mxu0 0.0
  %1847 = vmatpush1.msra.mxu0 0.0
  %1848 = vmatprep.subr.mxu0 0.0
  %1849 = vmatpush1.msra.mxu0 0.0
  %1850 = vmatprep.subr.mxu0 0.0
  %1851 = vmatpush1.msra.mxu0 0.0
  %1852 = vmatprep.subr.mxu0 0.0
  %1853 = vmatpush1.msra.mxu0 0.0
  %1854 = vmatprep.subr.mxu0 0.0
  %1855 = vmatpush1.msra.mxu0 0.0
  %1856 = vmatprep.subr.mxu0 0.0
  %1857 = vmatpush1.msra.mxu0 0.0
  %1858 = vmatprep.subr.mxu0 0.0
  %1859 = vmatpush1.msra.mxu0 0.0
  %1860 = vmatprep.subr.mxu0 0.0
  %1861 = vmatpush1.msra.mxu0 0.0
  %1862 = vmatprep.subr.mxu0 0.0
  %1863 = vmatpush1.msra.mxu0 0.0
  %1864 = vmatprep.subr.mxu0 0.0
  %1865 = vmatpush1.msra.mxu0 0.0
  %1866 = vmatprep.subr.mxu0 0.0
  %1867 = vmatpush1.msra.mxu0 0.0
  %1868 = vmatprep.subr.mxu0 0.0
  %1869 = vmatpush1.msra.mxu0 0.0
  %1870 = vmatprep.subr.mxu0 0.0
  %1871 = vmatpush1.msra.mxu0 0.0
  %1872 = vmatprep.subr.mxu0 0.0
  %1873 = vmatpush1.msra.mxu0 0.0
  %1874 = vmatprep.subr.mxu0 0.0
  %1875 = vmatpush1.msra.mxu0 0.0
  %1876 = vmatprep.subr.mxu0 0.0
  %1877 = vmatpush1.msra.mxu0 0.0
  %1878 = vmatprep.subr.mxu0 0.0
  %1879 = vmatpush1.msra.mxu0 0.0
  %1880 = vmatprep.subr.mxu0 0.0
  %1881 = vmatpush1.msra.mxu0 0.0
  %1882 = vmatprep.subr.mxu0 0.0
  %1883 = vmatpush1.msra.mxu0 0.0
  %1884 = vmatprep.subr.mxu0 0.0
  %1885 = vmatpush1.msra.mxu0 0.0
  %1886 = vmatprep.subr.mxu0 0.0
  %1887 = vmatpush1.msra.mxu0 0.0
  %1888 = vmatprep.subr.mxu0 0.0
  %1889 = vmatpush1.msra.mxu0 0.0
  %1890 = vmatprep.subr.mxu0 0.0
  %1891 = vmatpush1.msra.mxu0 0.0
  %1892 = vmatprep.subr.mxu0 0.0
  %1893 = vmatpush1.msra.mxu0 0.0
  %1894 = vmatprep.subr.mxu0 0.0
  %1895 = vmatpush1.msra.mxu0 0.0
  %1896 = vmatprep.subr.mxu0 0.0
  %1897 = vmatpush1.msra.mxu0 0.0
  %1898 = vmatprep.subr.mxu0 0.0
  %1899 = vmatpush1.msra.mxu0 0.0
  %1900 = vmatprep.mubr.f32.mxu0 0.0
  %1901 = vmatmul.mubr.f32.gmra.mrb[0].mxu0 %v1834
  %v1902 = vpop.f32.mrb[0].mxu0
  %v1903 = vadd.f32 0.0, %v1902
  %v1904 = vpop.f32.mrb[0].mxu0
  %v1905 = vadd.f32 0.0, %v1904
  %1906 = vdwg.mxu0
  %1907 = vrot.lane.b32.xlu0 %v1600, 120
  %v1908 = vpop.permute.xlu0 %1907
  %v1909 = vsel %vm650, %v1908, 0
  %1911 = vmatprep.subr.mxu0 %v1510
  %1912 = vmatpush1.msra.mxu0 %v1508
  %1913 = vmatprep.subr.mxu0 0.0
  %1914 = vmatpush1.msra.mxu0 0.0
  %1915 = vmatprep.subr.mxu0 0.0
  %1916 = vmatpush1.msra.mxu0 0.0
  %1917 = vmatprep.subr.mxu0 0.0
  %1918 = vmatpush1.msra.mxu0 0.0
  %1919 = vmatprep.subr.mxu0 0.0
  %1920 = vmatpush1.msra.mxu0 0.0
  %1921 = vmatprep.subr.mxu0 0.0
  %1922 = vmatpush1.msra.mxu0 0.0
  %1923 = vmatprep.subr.mxu0 0.0
  %1924 = vmatpush1.msra.mxu0 0.0
  %1925 = vmatprep.subr.mxu0 0.0
  %1926 = vmatpush1.msra.mxu0 0.0
  %1927 = vmatprep.subr.mxu0 0.0
  %1928 = vmatpush1.msra.mxu0 0.0
  %1929 = vmatprep.subr.mxu0 0.0
  %1930 = vmatpush1.msra.mxu0 0.0
  %1931 = vmatprep.subr.mxu0 0.0
  %1932 = vmatpush1.msra.mxu0 0.0
  %1933 = vmatprep.subr.mxu0 0.0
  %1934 = vmatpush1.msra.mxu0 0.0
  %1935 = vmatprep.subr.mxu0 0.0
  %1936 = vmatpush1.msra.mxu0 0.0
  %1937 = vmatprep.subr.mxu0 0.0
  %1938 = vmatpush1.msra.mxu0 0.0
  %1939 = vmatprep.subr.mxu0 0.0
  %1940 = vmatpush1.msra.mxu0 0.0
  %1941 = vmatprep.subr.mxu0 0.0
  %1942 = vmatpush1.msra.mxu0 0.0
  %1943 = vmatprep.subr.mxu0 0.0
  %1944 = vmatpush1.msra.mxu0 0.0
  %1945 = vmatprep.subr.mxu0 0.0
  %1946 = vmatpush1.msra.mxu0 0.0
  %1947 = vmatprep.subr.mxu0 0.0
  %1948 = vmatpush1.msra.mxu0 0.0
  %1949 = vmatprep.subr.mxu0 0.0
  %1950 = vmatpush1.msra.mxu0 0.0
  %1951 = vmatprep.subr.mxu0 0.0
  %1952 = vmatpush1.msra.mxu0 0.0
  %1953 = vmatprep.subr.mxu0 0.0
  %1954 = vmatpush1.msra.mxu0 0.0
  %1955 = vmatprep.subr.mxu0 0.0
  %1956 = vmatpush1.msra.mxu0 0.0
  %1957 = vmatprep.subr.mxu0 0.0
  %1958 = vmatpush1.msra.mxu0 0.0
  %1959 = vmatprep.subr.mxu0 0.0
  %1960 = vmatpush1.msra.mxu0 0.0
  %1961 = vmatprep.subr.mxu0 0.0
  %1962 = vmatpush1.msra.mxu0 0.0
  %1963 = vmatprep.subr.mxu0 0.0
  %1964 = vmatpush1.msra.mxu0 0.0
  %1965 = vmatprep.subr.mxu0 0.0
  %1966 = vmatpush1.msra.mxu0 0.0
  %1967 = vmatprep.subr.mxu0 0.0
  %1968 = vmatpush1.msra.mxu0 0.0
  %1969 = vmatprep.subr.mxu0 0.0
  %1970 = vmatpush1.msra.mxu0 0.0
  %1971 = vmatprep.subr.mxu0 0.0
  %1972 = vmatpush1.msra.mxu0 0.0
  %1973 = vmatprep.subr.mxu0 0.0
  %1974 = vmatpush1.msra.mxu0 0.0
  %1975 = vmatprep.mubr.f32.mxu0 0.0
  %1976 = vmatmul.mubr.f32.gmra.mrb[0].mxu0 %v1909
  %v1977 = vpop.f32.mrb[0].mxu0
  %v1978 = vadd.f32 %v1723, %v1977
  %v1979 = vpop.f32.mrb[0].mxu0
  %v1980 = vadd.f32 %v1723, %v1979
  %1981 = vdwg.mxu0
  %v1982 = vrot.slane %v1978, 4
  %v1983 = vmax.f32 %v1978, %v1982
  %v1984 = vrot.slane %v1983, 2
  %v1985 = vmax.f32 %v1983, %v1984
  %v1986 = vrot.slane %v1985, 1
  %v1987 = vmax.f32 %v1985, %v1986
  %v1988 = vrot.slane %v1980, 4
  %v1989 = vmax.f32 %v1980, %v1988
  %v1990 = vrot.slane %v1989, 2
  %v1991 = vmax.f32 %v1989, %v1990
  %v1992 = vrot.slane %v1991, 1
  %v1993 = vmax.f32 %v1991, %v1992
  %v1994 = vsub.f32 %v1978, %v1987
  %v1995 = vsub.f32 %v1980, %v1993
  %v1996 = vmul.f32 %v1994, 1.442695
  %v1997 = vpow.pop %v1996
  %v1998 = vmul.f32 %v1995, 1.442695
  %v1999 = vpow.pop %v1998
  %v2000 = vrot.slane %v1997, 4
  %v2001 = vadd.f32 %v1997, %v2000
  %v2002 = vrot.slane %v2001, 2
  %v2003 = vadd.f32 %v2001, %v2002
  %v2004 = vrot.slane %v2003, 1
  %v2005 = vadd.f32 %v2003, %v2004
  %v2006 = vrot.slane %v1999, 4
  %v2007 = vadd.f32 %v1999, %v2006
  %v2008 = vrot.slane %v2007, 2
  %v2009 = vadd.f32 %v2007, %v2008
  %v2010 = vrot.slane %v2009, 1
  %v2011 = vadd.f32 %v2009, %v2010
  %v2012 = vrcp.pop %v2005
  %v2013 = vrcp.pop %v2011
  %v2014 = vmul.f32 %v1997, %v2012
  %v2015 = vmul.f32 %v1999, %v2013
  %v2017 = vsel %vm650, %v1707, 0
  %2019 = vmatprep.subr.mxu0 %v2015
  %2020 = vmatpush1.msra.mxu0 %v2014
  %2021 = vmatprep.subr.mxu0 0.0
  %2022 = vmatpush1.msra.mxu0 0.0
  %2023 = vmatprep.subr.mxu0 0.0
  %2024 = vmatpush1.msra.mxu0 0.0
  %2025 = vmatprep.subr.mxu0 0.0
  %2026 = vmatpush1.msra.mxu0 0.0
  %2027 = vmatprep.subr.mxu0 0.0
  %2028 = vmatpush1.msra.mxu0 0.0
  %2029 = vmatprep.subr.mxu0 0.0
  %2030 = vmatpush1.msra.mxu0 0.0
  %2031 = vmatprep.subr.mxu0 0.0
  %2032 = vmatpush1.msra.mxu0 0.0
  %2033 = vmatprep.subr.mxu0 0.0
  %2034 = vmatpush1.msra.mxu0 0.0
  %2035 = vmatprep.subr.mxu0 0.0
  %2036 = vmatpush1.msra.mxu0 0.0
  %2037 = vmatprep.subr.mxu0 0.0
  %2038 = vmatpush1.msra.mxu0 0.0
  %2039 = vmatprep.subr.mxu0 0.0
  %2040 = vmatpush1.msra.mxu0 0.0
  %2041 = vmatprep.subr.mxu0 0.0
  %2042 = vmatpush1.msra.mxu0 0.0
  %2043 = vmatprep.subr.mxu0 0.0
  %2044 = vmatpush1.msra.mxu0 0.0
  %2045 = vmatprep.subr.mxu0 0.0
  %2046 = vmatpush1.msra.mxu0 0.0
  %2047 = vmatprep.subr.mxu0 0.0
  %2048 = vmatpush1.msra.mxu0 0.0
  %2049 = vmatprep.subr.mxu0 0.0
  %2050 = vmatpush1.msra.mxu0 0.0
  %2051 = vmatprep.subr.mxu0 0.0
  %2052 = vmatpush1.msra.mxu0 0.0
  %2053 = vmatprep.subr.mxu0 0.0
  %2054 = vmatpush1.msra.mxu0 0.0
  %2055 = vmatprep.subr.mxu0 0.0
  %2056 = vmatpush1.msra.mxu0 0.0
  %2057 = vmatprep.subr.mxu0 0.0
  %2058 = vmatpush1.msra.mxu0 0.0
  %2059 = vmatprep.subr.mxu0 0.0
  %2060 = vmatpush1.msra.mxu0 0.0
  %2061 = vmatprep.subr.mxu0 0.0
  %2062 = vmatpush1.msra.mxu0 0.0
  %2063 = vmatprep.subr.mxu0 0.0
  %2064 = vmatpush1.msra.mxu0 0.0
  %2065 = vmatprep.subr.mxu0 0.0
  %2066 = vmatpush1.msra.mxu0 0.0
  %2067 = vmatprep.subr.mxu0 0.0
  %2068 = vmatpush1.msra.mxu0 0.0
  %2069 = vmatprep.subr.mxu0 0.0
  %2070 = vmatpush1.msra.mxu0 0.0
  %2071 = vmatprep.subr.mxu0 0.0
  %2072 = vmatpush1.msra.mxu0 0.0
  %2073 = vmatprep.subr.mxu0 0.0
  %2074 = vmatpush1.msra.mxu0 0.0
  %2075 = vmatprep.subr.mxu0 0.0
  %2076 = vmatpush1.msra.mxu0 0.0
  %2077 = vmatprep.subr.mxu0 0.0
  %2078 = vmatpush1.msra.mxu0 0.0
  %2079 = vmatprep.subr.mxu0 0.0
  %2080 = vmatpush1.msra.mxu0 0.0
  %2081 = vmatprep.subr.mxu0 0.0
  %2082 = vmatpush1.msra.mxu0 0.0
  %2083 = vmatprep.mubr.f32.mxu0 0.0
  %2084 = vmatmul.mubr.f32.gmra.mrb[0].mxu0 %v2017
  %v2085 = vpop.f32.mrb[0].mxu0
  %v2086 = vadd.f32 0.0, %v2085
  %v2087 = vpop.f32.mrb[0].mxu0
  %v2088 = vadd.f32 0.0, %v2087
  %2089 = vdwg.mxu0
  %2090 = vrot.lane.b32.xlu0 %v1600, 112
  %v2091 = vpop.permute.xlu0 %2090
  %v2092 = vsel %vm650, %v2091, 0
  %2094 = vmatprep.subr.mxu0 %v1516
  %2095 = vmatpush1.msra.mxu0 %v1514
  %2096 = vmatprep.subr.mxu0 0.0
  %2097 = vmatpush1.msra.mxu0 0.0
  %2098 = vmatprep.subr.mxu0 0.0
  %2099 = vmatpush1.msra.mxu0 0.0
  %2100 = vmatprep.subr.mxu0 0.0
  %2101 = vmatpush1.msra.mxu0 0.0
  %2102 = vmatprep.subr.mxu0 0.0
  %2103 = vmatpush1.msra.mxu0 0.0
  %2104 = vmatprep.subr.mxu0 0.0
  %2105 = vmatpush1.msra.mxu0 0.0
  %2106 = vmatprep.subr.mxu0 0.0
  %2107 = vmatpush1.msra.mxu0 0.0
  %2108 = vmatprep.subr.mxu0 0.0
  %2109 = vmatpush1.msra.mxu0 0.0
  %2110 = vmatprep.subr.mxu0 0.0
  %2111 = vmatpush1.msra.mxu0 0.0
  %2112 = vmatprep.subr.mxu0 0.0
  %2113 = vmatpush1.msra.mxu0 0.0
  %2114 = vmatprep.subr.mxu0 0.0
  %2115 = vmatpush1.msra.mxu0 0.0
  %2116 = vmatprep.subr.mxu0 0.0
  %2117 = vmatpush1.msra.mxu0 0.0
  %2118 = vmatprep.subr.mxu0 0.0
  %2119 = vmatpush1.msra.mxu0 0.0
  %2120 = vmatprep.subr.mxu0 0.0
  %2121 = vmatpush1.msra.mxu0 0.0
  %2122 = vmatprep.subr.mxu0 0.0
  %2123 = vmatpush1.msra.mxu0 0.0
  %2124 = vmatprep.subr.mxu0 0.0
  %2125 = vmatpush1.msra.mxu0 0.0
  %2126 = vmatprep.subr.mxu0 0.0
  %2127 = vmatpush1.msra.mxu0 0.0
  %2128 = vmatprep.subr.mxu0 0.0
  %2129 = vmatpush1.msra.mxu0 0.0
  %2130 = vmatprep.subr.mxu0 0.0
  %2131 = vmatpush1.msra.mxu0 0.0
  %2132 = vmatprep.subr.mxu0 0.0
  %2133 = vmatpush1.msra.mxu0 0.0
  %2134 = vmatprep.subr.mxu0 0.0
  %2135 = vmatpush1.msra.mxu0 0.0
  %2136 = vmatprep.subr.mxu0 0.0
  %2137 = vmatpush1.msra.mxu0 0.0
  %2138 = vmatprep.subr.mxu0 0.0
  %2139 = vmatpush1.msra.mxu0 0.0
  %2140 = vmatprep.subr.mxu0 0.0
  %2141 = vmatpush1.msra.mxu0 0.0
  %2142 = vmatprep.subr.mxu0 0.0
  %2143 = vmatpush1.msra.mxu0 0.0
  %2144 = vmatprep.subr.mxu0 0.0
  %2145 = vmatpush1.msra.mxu0 0.0
  %2146 = vmatprep.subr.mxu0 0.0
  %2147 = vmatpush1.msra.mxu0 0.0
  %2148 = vmatprep.subr.mxu0 0.0
  %2149 = vmatpush1.msra.mxu0 0.0
  %2150 = vmatprep.subr.mxu0 0.0
  %2151 = vmatpush1.msra.mxu0 0.0
  %2152 = vmatprep.subr.mxu0 0.0
  %2153 = vmatpush1.msra.mxu0 0.0
  %2154 = vmatprep.subr.mxu0 0.0
  %2155 = vmatpush1.msra.mxu0 0.0
  %2156 = vmatprep.subr.mxu0 0.0
  %2157 = vmatpush1.msra.mxu0 0.0
  %2158 = vmatprep.mubr.f32.mxu0 0.0
  %2159 = vmatmul.mubr.f32.gmra.mrb[0].mxu0 %v2092
  %v2160 = vpop.f32.mrb[0].mxu0
  %v2161 = vadd.f32 %v1723, %v2160
  %v2162 = vpop.f32.mrb[0].mxu0
  %v2163 = vadd.f32 %v1723, %v2162
  %2164 = vdwg.mxu0
  %v2165 = vrot.slane %v2161, 4
  %v2166 = vmax.f32 %v2161, %v2165
  %v2167 = vrot.slane %v2166, 2
  %v2168 = vmax.f32 %v2166, %v2167
  %v2169 = vrot.slane %v2168, 1
  %v2170 = vmax.f32 %v2168, %v2169
  %v2171 = vrot.slane %v2163, 4
  %v2172 = vmax.f32 %v2163, %v2171
  %v2173 = vrot.slane %v2172, 2
  %v2174 = vmax.f32 %v2172, %v2173
  %v2175 = vrot.slane %v2174, 1
  %v2176 = vmax.f32 %v2174, %v2175
  %v2177 = vsub.f32 %v2161, %v2170
  %v2178 = vsub.f32 %v2163, %v2176
  %v2179 = vmul.f32 %v2177, 1.442695
  %v2180 = vpow.pop %v2179
  %v2181 = vmul.f32 %v2178, 1.442695
  %v2182 = vpow.pop %v2181
  %v2183 = vrot.slane %v2180, 4
  %v2184 = vadd.f32 %v2180, %v2183
  %v2185 = vrot.slane %v2184, 2
  %v2186 = vadd.f32 %v2184, %v2185
  %v2187 = vrot.slane %v2186, 1
  %v2188 = vadd.f32 %v2186, %v2187
  %v2189 = vrot.slane %v2182, 4
  %v2190 = vadd.f32 %v2182, %v2189
  %v2191 = vrot.slane %v2190, 2
  %v2192 = vadd.f32 %v2190, %v2191
  %v2193 = vrot.slane %v2192, 1
  %v2194 = vadd.f32 %v2192, %v2193
  %v2195 = vrcp.pop %v2188
  %v2196 = vrcp.pop %v2194
  %v2197 = vmul.f32 %v2180, %v2195
  %v2198 = vmul.f32 %v2182, %v2196
  %v2200 = vsel %vm650, %v1712, 0
  %2202 = vmatprep.subr.mxu0 %v2198
  %2203 = vmatpush1.msra.mxu0 %v2197
  %2204 = vmatprep.subr.mxu0 0.0
  %2205 = vmatpush1.msra.mxu0 0.0
  %2206 = vmatprep.subr.mxu0 0.0
  %2207 = vmatpush1.msra.mxu0 0.0
  %2208 = vmatprep.subr.mxu0 0.0
  %2209 = vmatpush1.msra.mxu0 0.0
  %2210 = vmatprep.subr.mxu0 0.0
  %2211 = vmatpush1.msra.mxu0 0.0
  %2212 = vmatprep.subr.mxu0 0.0
  %2213 = vmatpush1.msra.mxu0 0.0
  %2214 = vmatprep.subr.mxu0 0.0
  %2215 = vmatpush1.msra.mxu0 0.0
  %2216 = vmatprep.subr.mxu0 0.0
  %2217 = vmatpush1.msra.mxu0 0.0
  %2218 = vmatprep.subr.mxu0 0.0
  %2219 = vmatpush1.msra.mxu0 0.0
  %2220 = vmatprep.subr.mxu0 0.0
  %2221 = vmatpush1.msra.mxu0 0.0
  %2222 = vmatprep.subr.mxu0 0.0
  %2223 = vmatpush1.msra.mxu0 0.0
  %2224 = vmatprep.subr.mxu0 0.0
  %2225 = vmatpush1.msra.mxu0 0.0
  %2226 = vmatprep.subr.mxu0 0.0
  %2227 = vmatpush1.msra.mxu0 0.0
  %2228 = vmatprep.subr.mxu0 0.0
  %2229 = vmatpush1.msra.mxu0 0.0
  %2230 = vmatprep.subr.mxu0 0.0
  %2231 = vmatpush1.msra.mxu0 0.0
  %2232 = vmatprep.subr.mxu0 0.0
  %2233 = vmatpush1.msra.mxu0 0.0
  %2234 = vmatprep.subr.mxu0 0.0
  %2235 = vmatpush1.msra.mxu0 0.0
  %2236 = vmatprep.subr.mxu0 0.0
  %2237 = vmatpush1.msra.mxu0 0.0
  %2238 = vmatprep.subr.mxu0 0.0
  %2239 = vmatpush1.msra.mxu0 0.0
  %2240 = vmatprep.subr.mxu0 0.0
  %2241 = vmatpush1.msra.mxu0 0.0
  %2242 = vmatprep.subr.mxu0 0.0
  %2243 = vmatpush1.msra.mxu0 0.0
  %2244 = vmatprep.subr.mxu0 0.0
  %2245 = vmatpush1.msra.mxu0 0.0
  %2246 = vmatprep.subr.mxu0 0.0
  %2247 = vmatpush1.msra.mxu0 0.0
  %2248 = vmatprep.subr.mxu0 0.0
  %2249 = vmatpush1.msra.mxu0 0.0
  %2250 = vmatprep.subr.mxu0 0.0
  %2251 = vmatpush1.msra.mxu0 0.0
  %2252 = vmatprep.subr.mxu0 0.0
  %2253 = vmatpush1.msra.mxu0 0.0
  %2254 = vmatprep.subr.mxu0 0.0
  %2255 = vmatpush1.msra.mxu0 0.0
  %2256 = vmatprep.subr.mxu0 0.0
  %2257 = vmatpush1.msra.mxu0 0.0
  %2258 = vmatprep.subr.mxu0 0.0
  %2259 = vmatpush1.msra.mxu0 0.0
  %2260 = vmatprep.subr.mxu0 0.0
  %2261 = vmatpush1.msra.mxu0 0.0
  %2262 = vmatprep.subr.mxu0 0.0
  %2263 = vmatpush1.msra.mxu0 0.0
  %2264 = vmatprep.subr.mxu0 0.0
  %2265 = vmatpush1.msra.mxu0 0.0
  %2266 = vmatprep.mubr.f32.mxu0 0.0
  %2267 = vmatmul.mubr.f32.gmra.mrb[0].mxu0 %v2200
  %v2268 = vpop.f32.mrb[0].mxu0
  %v2269 = vadd.f32 0.0, %v2268
  %v2270 = vpop.f32.mrb[0].mxu0
  %v2271 = vadd.f32 0.0, %v2270
  %2272 = vdwg.mxu0
  %2273 = vrot.lane.b32.xlu0 %v1600, 104
  %v2274 = vpop.permute.xlu0 %2273
  %v2275 = vsel %vm650, %v2274, 0
  %2277 = vmatprep.subr.mxu0 %v1522
  %2278 = vmatpush1.msra.mxu0 %v1520
  %2279 = vmatprep.subr.mxu0 0.0
  %2280 = vmatpush1.msra.mxu0 0.0
  %2281 = vmatprep.subr.mxu0 0.0
  %2282 = vmatpush1.msra.mxu0 0.0
  %2283 = vmatprep.subr.mxu0 0.0
  %2284 = vmatpush1.msra.mxu0 0.0
  %2285 = vmatprep.subr.mxu0 0.0
  %2286 = vmatpush1.msra.mxu0 0.0
  %2287 = vmatprep.subr.mxu0 0.0
  %2288 = vmatpush1.msra.mxu0 0.0
  %2289 = vmatprep.subr.mxu0 0.0
  %2290 = vmatpush1.msra.mxu0 0.0
  %2291 = vmatprep.subr.mxu0 0.0
  %2292 = vmatpush1.msra.mxu0 0.0
  %2293 = vmatprep.subr.mxu0 0.0
  %2294 = vmatpush1.msra.mxu0 0.0
  %2295 = vmatprep.subr.mxu0 0.0
  %2296 = vmatpush1.msra.mxu0 0.0
  %2297 = vmatprep.subr.mxu0 0.0
  %2298 = vmatpush1.msra.mxu0 0.0
  %2299 = vmatprep.subr.mxu0 0.0
  %2300 = vmatpush1.msra.mxu0 0.0
  %2301 = vmatprep.subr.mxu0 0.0
  %2302 = vmatpush1.msra.mxu0 0.0
  %2303 = vmatprep.subr.mxu0 0.0
  %2304 = vmatpush1.msra.mxu0 0.0
  %2305 = vmatprep.subr.mxu0 0.0
  %2306 = vmatpush1.msra.mxu0 0.0
  %2307 = vmatprep.subr.mxu0 0.0
  %2308 = vmatpush1.msra.mxu0 0.0
  %2309 = vmatprep.subr.mxu0 0.0
  %2310 = vmatpush1.msra.mxu0 0.0
  %2311 = vmatprep.subr.mxu0 0.0
  %2312 = vmatpush1.msra.mxu0 0.0
  %2313 = vmatprep.subr.mxu0 0.0
  %2314 = vmatpush1.msra.mxu0 0.0
  %2315 = vmatprep.subr.mxu0 0.0
  %2316 = vmatpush1.msra.mxu0 0.0
  %2317 = vmatprep.subr.mxu0 0.0
  %2318 = vmatpush1.msra.mxu0 0.0
  %2319 = vmatprep.subr.mxu0 0.0
  %2320 = vmatpush1.msra.mxu0 0.0
  %2321 = vmatprep.subr.mxu0 0.0
  %2322 = vmatpush1.msra.mxu0 0.0
  %2323 = vmatprep.subr.mxu0 0.0
  %2324 = vmatpush1.msra.mxu0 0.0
  %2325 = vmatprep.subr.mxu0 0.0
  %2326 = vmatpush1.msra.mxu0 0.0
  %2327 = vmatprep.subr.mxu0 0.0
  %2328 = vmatpush1.msra.mxu0 0.0
  %2329 = vmatprep.subr.mxu0 0.0
  %2330 = vmatpush1.msra.mxu0 0.0
  %2331 = vmatprep.subr.mxu0 0.0
  %2332 = vmatpush1.msra.mxu0 0.0
  %2333 = vmatprep.subr.mxu0 0.0
  %2334 = vmatpush1.msra.mxu0 0.0
  %2335 = vmatprep.subr.mxu0 0.0
  %2336 = vmatpush1.msra.mxu0 0.0
  %2337 = vmatprep.subr.mxu0 0.0
  %2338 = vmatpush1.msra.mxu0 0.0
  %2339 = vmatprep.subr.mxu0 0.0
  %2340 = vmatpush1.msra.mxu0 0.0
  %2341 = vmatprep.mubr.f32.mxu0 0.0
  %2342 = vmatmul.mubr.f32.gmra.mrb[0].mxu0 %v2275
  %v2343 = vpop.f32.mrb[0].mxu0
  %v2344 = vadd.f32 %v1723, %v2343
  %v2345 = vpop.f32.mrb[0].mxu0
  %v2346 = vadd.f32 %v1723, %v2345
  %2347 = vdwg.mxu0
  %v2348 = vrot.slane %v2344, 4
  %v2349 = vmax.f32 %v2344, %v2348
  %v2350 = vrot.slane %v2349, 2
  %v2351 = vmax.f32 %v2349, %v2350
  %v2352 = vrot.slane %v2351, 1
  %v2353 = vmax.f32 %v2351, %v2352
  %v2354 = vrot.slane %v2346, 4
  %v2355 = vmax.f32 %v2346, %v2354
  %v2356 = vrot.slane %v2355, 2
  %v2357 = vmax.f32 %v2355, %v2356
  %v2358 = vrot.slane %v2357, 1
  %v2359 = vmax.f32 %v2357, %v2358
  %v2360 = vsub.f32 %v2344, %v2353
  %v2361 = vsub.f32 %v2346, %v2359
  %v2362 = vmul.f32 %v2360, 1.442695
  %v2363 = vpow.pop %v2362
  %v2364 = vmul.f32 %v2361, 1.442695
  %v2365 = vpow.pop %v2364
  %v2366 = vrot.slane %v2363, 4
  %v2367 = vadd.f32 %v2363, %v2366
  %v2368 = vrot.slane %v2367, 2
  %v2369 = vadd.f32 %v2367, %v2368
  %v2370 = vrot.slane %v2369, 1
  %v2371 = vadd.f32 %v2369, %v2370
  %v2372 = vrot.slane %v2365, 4
  %v2373 = vadd.f32 %v2365, %v2372
  %v2374 = vrot.slane %v2373, 2
  %v2375 = vadd.f32 %v2373, %v2374
  %v2376 = vrot.slane %v2375, 1
  %v2377 = vadd.f32 %v2375, %v2376
  %v2378 = vrcp.pop %v2371
  %v2379 = vrcp.pop %v2377
  %v2380 = vmul.f32 %v2363, %v2378
  %v2381 = vmul.f32 %v2365, %v2379
  %v2383 = vsel %vm650, %v1717, 0
  %2385 = vmatprep.subr.mxu0 %v2381
  %2386 = vmatpush1.msra.mxu0 %v2380
  %2387 = vmatprep.subr.mxu0 0.0
  %2388 = vmatpush1.msra.mxu0 0.0
  %2389 = vmatprep.subr.mxu0 0.0
  %2390 = vmatpush1.msra.mxu0 0.0
  %2391 = vmatprep.subr.mxu0 0.0
  %2392 = vmatpush1.msra.mxu0 0.0
  %2393 = vmatprep.subr.mxu0 0.0
  %2394 = vmatpush1.msra.mxu0 0.0
  %2395 = vmatprep.subr.mxu0 0.0
  %2396 = vmatpush1.msra.mxu0 0.0
  %2397 = vmatprep.subr.mxu0 0.0
  %2398 = vmatpush1.msra.mxu0 0.0
  %2399 = vmatprep.subr.mxu0 0.0
  %2400 = vmatpush1.msra.mxu0 0.0
  %2401 = vmatprep.subr.mxu0 0.0
  %2402 = vmatpush1.msra.mxu0 0.0
  %2403 = vmatprep.subr.mxu0 0.0
  %2404 = vmatpush1.msra.mxu0 0.0
  %2405 = vmatprep.subr.mxu0 0.0
  %2406 = vmatpush1.msra.mxu0 0.0
  %2407 = vmatprep.subr.mxu0 0.0
  %2408 = vmatpush1.msra.mxu0 0.0
  %2409 = vmatprep.subr.mxu0 0.0
  %2410 = vmatpush1.msra.mxu0 0.0
  %2411 = vmatprep.subr.mxu0 0.0
  %2412 = vmatpush1.msra.mxu0 0.0
  %2413 = vmatprep.subr.mxu0 0.0
  %2414 = vmatpush1.msra.mxu0 0.0
  %2415 = vmatprep.subr.mxu0 0.0
  %2416 = vmatpush1.msra.mxu0 0.0
  %2417 = vmatprep.subr.mxu0 0.0
  %2418 = vmatpush1.msra.mxu0 0.0
  %2419 = vmatprep.subr.mxu0 0.0
  %2420 = vmatpush1.msra.mxu0 0.0
  %2421 = vmatprep.subr.mxu0 0.0
  %2422 = vmatpush1.msra.mxu0 0.0
  %2423 = vmatprep.subr.mxu0 0.0
  %2424 = vmatpush1.msra.mxu0 0.0
  %2425 = vmatprep.subr.mxu0 0.0
  %2426 = vmatpush1.msra.mxu0 0.0
  %2427 = vmatprep.subr.mxu0 0.0
  %2428 = vmatpush1.msra.mxu0 0.0
  %2429 = vmatprep.subr.mxu0 0.0
  %2430 = vmatpush1.msra.mxu0 0.0
  %2431 = vmatprep.subr.mxu0 0.0
  %2432 = vmatpush1.msra.mxu0 0.0
  %2433 = vmatprep.subr.mxu0 0.0
  %2434 = vmatpush1.msra.mxu0 0.0
  %2435 = vmatprep.subr.mxu0 0.0
  %2436 = vmatpush1.msra.mxu0 0.0
  %2437 = vmatprep.subr.mxu0 0.0
  %2438 = vmatpush1.msra.mxu0 0.0
  %2439 = vmatprep.subr.mxu0 0.0
  %2440 = vmatpush1.msra.mxu0 0.0
  %2441 = vmatprep.subr.mxu0 0.0
  %2442 = vmatpush1.msra.mxu0 0.0
  %2443 = vmatprep.subr.mxu0 0.0
  %2444 = vmatpush1.msra.mxu0 0.0
  %2445 = vmatprep.subr.mxu0 0.0
  %2446 = vmatpush1.msra.mxu0 0.0
  %2447 = vmatprep.subr.mxu0 0.0
  %2448 = vmatpush1.msra.mxu0 0.0
  %2449 = vmatprep.mubr.f32.mxu0 0.0
  %2450 = vmatmul.mubr.f32.gmra.mrb[0].mxu0 %v2383
  %v2451 = vpop.f32.mrb[0].mxu0
  %v2452 = vadd.f32 0.0, %v2451
  %v2453 = vpop.f32.mrb[0].mxu0
  %v2454 = vadd.f32 0.0, %v2453
  %2455 = vdwg.mxu0
  %2457 = vset.pattern.permute.xlu0 0
  %2458 = vperm.xlu0 %2457, %v144
  %v2459 = vpop.permute.xlu0 %2458
  %2462 = vset.pattern.permute.xlu0 0
  %2463 = vperm.xlu0 %2462, %v145
  %v2464 = vpop.permute.xlu0 %2463
  %2467 = vset.pattern.permute.xlu0 0
  %2468 = vperm.xlu0 %2467, %v146
  %v2469 = vpop.permute.xlu0 %2468
  %2472 = vset.pattern.permute.xlu0 0
  %2473 = vperm.xlu0 %2472, %v147
  %v2474 = vpop.permute.xlu0 %2473
  %v2477 = vsel %vm311, %v140, 0
  %v2480 = vsel %vm311, %v141, 0
  %v2483 = vsel %vm311, %v142, 0
  %v2486 = vsel %vm311, %v143, 0
  %2488 = vmatprep.subr.mxu0 %v1905
  %2489 = vmatpush1.msra.mxu0 %v1903
  %2490 = vmatprep.subr.mxu0 %v2088
  %2491 = vmatpush1.msra.mxu0 %v2086
  %2492 = vmatprep.subr.mxu0 %v2271
  %2493 = vmatpush1.msra.mxu0 %v2269
  %2494 = vmatprep.subr.mxu0 %v2454
  %2495 = vmatpush1.msra.mxu0 %v2452
  %2496 = vmatprep.subr.mxu0 0.0
  %2497 = vmatpush1.msra.mxu0 0.0
  %2498 = vmatprep.subr.mxu0 0.0
  %2499 = vmatpush1.msra.mxu0 0.0
  %2500 = vmatprep.subr.mxu0 0.0
  %2501 = vmatpush1.msra.mxu0 0.0
  %2502 = vmatprep.subr.mxu0 0.0
  %2503 = vmatpush1.msra.mxu0 0.0
  %2504 = vmatprep.subr.mxu0 0.0
  %2505 = vmatpush1.msra.mxu0 0.0
  %2506 = vmatprep.subr.mxu0 0.0
  %2507 = vmatpush1.msra.mxu0 0.0
  %2508 = vmatprep.subr.mxu0 0.0
  %2509 = vmatpush1.msra.mxu0 0.0
  %2510 = vmatprep.subr.mxu0 0.0
  %2511 = vmatpush1.msra.mxu0 0.0
  %2512 = vmatprep.subr.mxu0 0.0
  %2513 = vmatpush1.msra.mxu0 0.0
  %2514 = vmatprep.subr.mxu0 0.0
  %2515 = vmatpush1.msra.mxu0 0.0
  %2516 = vmatprep.subr.mxu0 0.0
  %2517 = vmatpush1.msra.mxu0 0.0
  %2518 = vmatprep.subr.mxu0 0.0
  %2519 = vmatpush1.msra.mxu0 0.0
  %2520 = vmatprep.subr.mxu0 0.0
  %2521 = vmatpush1.msra.mxu0 0.0
  %2522 = vmatprep.subr.mxu0 0.0
  %2523 = vmatpush1.msra.mxu0 0.0
  %2524 = vmatprep.subr.mxu0 0.0
  %2525 = vmatpush1.msra.mxu0 0.0
  %2526 = vmatprep.subr.mxu0 0.0
  %2527 = vmatpush1.msra.mxu0 0.0
  %2528 = vmatprep.subr.mxu0 0.0
  %2529 = vmatpush1.msra.mxu0 0.0
  %2530 = vmatprep.subr.mxu0 0.0
  %2531 = vmatpush1.msra.mxu0 0.0
  %2532 = vmatprep.subr.mxu0 0.0
  %2533 = vmatpush1.msra.mxu0 0.0
  %2534 = vmatprep.subr.mxu0 0.0
  %2535 = vmatpush1.msra.mxu0 0.0
  %2536 = vmatprep.subr.mxu0 0.0
  %2537 = vmatpush1.msra.mxu0 0.0
  %2538 = vmatprep.subr.mxu0 0.0
  %2539 = vmatpush1.msra.mxu0 0.0
  %2540 = vmatprep.subr.mxu0 0.0
  %2541 = vmatpush1.msra.mxu0 0.0
  %2542 = vmatprep.subr.mxu0 0.0
  %2543 = vmatpush1.msra.mxu0 0.0
  %2544 = vmatprep.subr.mxu0 0.0
  %2545 = vmatpush1.msra.mxu0 0.0
  %2546 = vmatprep.subr.mxu0 0.0
  %2547 = vmatpush1.msra.mxu0 0.0
  %2548 = vmatprep.subr.mxu0 0.0
  %2549 = vmatpush1.msra.mxu0 0.0
  %2550 = vmatprep.subr.mxu0 0.0
  %2551 = vmatpush1.msra.mxu0 0.0
  %2552 = vmatprep.mubr.f32.mxu0 0.0
  %2553 = vmatmul.mubr.f32.gmra.mrb[0].mxu0 %v2477
  %v2554 = vpop.f32.mrb[0].mxu0
  %v2555 = vadd.f32 %v2459, %v2554
  %v2556 = vpop.f32.mrb[0].mxu0
  %v2557 = vadd.f32 %v2459, %v2556
  %2558 = vmatprep.mubr.f32.mxu0 0.0
  %2559 = vmatmul.mubr.f32.gmra.mrb[0].mxu0 %v2480
  %v2560 = vpop.f32.mrb[0].mxu0
  %v2561 = vadd.f32 %v2464, %v2560
  %v2562 = vpop.f32.mrb[0].mxu0
  %v2563 = vadd.f32 %v2464, %v2562
  %2564 = vmatprep.mubr.f32.mxu0 0.0
  %2565 = vmatmul.mubr.f32.gmra.mrb[0].mxu0 %v2483
  %v2566 = vpop.f32.mrb[0].mxu0
  %v2567 = vadd.f32 %v2469, %v2566
  %v2568 = vpop.f32.mrb[0].mxu0
  %v2569 = vadd.f32 %v2469, %v2568
  %2570 = vmatprep.mubr.f32.mxu0 0.0
  %2571 = vmatmul.mubr.f32.gmra.mrb[0].mxu0 %v2486
  %v2572 = vpop.f32.mrb[0].mxu0
  %v2573 = vadd.f32 %v2474, %v2572
  %v2574 = vpop.f32.mrb[0].mxu0
  %v2575 = vadd.f32 %v2474, %v2574
  %2576 = vdwg.mxu0
  %v2577 = vadd.f32 %v391, %v2555
  %v2578 = vadd.f32 %v393, %v2557
  %v2579 = vadd.f32 %v397, %v2561
  %v2580 = vadd.f32 %v399, %v2563
  %v2581 = vadd.f32 %v403, %v2567
  %v2582 = vadd.f32 %v405, %v2569
  %v2583 = vadd.f32 %v409, %v2573
  %v2584 = vadd.f32 %v411, %v2575
  %v2585 = vadd.f32 %v2577, %v2578
  %2586 = vadd.xlane.f32.xlu0 %v2585
  %v2587 = vpop.xlane.xlu0 %2586
  %v2588 = vadd.f32 %v2579, %v2580
  %2589 = vadd.xlane.f32.xlu0 %v2588
  %v2590 = vpop.xlane.xlu0 %2589
  %v2591 = vadd.f32 %v2581, %v2582
  %2592 = vadd.xlane.f32.xlu0 %v2591
  %v2593 = vpop.xlane.xlu0 %2592
  %v2594 = vadd.f32 %v2583, %v2584
  %2595 = vadd.xlane.f32.xlu0 %v2594
  %v2596 = vpop.xlane.xlu0 %2595
  %s2597 = scalar_lea.vmem %s0, 8
  %v2598 = vld [vmem:[%s2597] sm:$0xff]
  %s2599 = scalar_lea.vmem %s1, 8
  %v2600 = vld [vmem:[%s2599] sm:$0xff]
  %s2601 = scalar_lea.vmem %s2, 1
  %v2602 = vld [vmem:[%s2601] sm:$0x1]
  %s2603 = scalar_lea.vmem %s3, 8
  %v2604 = vld [vmem:[%s2603] sm:$0xff]
  %v2606 = vcombine.high %v2598, %v2598
  %v2607 = vsel %vm189, %v2598, 0
  %v2609 = vsel %vm189, %v2606, 0
  %2611 = vmatprep.subr.mxu0 %v2609
  %2612 = vmatpush1.msra.mxu0 %v2607
  %2613 = vmatprep.subr.mxu0 0.0
  %2614 = vmatpush1.msra.mxu0 0.0
  %2615 = vmatprep.subr.mxu0 0.0
  %2616 = vmatpush1.msra.mxu0 0.0
  %2617 = vmatprep.subr.mxu0 0.0
  %2618 = vmatpush1.msra.mxu0 0.0
  %2619 = vmatprep.subr.mxu0 0.0
  %2620 = vmatpush1.msra.mxu0 0.0
  %2621 = vmatprep.subr.mxu0 0.0
  %2622 = vmatpush1.msra.mxu0 0.0
  %2623 = vmatprep.subr.mxu0 0.0
  %2624 = vmatpush1.msra.mxu0 0.0
  %2625 = vmatprep.subr.mxu0 0.0
  %2626 = vmatpush1.msra.mxu0 0.0
  %2627 = vmatprep.subr.mxu0 0.0
  %2628 = vmatpush1.msra.mxu0 0.0
  %2629 = vmatprep.subr.mxu0 0.0
  %2630 = vmatpush1.msra.mxu0 0.0
  %2631 = vmatprep.subr.mxu0 0.0
  %2632 = vmatpush1.msra.mxu0 0.0
  %2633 = vmatprep.subr.mxu0 0.0
  %2634 = vmatpush1.msra.mxu0 0.0
  %2635 = vmatprep.subr.mxu0 0.0
  %2636 = vmatpush1.msra.mxu0 0.0
  %2637 = vmatprep.subr.mxu0 0.0
  %2638 = vmatpush1.msra.mxu0 0.0
  %2639 = vmatprep.subr.mxu0 0.0
  %2640 = vmatpush1.msra.mxu0 0.0
  %2641 = vmatprep.subr.mxu0 0.0
  %2642 = vmatpush1.msra.mxu0 0.0
  %2643 = vmatprep.subr.mxu0 0.0
  %2644 = vmatpush1.msra.mxu0 0.0
  %2645 = vmatprep.subr.mxu0 0.0
  %2646 = vmatpush1.msra.mxu0 0.0
  %2647 = vmatprep.subr.mxu0 0.0
  %2648 = vmatpush1.msra.mxu0 0.0
  %2649 = vmatprep.subr.mxu0 0.0
  %2650 = vmatpush1.msra.mxu0 0.0
  %2651 = vmatprep.subr.mxu0 0.0
  %2652 = vmatpush1.msra.mxu0 0.0
  %2653 = vmatprep.subr.mxu0 0.0
  %2654 = vmatpush1.msra.mxu0 0.0
  %2655 = vmatprep.subr.mxu0 0.0
  %2656 = vmatpush1.msra.mxu0 0.0
  %2657 = vmatprep.subr.mxu0 0.0
  %2658 = vmatpush1.msra.mxu0 0.0
  %2659 = vmatprep.subr.mxu0 0.0
  %2660 = vmatpush1.msra.mxu0 0.0
  %2661 = vmatprep.subr.mxu0 0.0
  %2662 = vmatpush1.msra.mxu0 0.0
  %2663 = vmatprep.subr.mxu0 0.0
  %2664 = vmatpush1.msra.mxu0 0.0
  %2665 = vmatprep.subr.mxu0 0.0
  %2666 = vmatpush1.msra.mxu0 0.0
  %2667 = vmatprep.subr.mxu0 0.0
  %2668 = vmatpush1.msra.mxu0 0.0
  %2669 = vmatprep.subr.mxu0 0.0
  %2670 = vmatpush1.msra.mxu0 0.0
  %2671 = vmatprep.subr.mxu0 0.0
  %2672 = vmatpush1.msra.mxu0 0.0
  %2673 = vmatprep.subr.mxu0 0.0
  %2674 = vmatpush1.msra.mxu0 0.0
  %2675 = vmatprep.mubr.f32.mxu0 0.0
  %2676 = vmatmul.mubr.f32.gmra.mrb[0].mxu0 %v178
  %v2677 = vpop.f32.mrb[0].mxu0
  %v2678 = vadd.f32 %v157, %v2677
  %v2679 = vpop.f32.mrb[0].mxu0
  %v2680 = vadd.f32 %v157, %v2679
  %2681 = vmatprep.mubr.f32.mxu0 0.0
  %2682 = vmatmul.mubr.f32.gmra.mrb[0].mxu0 %v181
  %v2683 = vpop.f32.mrb[0].mxu0
  %v2684 = vadd.f32 %v162, %v2683
  %v2685 = vpop.f32.mrb[0].mxu0
  %v2686 = vadd.f32 %v162, %v2685
  %2687 = vmatprep.mubr.f32.mxu0 0.0
  %2688 = vmatmul.mubr.f32.gmra.mrb[0].mxu0 %v184
  %v2689 = vpop.f32.mrb[0].mxu0
  %v2690 = vadd.f32 %v167, %v2689
  %v2691 = vpop.f32.mrb[0].mxu0
  %v2692 = vadd.f32 %v167, %v2691
  %2693 = vmatprep.mubr.f32.mxu0 0.0
  %2694 = vmatmul.mubr.f32.gmra.mrb[0].mxu0 %v187
  %v2695 = vpop.f32.mrb[0].mxu0
  %v2696 = vadd.f32 %v172, %v2695
  %v2697 = vpop.f32.mrb[0].mxu0
  %v2698 = vadd.f32 %v172, %v2697
  %2699 = vdwg.mxu0
  %v2700 = vmax.f32 %v2678, 0.0
  %v2701 = vmax.f32 %v2680, 0.0
  %v2702 = vmax.f32 %v2684, 0.0
  %v2703 = vmax.f32 %v2686, 0.0
  %v2704 = vmax.f32 %v2690, 0.0
  %v2705 = vmax.f32 %v2692, 0.0
  %v2706 = vmax.f32 %v2696, 0.0
  %v2707 = vmax.f32 %v2698, 0.0
  %2708 = vmatprep.subr.mxu0 %v2701
  %2709 = vmatpush1.msra.mxu0 %v2700
  %2710 = vmatprep.subr.mxu0 %v2703
  %2711 = vmatpush1.msra.mxu0 %v2702
  %2712 = vmatprep.subr.mxu0 %v2705
  %2713 = vmatpush1.msra.mxu0 %v2704
  %2714 = vmatprep.subr.mxu0 %v2707
  %2715 = vmatpush1.msra.mxu0 %v2706
  %2716 = vmatprep.subr.mxu0 0.0
  %2717 = vmatpush1.msra.mxu0 0.0
  %2718 = vmatprep.subr.mxu0 0.0
  %2719 = vmatpush1.msra.mxu0 0.0
  %2720 = vmatprep.subr.mxu0 0.0
  %2721 = vmatpush1.msra.mxu0 0.0
  %2722 = vmatprep.subr.mxu0 0.0
  %2723 = vmatpush1.msra.mxu0 0.0
  %2724 = vmatprep.subr.mxu0 0.0
  %2725 = vmatpush1.msra.mxu0 0.0
  %2726 = vmatprep.subr.mxu0 0.0
  %2727 = vmatpush1.msra.mxu0 0.0
  %2728 = vmatprep.subr.mxu0 0.0
  %2729 = vmatpush1.msra.mxu0 0.0
  %2730 = vmatprep.subr.mxu0 0.0
  %2731 = vmatpush1.msra.mxu0 0.0
  %2732 = vmatprep.subr.mxu0 0.0
  %2733 = vmatpush1.msra.mxu0 0.0
  %2734 = vmatprep.subr.mxu0 0.0
  %2735 = vmatpush1.msra.mxu0 0.0
  %2736 = vmatprep.subr.mxu0 0.0
  %2737 = vmatpush1.msra.mxu0 0.0
  %2738 = vmatprep.subr.mxu0 0.0
  %2739 = vmatpush1.msra.mxu0 0.0
  %2740 = vmatprep.subr.mxu0 0.0
  %2741 = vmatpush1.msra.mxu0 0.0
  %2742 = vmatprep.subr.mxu0 0.0
  %2743 = vmatpush1.msra.mxu0 0.0
  %2744 = vmatprep.subr.mxu0 0.0
  %2745 = vmatpush1.msra.mxu0 0.0
  %2746 = vmatprep.subr.mxu0 0.0
  %2747 = vmatpush1.msra.mxu0 0.0
  %2748 = vmatprep.subr.mxu0 0.0
  %2749 = vmatpush1.msra.mxu0 0.0
  %2750 = vmatprep.subr.mxu0 0.0
  %2751 = vmatpush1.msra.mxu0 0.0
  %2752 = vmatprep.subr.mxu0 0.0
  %2753 = vmatpush1.msra.mxu0 0.0
  %2754 = vmatprep.subr.mxu0 0.0
  %2755 = vmatpush1.msra.mxu0 0.0
  %2756 = vmatprep.subr.mxu0 0.0
  %2757 = vmatpush1.msra.mxu0 0.0
  %2758 = vmatprep.subr.mxu0 0.0
  %2759 = vmatpush1.msra.mxu0 0.0
  %2760 = vmatprep.subr.mxu0 0.0
  %2761 = vmatpush1.msra.mxu0 0.0
  %2762 = vmatprep.subr.mxu0 0.0
  %2763 = vmatpush1.msra.mxu0 0.0
  %2764 = vmatprep.subr.mxu0 0.0
  %2765 = vmatpush1.msra.mxu0 0.0
  %2766 = vmatprep.subr.mxu0 0.0
  %2767 = vmatpush1.msra.mxu0 0.0
  %2768 = vmatprep.subr.mxu0 0.0
  %2769 = vmatpush1.msra.mxu0 0.0
  %2770 = vmatprep.subr.mxu0 0.0
  %2771 = vmatpush1.msra.mxu0 0.0
  %2772 = vmatprep.mubr.f32.mxu0 0.0
  %2773 = vmatmul.mubr.f32.gmra.mrb[0].mxu0 %v313
  %v2774 = vpop.f32.mrb[0].mxu0
  %v2775 = vadd.f32 %v294, %v2774
  %v2776 = vpop.f32.mrb[0].mxu0
  %v2777 = vadd.f32 %v294, %v2776
  %2778 = vmatprep.mubr.f32.mxu0 0.0
  %2779 = vmatmul.mubr.f32.gmra.mrb[0].mxu0 %v316
  %v2780 = vpop.f32.mrb[0].mxu0
  %v2781 = vadd.f32 %v299, %v2780
  %v2782 = vpop.f32.mrb[0].mxu0
  %v2783 = vadd.f32 %v299, %v2782
  %2784 = vmatprep.mubr.f32.mxu0 0.0
  %2785 = vmatmul.mubr.f32.gmra.mrb[0].mxu0 %v319
  %v2786 = vpop.f32.mrb[0].mxu0
  %v2787 = vadd.f32 %v304, %v2786
  %v2788 = vpop.f32.mrb[0].mxu0
  %v2789 = vadd.f32 %v304, %v2788
  %2790 = vmatprep.mubr.f32.mxu0 0.0
  %2791 = vmatmul.mubr.f32.gmra.mrb[0].mxu0 %v322
  %v2792 = vpop.f32.mrb[0].mxu0
  %v2793 = vadd.f32 %v309, %v2792
  %v2794 = vpop.f32.mrb[0].mxu0
  %v2795 = vadd.f32 %v309, %v2794
  %2796 = vdwg.mxu0
  %v2798 = vsel %vm311, %v2600, 0
  %2800 = vmatprep.subr.mxu0 0.0
  %2801 = vmatpush1.msra.mxu0 %v99
  %2802 = vmatprep.subr.mxu0 0.0
  %2803 = vmatpush1.msra.mxu0 %v100
  %2804 = vmatprep.subr.mxu0 0.0
  %2805 = vmatpush1.msra.mxu0 %v101
  %2806 = vmatprep.subr.mxu0 0.0
  %2807 = vmatpush1.msra.mxu0 %v102
  %2808 = vmatprep.subr.mxu0 0.0
  %2809 = vmatpush1.msra.mxu0 0.0
  %2810 = vmatprep.subr.mxu0 0.0
  %2811 = vmatpush1.msra.mxu0 0.0
  %2812 = vmatprep.subr.mxu0 0.0
  %2813 = vmatpush1.msra.mxu0 0.0
  %2814 = vmatprep.subr.mxu0 0.0
  %2815 = vmatpush1.msra.mxu0 0.0
  %2816 = vmatprep.subr.mxu0 0.0
  %2817 = vmatpush1.msra.mxu0 0.0
  %2818 = vmatprep.subr.mxu0 0.0
  %2819 = vmatpush1.msra.mxu0 0.0
  %2820 = vmatprep.subr.mxu0 0.0
  %2821 = vmatpush1.msra.mxu0 0.0
  %2822 = vmatprep.subr.mxu0 0.0
  %2823 = vmatpush1.msra.mxu0 0.0
  %2824 = vmatprep.subr.mxu0 0.0
  %2825 = vmatpush1.msra.mxu0 0.0
  %2826 = vmatprep.subr.mxu0 0.0
  %2827 = vmatpush1.msra.mxu0 0.0
  %2828 = vmatprep.subr.mxu0 0.0
  %2829 = vmatpush1.msra.mxu0 0.0
  %2830 = vmatprep.subr.mxu0 0.0
  %2831 = vmatpush1.msra.mxu0 0.0
  %2832 = vmatprep.subr.mxu0 0.0
  %2833 = vmatpush1.msra.mxu0 0.0
  %2834 = vmatprep.subr.mxu0 0.0
  %2835 = vmatpush1.msra.mxu0 0.0
  %2836 = vmatprep.subr.mxu0 0.0
  %2837 = vmatpush1.msra.mxu0 0.0
  %2838 = vmatprep.subr.mxu0 0.0
  %2839 = vmatpush1.msra.mxu0 0.0
  %2840 = vmatprep.subr.mxu0 0.0
  %2841 = vmatpush1.msra.mxu0 0.0
  %2842 = vmatprep.subr.mxu0 0.0
  %2843 = vmatpush1.msra.mxu0 0.0
  %2844 = vmatprep.subr.mxu0 0.0
  %2845 = vmatpush1.msra.mxu0 0.0
  %2846 = vmatprep.subr.mxu0 0.0
  %2847 = vmatpush1.msra.mxu0 0.0
  %2848 = vmatprep.subr.mxu0 0.0
  %2849 = vmatpush1.msra.mxu0 0.0
  %2850 = vmatprep.subr.mxu0 0.0
  %2851 = vmatpush1.msra.mxu0 0.0
  %2852 = vmatprep.subr.mxu0 0.0
  %2853 = vmatpush1.msra.mxu0 0.0
  %2854 = vmatprep.subr.mxu0 0.0
  %2855 = vmatpush1.msra.mxu0 0.0
  %2856 = vmatprep.subr.mxu0 0.0
  %2857 = vmatpush1.msra.mxu0 0.0
  %2858 = vmatprep.subr.mxu0 0.0
  %2859 = vmatpush1.msra.mxu0 0.0
  %2860 = vmatprep.subr.mxu0 0.0
  %2861 = vmatpush1.msra.mxu0 0.0
  %2862 = vmatprep.subr.mxu0 0.0
  %2863 = vmatpush1.msra.mxu0 0.0
  %2864 = vmatprep.mubr.f32.mxu0 0.0
  %2865 = vmatmul.mubr.f32.gmra.mrb[0].mxu0 %v2798
  %v2866 = vpop.f32.mrb[0].mxu0
  %v2867 = vadd.f32 %v417, %v2866
  %v2868 = vpop.f32.mrb[0].mxu0
  %2869 = vdwg.mxu0
  %2870 = vmatprep.subr.mxu0 0.0
  %2871 = vmatpush1.msra.mxu0 %v104
  %2872 = vmatprep.subr.mxu0 0.0
  %2873 = vmatpush1.msra.mxu0 %v105
  %2874 = vmatprep.subr.mxu0 0.0
  %2875 = vmatpush1.msra.mxu0 %v106
  %2876 = vmatprep.subr.mxu0 0.0
  %2877 = vmatpush1.msra.mxu0 %v107
  %2878 = vmatprep.subr.mxu0 0.0
  %2879 = vmatpush1.msra.mxu0 0.0
  %2880 = vmatprep.subr.mxu0 0.0
  %2881 = vmatpush1.msra.mxu0 0.0
  %2882 = vmatprep.subr.mxu0 0.0
  %2883 = vmatpush1.msra.mxu0 0.0
  %2884 = vmatprep.subr.mxu0 0.0
  %2885 = vmatpush1.msra.mxu0 0.0
  %2886 = vmatprep.subr.mxu0 0.0
  %2887 = vmatpush1.msra.mxu0 0.0
  %2888 = vmatprep.subr.mxu0 0.0
  %2889 = vmatpush1.msra.mxu0 0.0
  %2890 = vmatprep.subr.mxu0 0.0
  %2891 = vmatpush1.msra.mxu0 0.0
  %2892 = vmatprep.subr.mxu0 0.0
  %2893 = vmatpush1.msra.mxu0 0.0
  %2894 = vmatprep.subr.mxu0 0.0
  %2895 = vmatpush1.msra.mxu0 0.0
  %2896 = vmatprep.subr.mxu0 0.0
  %2897 = vmatpush1.msra.mxu0 0.0
  %2898 = vmatprep.subr.mxu0 0.0
  %2899 = vmatpush1.msra.mxu0 0.0
  %2900 = vmatprep.subr.mxu0 0.0
  %2901 = vmatpush1.msra.mxu0 0.0
  %2902 = vmatprep.subr.mxu0 0.0
  %2903 = vmatpush1.msra.mxu0 0.0
  %2904 = vmatprep.subr.mxu0 0.0
  %2905 = vmatpush1.msra.mxu0 0.0
  %2906 = vmatprep.subr.mxu0 0.0
  %2907 = vmatpush1.msra.mxu0 0.0
  %2908 = vmatprep.subr.mxu0 0.0
  %2909 = vmatpush1.msra.mxu0 0.0
  %2910 = vmatprep.subr.mxu0 0.0
  %2911 = vmatpush1.msra.mxu0 0.0
  %2912 = vmatprep.subr.mxu0 0.0
  %2913 = vmatpush1.msra.mxu0 0.0
  %2914 = vmatprep.subr.mxu0 0.0
  %2915 = vmatpush1.msra.mxu0 0.0
  %2916 = vmatprep.subr.mxu0 0.0
  %2917 = vmatpush1.msra.mxu0 0.0
  %2918 = vmatprep.subr.mxu0 0.0
  %2919 = vmatpush1.msra.mxu0 0.0
  %2920 = vmatprep.subr.mxu0 0.0
  %2921 = vmatpush1.msra.mxu0 0.0
  %2922 = vmatprep.subr.mxu0 0.0
  %2923 = vmatpush1.msra.mxu0 0.0
  %2924 = vmatprep.subr.mxu0 0.0
  %2925 = vmatpush1.msra.mxu0 0.0
  %2926 = vmatprep.subr.mxu0 0.0
  %2927 = vmatpush1.msra.mxu0 0.0
  %2928 = vmatprep.subr.mxu0 0.0
  %2929 = vmatpush1.msra.mxu0 0.0
  %2930 = vmatprep.subr.mxu0 0.0
  %2931 = vmatpush1.msra.mxu0 0.0
  %2932 = vmatprep.subr.mxu0 0.0
  %2933 = vmatpush1.msra.mxu0 0.0
  %2934 = vmatprep.mubr.f32.mxu0 0.0
  %2935 = vmatmul.mubr.f32.gmra.mrb[0].mxu0 %v2798
  %v2936 = vpop.f32.mrb[0].mxu0
  %v2937 = vadd.f32 %v496, %v2936
  %v2938 = vpop.f32.mrb[0].mxu0
  %2939 = vdwg.mxu0
  %2940 = vmatprep.subr.mxu0 0.0
  %2941 = vmatpush1.msra.mxu0 %v109
  %2942 = vmatprep.subr.mxu0 0.0
  %2943 = vmatpush1.msra.mxu0 %v110
  %2944 = vmatprep.subr.mxu0 0.0
  %2945 = vmatpush1.msra.mxu0 %v111
  %2946 = vmatprep.subr.mxu0 0.0
  %2947 = vmatpush1.msra.mxu0 %v112
  %2948 = vmatprep.subr.mxu0 0.0
  %2949 = vmatpush1.msra.mxu0 0.0
  %2950 = vmatprep.subr.mxu0 0.0
  %2951 = vmatpush1.msra.mxu0 0.0
  %2952 = vmatprep.subr.mxu0 0.0
  %2953 = vmatpush1.msra.mxu0 0.0
  %2954 = vmatprep.subr.mxu0 0.0
  %2955 = vmatpush1.msra.mxu0 0.0
  %2956 = vmatprep.subr.mxu0 0.0
  %2957 = vmatpush1.msra.mxu0 0.0
  %2958 = vmatprep.subr.mxu0 0.0
  %2959 = vmatpush1.msra.mxu0 0.0
  %2960 = vmatprep.subr.mxu0 0.0
  %2961 = vmatpush1.msra.mxu0 0.0
  %2962 = vmatprep.subr.mxu0 0.0
  %2963 = vmatpush1.msra.mxu0 0.0
  %2964 = vmatprep.subr.mxu0 0.0
  %2965 = vmatpush1.msra.mxu0 0.0
  %2966 = vmatprep.subr.mxu0 0.0
  %2967 = vmatpush1.msra.mxu0 0.0
  %2968 = vmatprep.subr.mxu0 0.0
  %2969 = vmatpush1.msra.mxu0 0.0
  %2970 = vmatprep.subr.mxu0 0.0
  %2971 = vmatpush1.msra.mxu0 0.0
  %2972 = vmatprep.subr.mxu0 0.0
  %2973 = vmatpush1.msra.mxu0 0.0
  %2974 = vmatprep.subr.mxu0 0.0
  %2975 = vmatpush1.msra.mxu0 0.0
  %2976 = vmatprep.subr.mxu0 0.0
  %2977 = vmatpush1.msra.mxu0 0.0
  %2978 = vmatprep.subr.mxu0 0.0
  %2979 = vmatpush1.msra.mxu0 0.0
  %2980 = vmatprep.subr.mxu0 0.0
  %2981 = vmatpush1.msra.mxu0 0.0
  %2982 = vmatprep.subr.mxu0 0.0
  %2983 = vmatpush1.msra.mxu0 0.0
  %2984 = vmatprep.subr.mxu0 0.0
  %2985 = vmatpush1.msra.mxu0 0.0
  %2986 = vmatprep.subr.mxu0 0.0
  %2987 = vmatpush1.msra.mxu0 0.0
  %2988 = vmatprep.subr.mxu0 0.0
  %2989 = vmatpush1.msra.mxu0 0.0
  %2990 = vmatprep.subr.mxu0 0.0
  %2991 = vmatpush1.msra.mxu0 0.0
  %2992 = vmatprep.subr.mxu0 0.0
  %2993 = vmatpush1.msra.mxu0 0.0
  %2994 = vmatprep.subr.mxu0 0.0
  %2995 = vmatpush1.msra.mxu0 0.0
  %2996 = vmatprep.subr.mxu0 0.0
  %2997 = vmatpush1.msra.mxu0 0.0
  %2998 = vmatprep.subr.mxu0 0.0
  %2999 = vmatpush1.msra.mxu0 0.0
  %3000 = vmatprep.subr.mxu0 0.0
  %3001 = vmatpush1.msra.mxu0 0.0
  %3002 = vmatprep.subr.mxu0 0.0
  %3003 = vmatpush1.msra.mxu0 0.0
  %3004 = vmatprep.mubr.f32.mxu0 0.0
  %3005 = vmatmul.mubr.f32.gmra.mrb[0].mxu0 %v2798
  %v3006 = vpop.f32.mrb[0].mxu0
  %v3007 = vadd.f32 %v572, %v3006
  %v3008 = vpop.f32.mrb[0].mxu0
  %3009 = vdwg.mxu0
  %v3011 = vlaneseq
  %v3012 = vshrl.u32 %v3011, 7
  %v3013 = vsub.s32 0, %v3012
  %v3014 = vrot.slane %v2602, %v3013
  %v3017 = vsel %vm650, %v2867, 0
  %v3020 = vsel %vm650, %v2937, 0
  %3022 = vmatprep.subr.mxu0 0.0
  %3023 = vmatpush1.xpose.msra.mxu0 %v3020
  %3024 = vmatprep.subr.mxu0 0.0
  %3025 = vmatpush1.xpose.msra.mxu0 0.0
  %3026 = vmatprep.subr.mxu0 0.0
  %3027 = vmatpush1.xpose.msra.mxu0 0.0
  %3028 = vmatprep.subr.mxu0 0.0
  %3029 = vmatpush1.xpose.msra.mxu0 0.0
  %3030 = vmatprep.subr.mxu0 0.0
  %3031 = vmatpush1.xpose.msra.mxu0 0.0
  %3032 = vmatprep.subr.mxu0 0.0
  %3033 = vmatpush1.xpose.msra.mxu0 0.0
  %3034 = vmatprep.subr.mxu0 0.0
  %3035 = vmatpush1.xpose.msra.mxu0 0.0
  %3036 = vmatprep.subr.mxu0 0.0
  %3037 = vmatpush1.xpose.msra.mxu0 0.0
  %3038 = vmatprep.subr.mxu0 0.0
  %3039 = vmatpush1.xpose.msra.mxu0 0.0
  %3040 = vmatprep.subr.mxu0 0.0
  %3041 = vmatpush1.xpose.msra.mxu0 0.0
  %3042 = vmatprep.subr.mxu0 0.0
  %3043 = vmatpush1.xpose.msra.mxu0 0.0
  %3044 = vmatprep.subr.mxu0 0.0
  %3045 = vmatpush1.xpose.msra.mxu0 0.0
  %3046 = vmatprep.subr.mxu0 0.0
  %3047 = vmatpush1.xpose.msra.mxu0 0.0
  %3048 = vmatprep.subr.mxu0 0.0
  %3049 = vmatpush1.xpose.msra.mxu0 0.0
  %3050 = vmatprep.subr.mxu0 0.0
  %3051 = vmatpush1.xpose.msra.mxu0 0.0
  %3052 = vmatprep.subr.mxu0 0.0
  %3053 = vmatpush1.xpose.msra.mxu0 0.0
  %3054 = vmatprep.subr.mxu0 0.0
  %3055 = vmatpush1.xpose.msra.mxu0 0.0
  %3056 = vmatprep.subr.mxu0 0.0
  %3057 = vmatpush1.xpose.msra.mxu0 0.0
  %3058 = vmatprep.subr.mxu0 0.0
  %3059 = vmatpush1.xpose.msra.mxu0 0.0
  %3060 = vmatprep.subr.mxu0 0.0
  %3061 = vmatpush1.xpose.msra.mxu0 0.0
  %3062 = vmatprep.subr.mxu0 0.0
  %3063 = vmatpush1.xpose.msra.mxu0 0.0
  %3064 = vmatprep.subr.mxu0 0.0
  %3065 = vmatpush1.xpose.msra.mxu0 0.0
  %3066 = vmatprep.subr.mxu0 0.0
  %3067 = vmatpush1.xpose.msra.mxu0 0.0
  %3068 = vmatprep.subr.mxu0 0.0
  %3069 = vmatpush1.xpose.msra.mxu0 0.0
  %3070 = vmatprep.subr.mxu0 0.0
  %3071 = vmatpush1.xpose.msra.mxu0 0.0
  %3072 = vmatprep.subr.mxu0 0.0
  %3073 = vmatpush1.xpose.msra.mxu0 0.0
  %3074 = vmatprep.subr.mxu0 0.0
  %3075 = vmatpush1.xpose.msra.mxu0 0.0
  %3076 = vmatprep.subr.mxu0 0.0
  %3077 = vmatpush1.xpose.msra.mxu0 0.0
  %3078 = vmatprep.subr.mxu0 0.0
  %3079 = vmatpush1.xpose.msra.mxu0 0.0
  %3080 = vmatprep.subr.mxu0 0.0
  %3081 = vmatpush1.xpose.msra.mxu0 0.0
  %3082 = vmatprep.subr.mxu0 0.0
  %3083 = vmatpush1.xpose.msra.mxu0 0.0
  %3084 = vmatprep.subr.mxu0 0.0
  %3085 = vmatpush1.xpose.msra.mxu0 0.0
  %3086 = vmatprep.mubr.f32.mxu0 0.0
  %3087 = vmatmul.mubr.f32.gmra.mrb[0].mxu0 %v3017
  %v3088 = vpop.f32.mrb[0].mxu0
  %v3089 = vadd.f32 %v3014, %v3088
  %v3090 = vpop.f32.mrb[0].mxu0
  %3091 = vdwg.mxu0
  %v3092 = vsel %vm650, %v3089, -inf
  %3093 = vmax.xlane.f32.xlu0 %v3092
  %v3094 = vpop.xlane.xlu0 %3093
  %v3095 = vsub.f32 %v3089, %v3094
  %v3096 = vmul.f32 %v3095, 1.442695
  %v3097 = vpow.pop %v3096
  %v3098 = vsel %vm650, %v3097, 0.0
  %3099 = vadd.xlane.f32.xlu0 %v3098
  %v3100 = vpop.xlane.xlu0 %3099
  %v3101 = vrcp.pop %v3100
  %v3102 = vmul.f32 %v3097, %v3101
  %v3104 = vsel %vm650, %v3102, 0
  %3106 = vmatprep.subr.mxu0 0.0
  %3107 = vmatpush1.msra.mxu0 %v3007
  %3108 = vmatprep.subr.mxu0 0.0
  %3109 = vmatpush1.msra.mxu0 0.0
  %3110 = vmatprep.subr.mxu0 0.0
  %3111 = vmatpush1.msra.mxu0 0.0
  %3112 = vmatprep.subr.mxu0 0.0
  %3113 = vmatpush1.msra.mxu0 0.0
  %3114 = vmatprep.subr.mxu0 0.0
  %3115 = vmatpush1.msra.mxu0 0.0
  %3116 = vmatprep.subr.mxu0 0.0
  %3117 = vmatpush1.msra.mxu0 0.0
  %3118 = vmatprep.subr.mxu0 0.0
  %3119 = vmatpush1.msra.mxu0 0.0
  %3120 = vmatprep.subr.mxu0 0.0
  %3121 = vmatpush1.msra.mxu0 0.0
  %3122 = vmatprep.subr.mxu0 0.0
  %3123 = vmatpush1.msra.mxu0 0.0
  %3124 = vmatprep.subr.mxu0 0.0
  %3125 = vmatpush1.msra.mxu0 0.0
  %3126 = vmatprep.subr.mxu0 0.0
  %3127 = vmatpush1.msra.mxu0 0.0
  %3128 = vmatprep.subr.mxu0 0.0
  %3129 = vmatpush1.msra.mxu0 0.0
  %3130 = vmatprep.subr.mxu0 0.0
  %3131 = vmatpush1.msra.mxu0 0.0
  %3132 = vmatprep.subr.mxu0 0.0
  %3133 = vmatpush1.msra.mxu0 0.0
  %3134 = vmatprep.subr.mxu0 0.0
  %3135 = vmatpush1.msra.mxu0 0.0
  %3136 = vmatprep.subr.mxu0 0.0
  %3137 = vmatpush1.msra.mxu0 0.0
  %3138 = vmatprep.subr.mxu0 0.0
  %3139 = vmatpush1.msra.mxu0 0.0
  %3140 = vmatprep.subr.mxu0 0.0
  %3141 = vmatpush1.msra.mxu0 0.0
  %3142 = vmatprep.subr.mxu0 0.0
  %3143 = vmatpush1.msra.mxu0 0.0
  %3144 = vmatprep.subr.mxu0 0.0
  %3145 = vmatpush1.msra.mxu0 0.0
  %3146 = vmatprep.subr.mxu0 0.0
  %3147 = vmatpush1.msra.mxu0 0.0
  %3148 = vmatprep.subr.mxu0 0.0
  %3149 = vmatpush1.msra.mxu0 0.0
  %3150 = vmatprep.subr.mxu0 0.0
  %3151 = vmatpush1.msra.mxu0 0.0
  %3152 = vmatprep.subr.mxu0 0.0
  %3153 = vmatpush1.msra.mxu0 0.0
  %3154 = vmatprep.subr.mxu0 0.0
  %3155 = vmatpush1.msra.mxu0 0.0
  %3156 = vmatprep.subr.mxu0 0.0
  %3157 = vmatpush1.msra.mxu0 0.0
  %3158 = vmatprep.subr.mxu0 0.0
  %3159 = vmatpush1.msra.mxu0 0.0
  %3160 = vmatprep.subr.mxu0 0.0
  %3161 = vmatpush1.msra.mxu0 0.0
  %3162 = vmatprep.subr.mxu0 0.0
  %3163 = vmatpush1.msra.mxu0 0.0
  %3164 = vmatprep.subr.mxu0 0.0
  %3165 = vmatpush1.msra.mxu0 0.0
  %3166 = vmatprep.subr.mxu0 0.0
  %3167 = vmatpush1.msra.mxu0 0.0
  %3168 = vmatprep.subr.mxu0 0.0
  %3169 = vmatpush1.msra.mxu0 0.0
  %3170 = vmatprep.mubr.f32.mxu0 0.0
  %3171 = vmatmul.mubr.f32.gmra.mrb[0].mxu0 %v3104
  %v3172 = vpop.f32.mrb[0].mxu0
  %v3173 = vadd.f32 0.0, %v3172
  %v3174 = vpop.f32.mrb[0].mxu0
  %3175 = vdwg.mxu0
  %3176 = vrot.lane.b32.xlu0 %v2867, 120
  %v3177 = vpop.permute.xlu0 %3176
  %3178 = vrot.lane.b32.xlu0 %v2937, 120
  %v3179 = vpop.permute.xlu0 %3178
  %v3180 = vsel %vm650, %v3177, 0
  %v3182 = vsel %vm650, %v3179, 0
  %3184 = vmatprep.subr.mxu0 0.0
  %3185 = vmatpush1.xpose.msra.mxu0 %v3182
  %3186 = vmatprep.subr.mxu0 0.0
  %3187 = vmatpush1.xpose.msra.mxu0 0.0
  %3188 = vmatprep.subr.mxu0 0.0
  %3189 = vmatpush1.xpose.msra.mxu0 0.0
  %3190 = vmatprep.subr.mxu0 0.0
  %3191 = vmatpush1.xpose.msra.mxu0 0.0
  %3192 = vmatprep.subr.mxu0 0.0
  %3193 = vmatpush1.xpose.msra.mxu0 0.0
  %3194 = vmatprep.subr.mxu0 0.0
  %3195 = vmatpush1.xpose.msra.mxu0 0.0
  %3196 = vmatprep.subr.mxu0 0.0
  %3197 = vmatpush1.xpose.msra.mxu0 0.0
  %3198 = vmatprep.subr.mxu0 0.0
  %3199 = vmatpush1.xpose.msra.mxu0 0.0
  %3200 = vmatprep.subr.mxu0 0.0
  %3201 = vmatpush1.xpose.msra.mxu0 0.0
  %3202 = vmatprep.subr.mxu0 0.0
  %3203 = vmatpush1.xpose.msra.mxu0 0.0
  %3204 = vmatprep.subr.mxu0 0.0
  %3205 = vmatpush1.xpose.msra.mxu0 0.0
  %3206 = vmatprep.subr.mxu0 0.0
  %3207 = vmatpush1.xpose.msra.mxu0 0.0
  %3208 = vmatprep.subr.mxu0 0.0
  %3209 = vmatpush1.xpose.msra.mxu0 0.0
  %3210 = vmatprep.subr.mxu0 0.0
  %3211 = vmatpush1.xpose.msra.mxu0 0.0
  %3212 = vmatprep.subr.mxu0 0.0
  %3213 = vmatpush1.xpose.msra.mxu0 0.0
  %3214 = vmatprep.subr.mxu0 0.0
  %3215 = vmatpush1.xpose.msra.mxu0 0.0
  %3216 = vmatprep.subr.mxu0 0.0
  %3217 = vmatpush1.xpose.msra.mxu0 0.0
  %3218 = vmatprep.subr.mxu0 0.0
  %3219 = vmatpush1.xpose.msra.mxu0 0.0
  %3220 = vmatprep.subr.mxu0 0.0
  %3221 = vmatpush1.xpose.msra.mxu0 0.0
  %3222 = vmatprep.subr.mxu0 0.0
  %3223 = vmatpush1.xpose.msra.mxu0 0.0
  %3224 = vmatprep.subr.mxu0 0.0
  %3225 = vmatpush1.xpose.msra.mxu0 0.0
  %3226 = vmatprep.subr.mxu0 0.0
  %3227 = vmatpush1.xpose.msra.mxu0 0.0
  %3228 = vmatprep.subr.mxu0 0.0
  %3229 = vmatpush1.xpose.msra.mxu0 0.0
  %3230 = vmatprep.subr.mxu0 0.0
  %3231 = vmatpush1.xpose.msra.mxu0 0.0
  %3232 = vmatprep.subr.mxu0 0.0
  %3233 = vmatpush1.xpose.msra.mxu0 0.0
  %3234 = vmatprep.subr.mxu0 0.0
  %3235 = vmatpush1.xpose.msra.mxu0 0.0
  %3236 = vmatprep.subr.mxu0 0.0
  %3237 = vmatpush1.xpose.msra.mxu0 0.0
  %3238 = vmatprep.subr.mxu0 0.0
  %3239 = vmatpush1.xpose.msra.mxu0 0.0
  %3240 = vmatprep.subr.mxu0 0.0
  %3241 = vmatpush1.xpose.msra.mxu0 0.0
  %3242 = vmatprep.subr.mxu0 0.0
  %3243 = vmatpush1.xpose.msra.mxu0 0.0
  %3244 = vmatprep.subr.mxu0 0.0
  %3245 = vmatpush1.xpose.msra.mxu0 0.0
  %3246 = vmatprep.subr.mxu0 0.0
  %3247 = vmatpush1.xpose.msra.mxu0 0.0
  %3248 = vmatprep.mubr.f32.mxu0 0.0
  %3249 = vmatmul.mubr.f32.gmra.mrb[0].mxu0 %v3180
  %v3250 = vpop.f32.mrb[0].mxu0
  %v3251 = vadd.f32 %v3014, %v3250
  %v3252 = vpop.f32.mrb[0].mxu0
  %3253 = vdwg.mxu0
  %v3254 = vsel %vm650, %v3251, -inf
  %3255 = vmax.xlane.f32.xlu0 %v3254
  %v3256 = vpop.xlane.xlu0 %3255
  %v3257 = vsub.f32 %v3251, %v3256
  %v3258 = vmul.f32 %v3257, 1.442695
  %v3259 = vpow.pop %v3258
  %v3260 = vsel %vm650, %v3259, 0.0
  %3261 = vadd.xlane.f32.xlu0 %v3260
  %v3262 = vpop.xlane.xlu0 %3261
  %v3263 = vrcp.pop %v3262
  %v3264 = vmul.f32 %v3259, %v3263
  %3266 = vrot.lane.b32.xlu0 %v3007, 120
  %v3267 = vpop.permute.xlu0 %3266
  %v3270 = vsel %vm650, %v3264, 0
  %3272 = vmatprep.subr.mxu0 0.0
  %3273 = vmatpush1.msra.mxu0 %v3267
  %3274 = vmatprep.subr.mxu0 0.0
  %3275 = vmatpush1.msra.mxu0 0.0
  %3276 = vmatprep.subr.mxu0 0.0
  %3277 = vmatpush1.msra.mxu0 0.0
  %3278 = vmatprep.subr.mxu0 0.0
  %3279 = vmatpush1.msra.mxu0 0.0
  %3280 = vmatprep.subr.mxu0 0.0
  %3281 = vmatpush1.msra.mxu0 0.0
  %3282 = vmatprep.subr.mxu0 0.0
  %3283 = vmatpush1.msra.mxu0 0.0
  %3284 = vmatprep.subr.mxu0 0.0
  %3285 = vmatpush1.msra.mxu0 0.0
  %3286 = vmatprep.subr.mxu0 0.0
  %3287 = vmatpush1.msra.mxu0 0.0
  %3288 = vmatprep.subr.mxu0 0.0
  %3289 = vmatpush1.msra.mxu0 0.0
  %3290 = vmatprep.subr.mxu0 0.0
  %3291 = vmatpush1.msra.mxu0 0.0
  %3292 = vmatprep.subr.mxu0 0.0
  %3293 = vmatpush1.msra.mxu0 0.0
  %3294 = vmatprep.subr.mxu0 0.0
  %3295 = vmatpush1.msra.mxu0 0.0
  %3296 = vmatprep.subr.mxu0 0.0
  %3297 = vmatpush1.msra.mxu0 0.0
  %3298 = vmatprep.subr.mxu0 0.0
  %3299 = vmatpush1.msra.mxu0 0.0
  %3300 = vmatprep.subr.mxu0 0.0
  %3301 = vmatpush1.msra.mxu0 0.0
  %3302 = vmatprep.subr.mxu0 0.0
  %3303 = vmatpush1.msra.mxu0 0.0
  %3304 = vmatprep.subr.mxu0 0.0
  %3305 = vmatpush1.msra.mxu0 0.0
  %3306 = vmatprep.subr.mxu0 0.0
  %3307 = vmatpush1.msra.mxu0 0.0
  %3308 = vmatprep.subr.mxu0 0.0
  %3309 = vmatpush1.msra.mxu0 0.0
  %3310 = vmatprep.subr.mxu0 0.0
  %3311 = vmatpush1.msra.mxu0 0.0
  %3312 = vmatprep.subr.mxu0 0.0
  %3313 = vmatpush1.msra.mxu0 0.0
  %3314 = vmatprep.subr.mxu0 0.0
  %3315 = vmatpush1.msra.mxu0 0.0
  %3316 = vmatprep.subr.mxu0 0.0
  %3317 = vmatpush1.msra.mxu0 0.0
  %3318 = vmatprep.subr.mxu0 0.0
  %3319 = vmatpush1.msra.mxu0 0.0
  %3320 = vmatprep.subr.mxu0 0.0
  %3321 = vmatpush1.msra.mxu0 0.0
  %3322 = vmatprep.subr.mxu0 0.0
  %3323 = vmatpush1.msra.mxu0 0.0
  %3324 = vmatprep.subr.mxu0 0.0
  %3325 = vmatpush1.msra.mxu0 0.0
  %3326 = vmatprep.subr.mxu0 0.0
  %3327 = vmatpush1.msra.mxu0 0.0
  %3328 = vmatprep.subr.mxu0 0.0
  %3329 = vmatpush1.msra.mxu0 0.0
  %3330 = vmatprep.subr.mxu0 0.0
  %3331 = vmatpush1.msra.mxu0 0.0
  %3332 = vmatprep.subr.mxu0 0.0
  %3333 = vmatpush1.msra.mxu0 0.0
  %3334 = vmatprep.subr.mxu0 0.0
  %3335 = vmatpush1.msra.mxu0 0.0
  %3336 = vmatprep.mubr.f32.mxu0 0.0
  %3337 = vmatmul.mubr.f32.gmra.mrb[0].mxu0 %v3270
  %v3338 = vpop.f32.mrb[0].mxu0
  %v3339 = vadd.f32 0.0, %v3338
  %v3340 = vpop.f32.mrb[0].mxu0
  %3341 = vdwg.mxu0
  %3342 = vrot.lane.b32.xlu0 %v2867, 112
  %v3343 = vpop.permute.xlu0 %3342
  %3344 = vrot.lane.b32.xlu0 %v2937, 112
  %v3345 = vpop.permute.xlu0 %3344
  %v3346 = vsel %vm650, %v3343, 0
  %v3348 = vsel %vm650, %v3345, 0
  %3350 = vmatprep.subr.mxu0 0.0
  %3351 = vmatpush1.xpose.msra.mxu0 %v3348
  %3352 = vmatprep.subr.mxu0 0.0
  %3353 = vmatpush1.xpose.msra.mxu0 0.0
  %3354 = vmatprep.subr.mxu0 0.0
  %3355 = vmatpush1.xpose.msra.mxu0 0.0
  %3356 = vmatprep.subr.mxu0 0.0
  %3357 = vmatpush1.xpose.msra.mxu0 0.0
  %3358 = vmatprep.subr.mxu0 0.0
  %3359 = vmatpush1.xpose.msra.mxu0 0.0
  %3360 = vmatprep.subr.mxu0 0.0
  %3361 = vmatpush1.xpose.msra.mxu0 0.0
  %3362 = vmatprep.subr.mxu0 0.0
  %3363 = vmatpush1.xpose.msra.mxu0 0.0
  %3364 = vmatprep.subr.mxu0 0.0
  %3365 = vmatpush1.xpose.msra.mxu0 0.0
  %3366 = vmatprep.subr.mxu0 0.0
  %3367 = vmatpush1.xpose.msra.mxu0 0.0
  %3368 = vmatprep.subr.mxu0 0.0
  %3369 = vmatpush1.xpose.msra.mxu0 0.0
  %3370 = vmatprep.subr.mxu0 0.0
  %3371 = vmatpush1.xpose.msra.mxu0 0.0
  %3372 = vmatprep.subr.mxu0 0.0
  %3373 = vmatpush1.xpose.msra.mxu0 0.0
  %3374 = vmatprep.subr.mxu0 0.0
  %3375 = vmatpush1.xpose.msra.mxu0 0.0
  %3376 = vmatprep.subr.mxu0 0.0
  %3377 = vmatpush1.xpose.msra.mxu0 0.0
  %3378 = vmatprep.subr.mxu0 0.0
  %3379 = vmatpush1.xpose.msra.mxu0 0.0
  %3380 = vmatprep.subr.mxu0 0.0
  %3381 = vmatpush1.xpose.msra.mxu0 0.0
  %3382 = vmatprep.subr.mxu0 0.0
  %3383 = vmatpush1.xpose.msra.mxu0 0.0
  %3384 = vmatprep.subr.mxu0 0.0
  %3385 = vmatpush1.xpose.msra.mxu0 0.0
  %3386 = vmatprep.subr.mxu0 0.0
  %3387 = vmatpush1.xpose.msra.mxu0 0.0
  %3388 = vmatprep.subr.mxu0 0.0
  %3389 = vmatpush1.xpose.msra.mxu0 0.0
  %3390 = vmatprep.subr.mxu0 0.0
  %3391 = vmatpush1.xpose.msra.mxu0 0.0
  %3392 = vmatprep.subr.mxu0 0.0
  %3393 = vmatpush1.xpose.msra.mxu0 0.0
  %3394 = vmatprep.subr.mxu0 0.0
  %3395 = vmatpush1.xpose.msra.mxu0 0.0
  %3396 = vmatprep.subr.mxu0 0.0
  %3397 = vmatpush1.xpose.msra.mxu0 0.0
  %3398 = vmatprep.subr.mxu0 0.0
  %3399 = vmatpush1.xpose.msra.mxu0 0.0
  %3400 = vmatprep.subr.mxu0 0.0
  %3401 = vmatpush1.xpose.msra.mxu0 0.0
  %3402 = vmatprep.subr.mxu0 0.0
  %3403 = vmatpush1.xpose.msra.mxu0 0.0
  %3404 = vmatprep.subr.mxu0 0.0
  %3405 = vmatpush1.xpose.msra.mxu0 0.0
  %3406 = vmatprep.subr.mxu0 0.0
  %3407 = vmatpush1.xpose.msra.mxu0 0.0
  %3408 = vmatprep.subr.mxu0 0.0
  %3409 = vmatpush1.xpose.msra.mxu0 0.0
  %3410 = vmatprep.subr.mxu0 0.0
  %3411 = vmatpush1.xpose.msra.mxu0 0.0
  %3412 = vmatprep.subr.mxu0 0.0
  %3413 = vmatpush1.xpose.msra.mxu0 0.0
  %3414 = vmatprep.mubr.f32.mxu0 0.0
  %3415 = vmatmul.mubr.f32.gmra.mrb[0].mxu0 %v3346
  %v3416 = vpop.f32.mrb[0].mxu0
  %v3417 = vadd.f32 %v3014, %v3416
  %v3418 = vpop.f32.mrb[0].mxu0
  %3419 = vdwg.mxu0
  %v3420 = vsel %vm650, %v3417, -inf
  %3421 = vmax.xlane.f32.xlu0 %v3420
  %v3422 = vpop.xlane.xlu0 %3421
  %v3423 = vsub.f32 %v3417, %v3422
  %v3424 = vmul.f32 %v3423, 1.442695
  %v3425 = vpow.pop %v3424
  %v3426 = vsel %vm650, %v3425, 0.0
  %3427 = vadd.xlane.f32.xlu0 %v3426
  %v3428 = vpop.xlane.xlu0 %3427
  %v3429 = vrcp.pop %v3428
  %v3430 = vmul.f32 %v3425, %v3429
  %3431 = vrot.lane.b32.xlu0 %v3007, 112
  %v3432 = vpop.permute.xlu0 %3431
  %v3435 = vsel %vm650, %v3430, 0
  %3437 = vmatprep.subr.mxu0 0.0
  %3438 = vmatpush1.msra.mxu0 %v3432
  %3439 = vmatprep.subr.mxu0 0.0
  %3440 = vmatpush1.msra.mxu0 0.0
  %3441 = vmatprep.subr.mxu0 0.0
  %3442 = vmatpush1.msra.mxu0 0.0
  %3443 = vmatprep.subr.mxu0 0.0
  %3444 = vmatpush1.msra.mxu0 0.0
  %3445 = vmatprep.subr.mxu0 0.0
  %3446 = vmatpush1.msra.mxu0 0.0
  %3447 = vmatprep.subr.mxu0 0.0
  %3448 = vmatpush1.msra.mxu0 0.0
  %3449 = vmatprep.subr.mxu0 0.0
  %3450 = vmatpush1.msra.mxu0 0.0
  %3451 = vmatprep.subr.mxu0 0.0
  %3452 = vmatpush1.msra.mxu0 0.0
  %3453 = vmatprep.subr.mxu0 0.0
  %3454 = vmatpush1.msra.mxu0 0.0
  %3455 = vmatprep.subr.mxu0 0.0
  %3456 = vmatpush1.msra.mxu0 0.0
  %3457 = vmatprep.subr.mxu0 0.0
  %3458 = vmatpush1.msra.mxu0 0.0
  %3459 = vmatprep.subr.mxu0 0.0
  %3460 = vmatpush1.msra.mxu0 0.0
  %3461 = vmatprep.subr.mxu0 0.0
  %3462 = vmatpush1.msra.mxu0 0.0
  %3463 = vmatprep.subr.mxu0 0.0
  %3464 = vmatpush1.msra.mxu0 0.0
  %3465 = vmatprep.subr.mxu0 0.0
  %3466 = vmatpush1.msra.mxu0 0.0
  %3467 = vmatprep.subr.mxu0 0.0
  %3468 = vmatpush1.msra.mxu0 0.0
  %3469 = vmatprep.subr.mxu0 0.0
  %3470 = vmatpush1.msra.mxu0 0.0
  %3471 = vmatprep.subr.mxu0 0.0
  %3472 = vmatpush1.msra.mxu0 0.0
  %3473 = vmatprep.subr.mxu0 0.0
  %3474 = vmatpush1.msra.mxu0 0.0
  %3475 = vmatprep.subr.mxu0 0.0
  %3476 = vmatpush1.msra.mxu0 0.0
  %3477 = vmatprep.subr.mxu0 0.0
  %3478 = vmatpush1.msra.mxu0 0.0
  %3479 = vmatprep.subr.mxu0 0.0
  %3480 = vmatpush1.msra.mxu0 0.0
  %3481 = vmatprep.subr.mxu0 0.0
  %3482 = vmatpush1.msra.mxu0 0.0
  %3483 = vmatprep.subr.mxu0 0.0
  %3484 = vmatpush1.msra.mxu0 0.0
  %3485 = vmatprep.subr.mxu0 0.0
  %3486 = vmatpush1.msra.mxu0 0.0
  %3487 = vmatprep.subr.mxu0 0.0
  %3488 = vmatpush1.msra.mxu0 0.0
  %3489 = vmatprep.subr.mxu0 0.0
  %3490 = vmatpush1.msra.mxu0 0.0
  %3491 = vmatprep.subr.mxu0 0.0
  %3492 = vmatpush1.msra.mxu0 0.0
  %3493 = vmatprep.subr.mxu0 0.0
  %3494 = vmatpush1.msra.mxu0 0.0
  %3495 = vmatprep.subr.mxu0 0.0
  %3496 = vmatpush1.msra.mxu0 0.0
  %3497 = vmatprep.subr.mxu0 0.0
  %3498 = vmatpush1.msra.mxu0 0.0
  %3499 = vmatprep.subr.mxu0 0.0
  %3500 = vmatpush1.msra.mxu0 0.0
  %3501 = vmatprep.mubr.f32.mxu0 0.0
  %3502 = vmatmul.mubr.f32.gmra.mrb[0].mxu0 %v3435
  %v3503 = vpop.f32.mrb[0].mxu0
  %v3504 = vadd.f32 0.0, %v3503
  %v3505 = vpop.f32.mrb[0].mxu0
  %3506 = vdwg.mxu0
  %3507 = vrot.lane.b32.xlu0 %v2867, 104
  %v3508 = vpop.permute.xlu0 %3507
  %3509 = vrot.lane.b32.xlu0 %v2937, 104
  %v3510 = vpop.permute.xlu0 %3509
  %v3511 = vsel %vm650, %v3508, 0
  %v3513 = vsel %vm650, %v3510, 0
  %3515 = vmatprep.subr.mxu0 0.0
  %3516 = vmatpush1.xpose.msra.mxu0 %v3513
  %3517 = vmatprep.subr.mxu0 0.0
  %3518 = vmatpush1.xpose.msra.mxu0 0.0
  %3519 = vmatprep.subr.mxu0 0.0
  %3520 = vmatpush1.xpose.msra.mxu0 0.0
  %3521 = vmatprep.subr.mxu0 0.0
  %3522 = vmatpush1.xpose.msra.mxu0 0.0
  %3523 = vmatprep.subr.mxu0 0.0
  %3524 = vmatpush1.xpose.msra.mxu0 0.0
  %3525 = vmatprep.subr.mxu0 0.0
  %3526 = vmatpush1.xpose.msra.mxu0 0.0
  %3527 = vmatprep.subr.mxu0 0.0
  %3528 = vmatpush1.xpose.msra.mxu0 0.0
  %3529 = vmatprep.subr.mxu0 0.0
  %3530 = vmatpush1.xpose.msra.mxu0 0.0
  %3531 = vmatprep.subr.mxu0 0.0
  %3532 = vmatpush1.xpose.msra.mxu0 0.0
  %3533 = vmatprep.subr.mxu0 0.0
  %3534 = vmatpush1.xpose.msra.mxu0 0.0
  %3535 = vmatprep.subr.mxu0 0.0
  %3536 = vmatpush1.xpose.msra.mxu0 0.0
  %3537 = vmatprep.subr.mxu0 0.0
  %3538 = vmatpush1.xpose.msra.mxu0 0.0
  %3539 = vmatprep.subr.mxu0 0.0
  %3540 = vmatpush1.xpose.msra.mxu0 0.0
  %3541 = vmatprep.subr.mxu0 0.0
  %3542 = vmatpush1.xpose.msra.mxu0 0.0
  %3543 = vmatprep.subr.mxu0 0.0
  %3544 = vmatpush1.xpose.msra.mxu0 0.0
  %3545 = vmatprep.subr.mxu0 0.0
  %3546 = vmatpush1.xpose.msra.mxu0 0.0
  %3547 = vmatprep.subr.mxu0 0.0
  %3548 = vmatpush1.xpose.msra.mxu0 0.0
  %3549 = vmatprep.subr.mxu0 0.0
  %3550 = vmatpush1.xpose.msra.mxu0 0.0
  %3551 = vmatprep.subr.mxu0 0.0
  %3552 = vmatpush1.xpose.msra.mxu0 0.0
  %3553 = vmatprep.subr.mxu0 0.0
  %3554 = vmatpush1.xpose.msra.mxu0 0.0
  %3555 = vmatprep.subr.mxu0 0.0
  %3556 = vmatpush1.xpose.msra.mxu0 0.0
  %3557 = vmatprep.subr.mxu0 0.0
  %3558 = vmatpush1.xpose.msra.mxu0 0.0
  %3559 = vmatprep.subr.mxu0 0.0
  %3560 = vmatpush1.xpose.msra.mxu0 0.0
  %3561 = vmatprep.subr.mxu0 0.0
  %3562 = vmatpush1.xpose.msra.mxu0 0.0
  %3563 = vmatprep.subr.mxu0 0.0
  %3564 = vmatpush1.xpose.msra.mxu0 0.0
  %3565 = vmatprep.subr.mxu0 0.0
  %3566 = vmatpush1.xpose.msra.mxu0 0.0
  %3567 = vmatprep.subr.mxu0 0.0
  %3568 = vmatpush1.xpose.msra.mxu0 0.0
  %3569 = vmatprep.subr.mxu0 0.0
  %3570 = vmatpush1.xpose.msra.mxu0 0.0
  %3571 = vmatprep.subr.mxu0 0.0
  %3572 = vmatpush1.xpose.msra.mxu0 0.0
  %3573 = vmatprep.subr.mxu0 0.0
  %3574 = vmatpush1.xpose.msra.mxu0 0.0
  %3575 = vmatprep.subr.mxu0 0.0
  %3576 = vmatpush1.xpose.msra.mxu0 0.0
  %3577 = vmatprep.subr.mxu0 0.0
  %3578 = vmatpush1.xpose.msra.mxu0 0.0
  %3579 = vmatprep.mubr.f32.mxu0 0.0
  %3580 = vmatmul.mubr.f32.gmra.mrb[0].mxu0 %v3511
  %v3581 = vpop.f32.mrb[0].mxu0
  %v3582 = vadd.f32 %v3014, %v3581
  %v3583 = vpop.f32.mrb[0].mxu0
  %3584 = vdwg.mxu0
  %v3585 = vsel %vm650, %v3582, -inf
  %3586 = vmax.xlane.f32.xlu0 %v3585
  %v3587 = vpop.xlane.xlu0 %3586
  %v3588 = vsub.f32 %v3582, %v3587
  %v3589 = vmul.f32 %v3588, 1.442695
  %v3590 = vpow.pop %v3589
  %v3591 = vsel %vm650, %v3590, 0.0
  %3592 = vadd.xlane.f32.xlu0 %v3591
  %v3593 = vpop.xlane.xlu0 %3592
  %v3594 = vrcp.pop %v3593
  %v3595 = vmul.f32 %v3590, %v3594
  %3596 = vrot.lane.b32.xlu0 %v3007, 104
  %v3597 = vpop.permute.xlu0 %3596
  %v3600 = vsel %vm650, %v3595, 0
  %3602 = vmatprep.subr.mxu0 0.0
  %3603 = vmatpush1.msra.mxu0 %v3597
  %3604 = vmatprep.subr.mxu0 0.0
  %3605 = vmatpush1.msra.mxu0 0.0
  %3606 = vmatprep.subr.mxu0 0.0
  %3607 = vmatpush1.msra.mxu0 0.0
  %3608 = vmatprep.subr.mxu0 0.0
  %3609 = vmatpush1.msra.mxu0 0.0
  %3610 = vmatprep.subr.mxu0 0.0
  %3611 = vmatpush1.msra.mxu0 0.0
  %3612 = vmatprep.subr.mxu0 0.0
  %3613 = vmatpush1.msra.mxu0 0.0
  %3614 = vmatprep.subr.mxu0 0.0
  %3615 = vmatpush1.msra.mxu0 0.0
  %3616 = vmatprep.subr.mxu0 0.0
  %3617 = vmatpush1.msra.mxu0 0.0
  %3618 = vmatprep.subr.mxu0 0.0
  %3619 = vmatpush1.msra.mxu0 0.0
  %3620 = vmatprep.subr.mxu0 0.0
  %3621 = vmatpush1.msra.mxu0 0.0
  %3622 = vmatprep.subr.mxu0 0.0
  %3623 = vmatpush1.msra.mxu0 0.0
  %3624 = vmatprep.subr.mxu0 0.0
  %3625 = vmatpush1.msra.mxu0 0.0
  %3626 = vmatprep.subr.mxu0 0.0
  %3627 = vmatpush1.msra.mxu0 0.0
  %3628 = vmatprep.subr.mxu0 0.0
  %3629 = vmatpush1.msra.mxu0 0.0
  %3630 = vmatprep.subr.mxu0 0.0
  %3631 = vmatpush1.msra.mxu0 0.0
  %3632 = vmatprep.subr.mxu0 0.0
  %3633 = vmatpush1.msra.mxu0 0.0
  %3634 = vmatprep.subr.mxu0 0.0
  %3635 = vmatpush1.msra.mxu0 0.0
  %3636 = vmatprep.subr.mxu0 0.0
  %3637 = vmatpush1.msra.mxu0 0.0
  %3638 = vmatprep.subr.mxu0 0.0
  %3639 = vmatpush1.msra.mxu0 0.0
  %3640 = vmatprep.subr.mxu0 0.0
  %3641 = vmatpush1.msra.mxu0 0.0
  %3642 = vmatprep.subr.mxu0 0.0
  %3643 = vmatpush1.msra.mxu0 0.0
  %3644 = vmatprep.subr.mxu0 0.0
  %3645 = vmatpush1.msra.mxu0 0.0
  %3646 = vmatprep.subr.mxu0 0.0
  %3647 = vmatpush1.msra.mxu0 0.0
  %3648 = vmatprep.subr.mxu0 0.0
  %3649 = vmatpush1.msra.mxu0 0.0
  %3650 = vmatprep.subr.mxu0 0.0
  %3651 = vmatpush1.msra.mxu0 0.0
  %3652 = vmatprep.subr.mxu0 0.0
  %3653 = vmatpush1.msra.mxu0 0.0
  %3654 = vmatprep.subr.mxu0 0.0
  %3655 = vmatpush1.msra.mxu0 0.0
  %3656 = vmatprep.subr.mxu0 0.0
  %3657 = vmatpush1.msra.mxu0 0.0
  %3658 = vmatprep.subr.mxu0 0.0
  %3659 = vmatpush1.msra.mxu0 0.0
  %3660 = vmatprep.subr.mxu0 0.0
  %3661 = vmatpush1.msra.mxu0 0.0
  %3662 = vmatprep.subr.mxu0 0.0
  %3663 = vmatpush1.msra.mxu0 0.0
  %3664 = vmatprep.subr.mxu0 0.0
  %3665 = vmatpush1.msra.mxu0 0.0
  %3666 = vmatprep.mubr.f32.mxu0 0.0
  %3667 = vmatmul.mubr.f32.gmra.mrb[0].mxu0 %v3600
  %v3668 = vpop.f32.mrb[0].mxu0
  %v3669 = vadd.f32 0.0, %v3668
  %v3670 = vpop.f32.mrb[0].mxu0
  %3671 = vdwg.mxu0
  %3673 = vrot.lane.b32.xlu0 %v3339, 8
  %v3674 = vpop.permute.xlu0 %3673
  %3677 = vrot.lane.b32.xlu0 %v3504, 16
  %v3678 = vpop.permute.xlu0 %3677
  %3681 = vrot.lane.b32.xlu0 %v3669, 24
  %v3682 = vpop.permute.xlu0 %3681
  %v3684 = vsel %vm650, %v3173, %v3674
  %v3685 = vsel %vm1320, %v3684, %v3678
  %v3686 = vsel %vm1322, %v3685, %v3682
  %v3688 = vsel %vm311, %v3686, 0
  %3690 = vmatprep.subr.mxu0 0.0
  %3691 = vmatpush1.msra.mxu0 %v114
  %3692 = vmatprep.subr.mxu0 0.0
  %3693 = vmatpush1.msra.mxu0 %v115
  %3694 = vmatprep.subr.mxu0 0.0
  %3695 = vmatpush1.msra.mxu0 %v116
  %3696 = vmatprep.subr.mxu0 0.0
  %3697 = vmatpush1.msra.mxu0 %v117
  %3698 = vmatprep.subr.mxu0 0.0
  %3699 = vmatpush1.msra.mxu0 0.0
  %3700 = vmatprep.subr.mxu0 0.0
  %3701 = vmatpush1.msra.mxu0 0.0
  %3702 = vmatprep.subr.mxu0 0.0
  %3703 = vmatpush1.msra.mxu0 0.0
  %3704 = vmatprep.subr.mxu0 0.0
  %3705 = vmatpush1.msra.mxu0 0.0
  %3706 = vmatprep.subr.mxu0 0.0
  %3707 = vmatpush1.msra.mxu0 0.0
  %3708 = vmatprep.subr.mxu0 0.0
  %3709 = vmatpush1.msra.mxu0 0.0
  %3710 = vmatprep.subr.mxu0 0.0
  %3711 = vmatpush1.msra.mxu0 0.0
  %3712 = vmatprep.subr.mxu0 0.0
  %3713 = vmatpush1.msra.mxu0 0.0
  %3714 = vmatprep.subr.mxu0 0.0
  %3715 = vmatpush1.msra.mxu0 0.0
  %3716 = vmatprep.subr.mxu0 0.0
  %3717 = vmatpush1.msra.mxu0 0.0
  %3718 = vmatprep.subr.mxu0 0.0
  %3719 = vmatpush1.msra.mxu0 0.0
  %3720 = vmatprep.subr.mxu0 0.0
  %3721 = vmatpush1.msra.mxu0 0.0
  %3722 = vmatprep.subr.mxu0 0.0
  %3723 = vmatpush1.msra.mxu0 0.0
  %3724 = vmatprep.subr.mxu0 0.0
  %3725 = vmatpush1.msra.mxu0 0.0
  %3726 = vmatprep.subr.mxu0 0.0
  %3727 = vmatpush1.msra.mxu0 0.0
  %3728 = vmatprep.subr.mxu0 0.0
  %3729 = vmatpush1.msra.mxu0 0.0
  %3730 = vmatprep.subr.mxu0 0.0
  %3731 = vmatpush1.msra.mxu0 0.0
  %3732 = vmatprep.subr.mxu0 0.0
  %3733 = vmatpush1.msra.mxu0 0.0
  %3734 = vmatprep.subr.mxu0 0.0
  %3735 = vmatpush1.msra.mxu0 0.0
  %3736 = vmatprep.subr.mxu0 0.0
  %3737 = vmatpush1.msra.mxu0 0.0
  %3738 = vmatprep.subr.mxu0 0.0
  %3739 = vmatpush1.msra.mxu0 0.0
  %3740 = vmatprep.subr.mxu0 0.0
  %3741 = vmatpush1.msra.mxu0 0.0
  %3742 = vmatprep.subr.mxu0 0.0
  %3743 = vmatpush1.msra.mxu0 0.0
  %3744 = vmatprep.subr.mxu0 0.0
  %3745 = vmatpush1.msra.mxu0 0.0
  %3746 = vmatprep.subr.mxu0 0.0
  %3747 = vmatpush1.msra.mxu0 0.0
  %3748 = vmatprep.subr.mxu0 0.0
  %3749 = vmatpush1.msra.mxu0 0.0
  %3750 = vmatprep.subr.mxu0 0.0
  %3751 = vmatpush1.msra.mxu0 0.0
  %3752 = vmatprep.subr.mxu0 0.0
  %3753 = vmatpush1.msra.mxu0 0.0
  %3754 = vmatprep.mubr.f32.mxu0 0.0
  %3755 = vmatmul.mubr.f32.gmra.mrb[0].mxu0 %v3688
  %v3756 = vpop.f32.mrb[0].mxu0
  %v3757 = vadd.f32 %v1328, %v3756
  %v3758 = vpop.f32.mrb[0].mxu0
  %3759 = vdwg.mxu0
  %3760 = vmatprep.subr.mxu0 %v2777
  %3761 = vmatpush1.msra.mxu0 %v2775
  %3762 = vmatprep.subr.mxu0 %v2783
  %3763 = vmatpush1.msra.mxu0 %v2781
  %3764 = vmatprep.subr.mxu0 %v2789
  %3765 = vmatpush1.msra.mxu0 %v2787
  %3766 = vmatprep.subr.mxu0 %v2795
  %3767 = vmatpush1.msra.mxu0 %v2793
  %3768 = vmatprep.subr.mxu0 0.0
  %3769 = vmatpush1.msra.mxu0 0.0
  %3770 = vmatprep.subr.mxu0 0.0
  %3771 = vmatpush1.msra.mxu0 0.0
  %3772 = vmatprep.subr.mxu0 0.0
  %3773 = vmatpush1.msra.mxu0 0.0
  %3774 = vmatprep.subr.mxu0 0.0
  %3775 = vmatpush1.msra.mxu0 0.0
  %3776 = vmatprep.subr.mxu0 0.0
  %3777 = vmatpush1.msra.mxu0 0.0
  %3778 = vmatprep.subr.mxu0 0.0
  %3779 = vmatpush1.msra.mxu0 0.0
  %3780 = vmatprep.subr.mxu0 0.0
  %3781 = vmatpush1.msra.mxu0 0.0
  %3782 = vmatprep.subr.mxu0 0.0
  %3783 = vmatpush1.msra.mxu0 0.0
  %3784 = vmatprep.subr.mxu0 0.0
  %3785 = vmatpush1.msra.mxu0 0.0
  %3786 = vmatprep.subr.mxu0 0.0
  %3787 = vmatpush1.msra.mxu0 0.0
  %3788 = vmatprep.subr.mxu0 0.0
  %3789 = vmatpush1.msra.mxu0 0.0
  %3790 = vmatprep.subr.mxu0 0.0
  %3791 = vmatpush1.msra.mxu0 0.0
  %3792 = vmatprep.subr.mxu0 0.0
  %3793 = vmatpush1.msra.mxu0 0.0
  %3794 = vmatprep.subr.mxu0 0.0
  %3795 = vmatpush1.msra.mxu0 0.0
  %3796 = vmatprep.subr.mxu0 0.0
  %3797 = vmatpush1.msra.mxu0 0.0
  %3798 = vmatprep.subr.mxu0 0.0
  %3799 = vmatpush1.msra.mxu0 0.0
  %3800 = vmatprep.subr.mxu0 0.0
  %3801 = vmatpush1.msra.mxu0 0.0
  %3802 = vmatprep.subr.mxu0 0.0
  %3803 = vmatpush1.msra.mxu0 0.0
  %3804 = vmatprep.subr.mxu0 0.0
  %3805 = vmatpush1.msra.mxu0 0.0
  %3806 = vmatprep.subr.mxu0 0.0
  %3807 = vmatpush1.msra.mxu0 0.0
  %3808 = vmatprep.subr.mxu0 0.0
  %3809 = vmatpush1.msra.mxu0 0.0
  %3810 = vmatprep.subr.mxu0 0.0
  %3811 = vmatpush1.msra.mxu0 0.0
  %3812 = vmatprep.subr.mxu0 0.0
  %3813 = vmatpush1.msra.mxu0 0.0
  %3814 = vmatprep.subr.mxu0 0.0
  %3815 = vmatpush1.msra.mxu0 0.0
  %3816 = vmatprep.subr.mxu0 0.0
  %3817 = vmatpush1.msra.mxu0 0.0
  %3818 = vmatprep.subr.mxu0 0.0
  %3819 = vmatpush1.msra.mxu0 0.0
  %3820 = vmatprep.subr.mxu0 0.0
  %3821 = vmatpush1.msra.mxu0 0.0
  %3822 = vmatprep.subr.mxu0 0.0
  %3823 = vmatpush1.msra.mxu0 0.0
  %3824 = vmatprep.mubr.f32.mxu0 0.0
  %3825 = vmatmul.mubr.f32.gmra.mrb[0].mxu0 %v1424
  %v3826 = vpop.f32.mrb[0].mxu0
  %v3827 = vadd.f32 %v1406, %v3826
  %v3828 = vpop.f32.mrb[0].mxu0
  %v3829 = vadd.f32 %v1406, %v3828
  %3830 = vmatprep.mubr.f32.mxu0 0.0
  %3831 = vmatmul.mubr.f32.gmra.mrb[0].mxu0 %v1427
  %v3832 = vpop.f32.mrb[0].mxu0
  %v3833 = vadd.f32 %v1411, %v3832
  %v3834 = vpop.f32.mrb[0].mxu0
  %v3835 = vadd.f32 %v1411, %v3834
  %3836 = vmatprep.mubr.f32.mxu0 0.0
  %3837 = vmatmul.mubr.f32.gmra.mrb[0].mxu0 %v1430
  %v3838 = vpop.f32.mrb[0].mxu0
  %v3839 = vadd.f32 %v1416, %v3838
  %v3840 = vpop.f32.mrb[0].mxu0
  %v3841 = vadd.f32 %v1416, %v3840
  %3842 = vmatprep.mubr.f32.mxu0 0.0
  %3843 = vmatmul.mubr.f32.gmra.mrb[0].mxu0 %v1433
  %v3844 = vpop.f32.mrb[0].mxu0
  %v3845 = vadd.f32 %v1421, %v3844
  %v3846 = vpop.f32.mrb[0].mxu0
  %v3847 = vadd.f32 %v1421, %v3846
  %3848 = vdwg.mxu0
  %v3850 = vsel %vm311, %v3757, 0
  %3852 = vmatprep.subr.mxu0 0.0
  %3853 = vmatpush1.msra.mxu0 %v127
  %3854 = vmatprep.subr.mxu0 0.0
  %3855 = vmatpush1.msra.mxu0 %v128
  %3856 = vmatprep.subr.mxu0 0.0
  %3857 = vmatpush1.msra.mxu0 %v129
  %3858 = vmatprep.subr.mxu0 0.0
  %3859 = vmatpush1.msra.mxu0 %v130
  %3860 = vmatprep.subr.mxu0 0.0
  %3861 = vmatpush1.msra.mxu0 0.0
  %3862 = vmatprep.subr.mxu0 0.0
  %3863 = vmatpush1.msra.mxu0 0.0
  %3864 = vmatprep.subr.mxu0 0.0
  %3865 = vmatpush1.msra.mxu0 0.0
  %3866 = vmatprep.subr.mxu0 0.0
  %3867 = vmatpush1.msra.mxu0 0.0
  %3868 = vmatprep.subr.mxu0 0.0
  %3869 = vmatpush1.msra.mxu0 0.0
  %3870 = vmatprep.subr.mxu0 0.0
  %3871 = vmatpush1.msra.mxu0 0.0
  %3872 = vmatprep.subr.mxu0 0.0
  %3873 = vmatpush1.msra.mxu0 0.0
  %3874 = vmatprep.subr.mxu0 0.0
  %3875 = vmatpush1.msra.mxu0 0.0
  %3876 = vmatprep.subr.mxu0 0.0
  %3877 = vmatpush1.msra.mxu0 0.0
  %3878 = vmatprep.subr.mxu0 0.0
  %3879 = vmatpush1.msra.mxu0 0.0
  %3880 = vmatprep.subr.mxu0 0.0
  %3881 = vmatpush1.msra.mxu0 0.0
  %3882 = vmatprep.subr.mxu0 0.0
  %3883 = vmatpush1.msra.mxu0 0.0
  %3884 = vmatprep.subr.mxu0 0.0
  %3885 = vmatpush1.msra.mxu0 0.0
  %3886 = vmatprep.subr.mxu0 0.0
  %3887 = vmatpush1.msra.mxu0 0.0
  %3888 = vmatprep.subr.mxu0 0.0
  %3889 = vmatpush1.msra.mxu0 0.0
  %3890 = vmatprep.subr.mxu0 0.0
  %3891 = vmatpush1.msra.mxu0 0.0
  %3892 = vmatprep.subr.mxu0 0.0
  %3893 = vmatpush1.msra.mxu0 0.0
  %3894 = vmatprep.subr.mxu0 0.0
  %3895 = vmatpush1.msra.mxu0 0.0
  %3896 = vmatprep.subr.mxu0 0.0
  %3897 = vmatpush1.msra.mxu0 0.0
  %3898 = vmatprep.subr.mxu0 0.0
  %3899 = vmatpush1.msra.mxu0 0.0
  %3900 = vmatprep.subr.mxu0 0.0
  %3901 = vmatpush1.msra.mxu0 0.0
  %3902 = vmatprep.subr.mxu0 0.0
  %3903 = vmatpush1.msra.mxu0 0.0
  %3904 = vmatprep.subr.mxu0 0.0
  %3905 = vmatpush1.msra.mxu0 0.0
  %3906 = vmatprep.subr.mxu0 0.0
  %3907 = vmatpush1.msra.mxu0 0.0
  %3908 = vmatprep.subr.mxu0 0.0
  %3909 = vmatpush1.msra.mxu0 0.0
  %3910 = vmatprep.subr.mxu0 0.0
  %3911 = vmatpush1.msra.mxu0 0.0
  %3912 = vmatprep.subr.mxu0 0.0
  %3913 = vmatpush1.msra.mxu0 0.0
  %3914 = vmatprep.subr.mxu0 0.0
  %3915 = vmatpush1.msra.mxu0 0.0
  %3916 = vmatprep.mubr.f32.mxu0 0.0
  %3917 = vmatmul.mubr.f32.gmra.mrb[0].mxu0 %v3850
  %v3918 = vpop.f32.mrb[0].mxu0
  %v3919 = vadd.f32 %v1528, %v3918
  %v3920 = vpop.f32.mrb[0].mxu0
  %3921 = vdwg.mxu0
  %3922 = vmatprep.subr.mxu0 0.0
  %3923 = vmatpush1.xpose.msra.mxu0 %v3850
  %3924 = vmatprep.subr.mxu0 0.0
  %3925 = vmatpush1.xpose.msra.mxu0 0.0
  %3926 = vmatprep.subr.mxu0 0.0
  %3927 = vmatpush1.xpose.msra.mxu0 0.0
  %3928 = vmatprep.subr.mxu0 0.0
  %3929 = vmatpush1.xpose.msra.mxu0 0.0
  %3930 = vmatprep.subr.mxu0 0.0
  %3931 = vmatpush1.xpose.msra.mxu0 0.0
  %3932 = vmatprep.subr.mxu0 0.0
  %3933 = vmatpush1.xpose.msra.mxu0 0.0
  %3934 = vmatprep.subr.mxu0 0.0
  %3935 = vmatpush1.xpose.msra.mxu0 0.0
  %3936 = vmatprep.subr.mxu0 0.0
  %3937 = vmatpush1.xpose.msra.mxu0 0.0
  %3938 = vmatprep.subr.mxu0 0.0
  %3939 = vmatpush1.xpose.msra.mxu0 0.0
  %3940 = vmatprep.subr.mxu0 0.0
  %3941 = vmatpush1.xpose.msra.mxu0 0.0
  %3942 = vmatprep.subr.mxu0 0.0
  %3943 = vmatpush1.xpose.msra.mxu0 0.0
  %3944 = vmatprep.subr.mxu0 0.0
  %3945 = vmatpush1.xpose.msra.mxu0 0.0
  %3946 = vmatprep.subr.mxu0 0.0
  %3947 = vmatpush1.xpose.msra.mxu0 0.0
  %3948 = vmatprep.subr.mxu0 0.0
  %3949 = vmatpush1.xpose.msra.mxu0 0.0
  %3950 = vmatprep.subr.mxu0 0.0
  %3951 = vmatpush1.xpose.msra.mxu0 0.0
  %3952 = vmatprep.subr.mxu0 0.0
  %3953 = vmatpush1.xpose.msra.mxu0 0.0
  %3954 = vmatprep.subr.mxu0 0.0
  %3955 = vmatpush1.xpose.msra.mxu0 0.0
  %3956 = vmatprep.subr.mxu0 0.0
  %3957 = vmatpush1.xpose.msra.mxu0 0.0
  %3958 = vmatprep.subr.mxu0 0.0
  %3959 = vmatpush1.xpose.msra.mxu0 0.0
  %3960 = vmatprep.subr.mxu0 0.0
  %3961 = vmatpush1.xpose.msra.mxu0 0.0
  %3962 = vmatprep.subr.mxu0 0.0
  %3963 = vmatpush1.xpose.msra.mxu0 0.0
  %3964 = vmatprep.subr.mxu0 0.0
  %3965 = vmatpush1.xpose.msra.mxu0 0.0
  %3966 = vmatprep.subr.mxu0 0.0
  %3967 = vmatpush1.xpose.msra.mxu0 0.0
  %3968 = vmatprep.subr.mxu0 0.0
  %3969 = vmatpush1.xpose.msra.mxu0 0.0
  %3970 = vmatprep.subr.mxu0 0.0
  %3971 = vmatpush1.xpose.msra.mxu0 0.0
  %3972 = vmatprep.subr.mxu0 0.0
  %3973 = vmatpush1.xpose.msra.mxu0 0.0
  %3974 = vmatprep.subr.mxu0 0.0
  %3975 = vmatpush1.xpose.msra.mxu0 0.0
  %3976 = vmatprep.subr.mxu0 0.0
  %3977 = vmatpush1.xpose.msra.mxu0 0.0
  %3978 = vmatprep.subr.mxu0 0.0
  %3979 = vmatpush1.xpose.msra.mxu0 0.0
  %3980 = vmatprep.subr.mxu0 0.0
  %3981 = vmatpush1.xpose.msra.mxu0 0.0
  %3982 = vmatprep.subr.mxu0 0.0
  %3983 = vmatpush1.xpose.msra.mxu0 0.0
  %3984 = vmatprep.subr.mxu0 0.0
  %3985 = vmatpush1.xpose.msra.mxu0 0.0
  %3986 = vmatprep.mubr.f32.mxu0 0.0
  %3987 = vmatmul.mubr.f32.gmra.mrb[0].mxu0 %v1624
  %v3988 = vpop.f32.mrb[0].mxu0
  %v3989 = vadd.f32 %v1606, %v3988
  %v3990 = vpop.f32.mrb[0].mxu0
  %3991 = vmatprep.mubr.f32.mxu0 0.0
  %3992 = vmatmul.mubr.f32.gmra.mrb[0].mxu0 %v1627
  %v3993 = vpop.f32.mrb[0].mxu0
  %v3994 = vadd.f32 %v1611, %v3993
  %v3995 = vpop.f32.mrb[0].mxu0
  %3996 = vmatprep.mubr.f32.mxu0 0.0
  %3997 = vmatmul.mubr.f32.gmra.mrb[0].mxu0 %v1630
  %v3998 = vpop.f32.mrb[0].mxu0
  %v3999 = vadd.f32 %v1616, %v3998
  %v4000 = vpop.f32.mrb[0].mxu0
  %4001 = vmatprep.mubr.f32.mxu0 0.0
  %4002 = vmatmul.mubr.f32.gmra.mrb[0].mxu0 %v1633
  %v4003 = vpop.f32.mrb[0].mxu0
  %v4004 = vadd.f32 %v1621, %v4003
  %v4005 = vpop.f32.mrb[0].mxu0
  %4006 = vdwg.mxu0
  %4008 = vset.pattern.permute.xlu0 0
  %4009 = vperm.xlu0 %4008, %v2604
  %v4010 = vpop.permute.xlu0 %4009
  %v4013 = vsel %vm650, %v3919, 0
  %4015 = vmatprep.subr.mxu0 %v3829
  %4016 = vmatpush1.msra.mxu0 %v3827
  %4017 = vmatprep.subr.mxu0 0.0
  %4018 = vmatpush1.msra.mxu0 0.0
  %4019 = vmatprep.subr.mxu0 0.0
  %4020 = vmatpush1.msra.mxu0 0.0
  %4021 = vmatprep.subr.mxu0 0.0
  %4022 = vmatpush1.msra.mxu0 0.0
  %4023 = vmatprep.subr.mxu0 0.0
  %4024 = vmatpush1.msra.mxu0 0.0
  %4025 = vmatprep.subr.mxu0 0.0
  %4026 = vmatpush1.msra.mxu0 0.0
  %4027 = vmatprep.subr.mxu0 0.0
  %4028 = vmatpush1.msra.mxu0 0.0
  %4029 = vmatprep.subr.mxu0 0.0
  %4030 = vmatpush1.msra.mxu0 0.0
  %4031 = vmatprep.subr.mxu0 0.0
  %4032 = vmatpush1.msra.mxu0 0.0
  %4033 = vmatprep.subr.mxu0 0.0
  %4034 = vmatpush1.msra.mxu0 0.0
  %4035 = vmatprep.subr.mxu0 0.0
  %4036 = vmatpush1.msra.mxu0 0.0
  %4037 = vmatprep.subr.mxu0 0.0
  %4038 = vmatpush1.msra.mxu0 0.0
  %4039 = vmatprep.subr.mxu0 0.0
  %4040 = vmatpush1.msra.mxu0 0.0
  %4041 = vmatprep.subr.mxu0 0.0
  %4042 = vmatpush1.msra.mxu0 0.0
  %4043 = vmatprep.subr.mxu0 0.0
  %4044 = vmatpush1.msra.mxu0 0.0
  %4045 = vmatprep.subr.mxu0 0.0
  %4046 = vmatpush1.msra.mxu0 0.0
  %4047 = vmatprep.subr.mxu0 0.0
  %4048 = vmatpush1.msra.mxu0 0.0
  %4049 = vmatprep.subr.mxu0 0.0
  %4050 = vmatpush1.msra.mxu0 0.0
  %4051 = vmatprep.subr.mxu0 0.0
  %4052 = vmatpush1.msra.mxu0 0.0
  %4053 = vmatprep.subr.mxu0 0.0
  %4054 = vmatpush1.msra.mxu0 0.0
  %4055 = vmatprep.subr.mxu0 0.0
  %4056 = vmatpush1.msra.mxu0 0.0
  %4057 = vmatprep.subr.mxu0 0.0
  %4058 = vmatpush1.msra.mxu0 0.0
  %4059 = vmatprep.subr.mxu0 0.0
  %4060 = vmatpush1.msra.mxu0 0.0
  %4061 = vmatprep.subr.mxu0 0.0
  %4062 = vmatpush1.msra.mxu0 0.0
  %4063 = vmatprep.subr.mxu0 0.0
  %4064 = vmatpush1.msra.mxu0 0.0
  %4065 = vmatprep.subr.mxu0 0.0
  %4066 = vmatpush1.msra.mxu0 0.0
  %4067 = vmatprep.subr.mxu0 0.0
  %4068 = vmatpush1.msra.mxu0 0.0
  %4069 = vmatprep.subr.mxu0 0.0
  %4070 = vmatpush1.msra.mxu0 0.0
  %4071 = vmatprep.subr.mxu0 0.0
  %4072 = vmatpush1.msra.mxu0 0.0
  %4073 = vmatprep.subr.mxu0 0.0
  %4074 = vmatpush1.msra.mxu0 0.0
  %4075 = vmatprep.subr.mxu0 0.0
  %4076 = vmatpush1.msra.mxu0 0.0
  %4077 = vmatprep.subr.mxu0 0.0
  %4078 = vmatpush1.msra.mxu0 0.0
  %4079 = vmatprep.mubr.f32.mxu0 0.0
  %4080 = vmatmul.mubr.f32.gmra.mrb[0].mxu0 %v4013
  %v4081 = vpop.f32.mrb[0].mxu0
  %v4082 = vadd.f32 %v4010, %v4081
  %v4083 = vpop.f32.mrb[0].mxu0
  %v4084 = vadd.f32 %v4010, %v4083
  %4085 = vdwg.mxu0
  %v4086 = vrot.slane %v4082, 4
  %v4087 = vmax.f32 %v4082, %v4086
  %v4088 = vrot.slane %v4087, 2
  %v4089 = vmax.f32 %v4087, %v4088
  %v4090 = vrot.slane %v4089, 1
  %v4091 = vmax.f32 %v4089, %v4090
  %v4092 = vrot.slane %v4084, 4
  %v4093 = vmax.f32 %v4084, %v4092
  %v4094 = vrot.slane %v4093, 2
  %v4095 = vmax.f32 %v4093, %v4094
  %v4096 = vrot.slane %v4095, 1
  %v4097 = vmax.f32 %v4095, %v4096
  %v4098 = vsub.f32 %v4082, %v4091
  %v4099 = vsub.f32 %v4084, %v4097
  %v4100 = vmul.f32 %v4098, 1.442695
  %v4101 = vpow.pop %v4100
  %v4102 = vmul.f32 %v4099, 1.442695
  %v4103 = vpow.pop %v4102
  %v4104 = vrot.slane %v4101, 4
  %v4105 = vadd.f32 %v4101, %v4104
  %v4106 = vrot.slane %v4105, 2
  %v4107 = vadd.f32 %v4105, %v4106
  %v4108 = vrot.slane %v4107, 1
  %v4109 = vadd.f32 %v4107, %v4108
  %v4110 = vrot.slane %v4103, 4
  %v4111 = vadd.f32 %v4103, %v4110
  %v4112 = vrot.slane %v4111, 2
  %v4113 = vadd.f32 %v4111, %v4112
  %v4114 = vrot.slane %v4113, 1
  %v4115 = vadd.f32 %v4113, %v4114
  %v4116 = vrcp.pop %v4109
  %v4117 = vrcp.pop %v4115
  %v4118 = vmul.f32 %v4101, %v4116
  %v4119 = vmul.f32 %v4103, %v4117
  %v4121 = vsel %vm650, %v3989, 0
  %4123 = vmatprep.subr.mxu0 %v4119
  %4124 = vmatpush1.msra.mxu0 %v4118
  %4125 = vmatprep.subr.mxu0 0.0
  %4126 = vmatpush1.msra.mxu0 0.0
  %4127 = vmatprep.subr.mxu0 0.0
  %4128 = vmatpush1.msra.mxu0 0.0
  %4129 = vmatprep.subr.mxu0 0.0
  %4130 = vmatpush1.msra.mxu0 0.0
  %4131 = vmatprep.subr.mxu0 0.0
  %4132 = vmatpush1.msra.mxu0 0.0
  %4133 = vmatprep.subr.mxu0 0.0
  %4134 = vmatpush1.msra.mxu0 0.0
  %4135 = vmatprep.subr.mxu0 0.0
  %4136 = vmatpush1.msra.mxu0 0.0
  %4137 = vmatprep.subr.mxu0 0.0
  %4138 = vmatpush1.msra.mxu0 0.0
  %4139 = vmatprep.subr.mxu0 0.0
  %4140 = vmatpush1.msra.mxu0 0.0
  %4141 = vmatprep.subr.mxu0 0.0
  %4142 = vmatpush1.msra.mxu0 0.0
  %4143 = vmatprep.subr.mxu0 0.0
  %4144 = vmatpush1.msra.mxu0 0.0
  %4145 = vmatprep.subr.mxu0 0.0
  %4146 = vmatpush1.msra.mxu0 0.0
  %4147 = vmatprep.subr.mxu0 0.0
  %4148 = vmatpush1.msra.mxu0 0.0
  %4149 = vmatprep.subr.mxu0 0.0
  %4150 = vmatpush1.msra.mxu0 0.0
  %4151 = vmatprep.subr.mxu0 0.0
  %4152 = vmatpush1.msra.mxu0 0.0
  %4153 = vmatprep.subr.mxu0 0.0
  %4154 = vmatpush1.msra.mxu0 0.0
  %4155 = vmatprep.subr.mxu0 0.0
  %4156 = vmatpush1.msra.mxu0 0.0
  %4157 = vmatprep.subr.mxu0 0.0
  %4158 = vmatpush1.msra.mxu0 0.0
  %4159 = vmatprep.subr.mxu0 0.0
  %4160 = vmatpush1.msra.mxu0 0.0
  %4161 = vmatprep.subr.mxu0 0.0
  %4162 = vmatpush1.msra.mxu0 0.0
  %4163 = vmatprep.subr.mxu0 0.0
  %4164 = vmatpush1.msra.mxu0 0.0
  %4165 = vmatprep.subr.mxu0 0.0
  %4166 = vmatpush1.msra.mxu0 0.0
  %4167 = vmatprep.subr.mxu0 0.0
  %4168 = vmatpush1.msra.mxu0 0.0
  %4169 = vmatprep.subr.mxu0 0.0
  %4170 = vmatpush1.msra.mxu0 0.0
  %4171 = vmatprep.subr.mxu0 0.0
  %4172 = vmatpush1.msra.mxu0 0.0
  %4173 = vmatprep.subr.mxu0 0.0
  %4174 = vmatpush1.msra.mxu0 0.0
  %4175 = vmatprep.subr.mxu0 0.0
  %4176 = vmatpush1.msra.mxu0 0.0
  %4177 = vmatprep.subr.mxu0 0.0
  %4178 = vmatpush1.msra.mxu0 0.0
  %4179 = vmatprep.subr.mxu0 0.0
  %4180 = vmatpush1.msra.mxu0 0.0
  %4181 = vmatprep.subr.mxu0 0.0
  %4182 = vmatpush1.msra.mxu0 0.0
  %4183 = vmatprep.subr.mxu0 0.0
  %4184 = vmatpush1.msra.mxu0 0.0
  %4185 = vmatprep.subr.mxu0 0.0
  %4186 = vmatpush1.msra.mxu0 0.0
  %4187 = vmatprep.mubr.f32.mxu0 0.0
  %4188 = vmatmul.mubr.f32.gmra.mrb[0].mxu0 %v4121
  %v4189 = vpop.f32.mrb[0].mxu0
  %v4190 = vadd.f32 0.0, %v4189
  %v4191 = vpop.f32.mrb[0].mxu0
  %v4192 = vadd.f32 0.0, %v4191
  %4193 = vdwg.mxu0
  %4194 = vrot.lane.b32.xlu0 %v3919, 120
  %v4195 = vpop.permute.xlu0 %4194
  %v4196 = vsel %vm650, %v4195, 0
  %4198 = vmatprep.subr.mxu0 %v3835
  %4199 = vmatpush1.msra.mxu0 %v3833
  %4200 = vmatprep.subr.mxu0 0.0
  %4201 = vmatpush1.msra.mxu0 0.0
  %4202 = vmatprep.subr.mxu0 0.0
  %4203 = vmatpush1.msra.mxu0 0.0
  %4204 = vmatprep.subr.mxu0 0.0
  %4205 = vmatpush1.msra.mxu0 0.0
  %4206 = vmatprep.subr.mxu0 0.0
  %4207 = vmatpush1.msra.mxu0 0.0
  %4208 = vmatprep.subr.mxu0 0.0
  %4209 = vmatpush1.msra.mxu0 0.0
  %4210 = vmatprep.subr.mxu0 0.0
  %4211 = vmatpush1.msra.mxu0 0.0
  %4212 = vmatprep.subr.mxu0 0.0
  %4213 = vmatpush1.msra.mxu0 0.0
  %4214 = vmatprep.subr.mxu0 0.0
  %4215 = vmatpush1.msra.mxu0 0.0
  %4216 = vmatprep.subr.mxu0 0.0
  %4217 = vmatpush1.msra.mxu0 0.0
  %4218 = vmatprep.subr.mxu0 0.0
  %4219 = vmatpush1.msra.mxu0 0.0
  %4220 = vmatprep.subr.mxu0 0.0
  %4221 = vmatpush1.msra.mxu0 0.0
  %4222 = vmatprep.subr.mxu0 0.0
  %4223 = vmatpush1.msra.mxu0 0.0
  %4224 = vmatprep.subr.mxu0 0.0
  %4225 = vmatpush1.msra.mxu0 0.0
  %4226 = vmatprep.subr.mxu0 0.0
  %4227 = vmatpush1.msra.mxu0 0.0
  %4228 = vmatprep.subr.mxu0 0.0
  %4229 = vmatpush1.msra.mxu0 0.0
  %4230 = vmatprep.subr.mxu0 0.0
  %4231 = vmatpush1.msra.mxu0 0.0
  %4232 = vmatprep.subr.mxu0 0.0
  %4233 = vmatpush1.msra.mxu0 0.0
  %4234 = vmatprep.subr.mxu0 0.0
  %4235 = vmatpush1.msra.mxu0 0.0
  %4236 = vmatprep.subr.mxu0 0.0
  %4237 = vmatpush1.msra.mxu0 0.0
  %4238 = vmatprep.subr.mxu0 0.0
  %4239 = vmatpush1.msra.mxu0 0.0
  %4240 = vmatprep.subr.mxu0 0.0
  %4241 = vmatpush1.msra.mxu0 0.0
  %4242 = vmatprep.subr.mxu0 0.0
  %4243 = vmatpush1.msra.mxu0 0.0
  %4244 = vmatprep.subr.mxu0 0.0
  %4245 = vmatpush1.msra.mxu0 0.0
  %4246 = vmatprep.subr.mxu0 0.0
  %4247 = vmatpush1.msra.mxu0 0.0
  %4248 = vmatprep.subr.mxu0 0.0
  %4249 = vmatpush1.msra.mxu0 0.0
  %4250 = vmatprep.subr.mxu0 0.0
  %4251 = vmatpush1.msra.mxu0 0.0
  %4252 = vmatprep.subr.mxu0 0.0
  %4253 = vmatpush1.msra.mxu0 0.0
  %4254 = vmatprep.subr.mxu0 0.0
  %4255 = vmatpush1.msra.mxu0 0.0
  %4256 = vmatprep.subr.mxu0 0.0
  %4257 = vmatpush1.msra.mxu0 0.0
  %4258 = vmatprep.subr.mxu0 0.0
  %4259 = vmatpush1.msra.mxu0 0.0
  %4260 = vmatprep.subr.mxu0 0.0
  %4261 = vmatpush1.msra.mxu0 0.0
  %4262 = vmatprep.mubr.f32.mxu0 0.0
  %4263 = vmatmul.mubr.f32.gmra.mrb[0].mxu0 %v4196
  %v4264 = vpop.f32.mrb[0].mxu0
  %v4265 = vadd.f32 %v4010, %v4264
  %v4266 = vpop.f32.mrb[0].mxu0
  %v4267 = vadd.f32 %v4010, %v4266
  %4268 = vdwg.mxu0
  %v4269 = vrot.slane %v4265, 4
  %v4270 = vmax.f32 %v4265, %v4269
  %v4271 = vrot.slane %v4270, 2
  %v4272 = vmax.f32 %v4270, %v4271
  %v4273 = vrot.slane %v4272, 1
  %v4274 = vmax.f32 %v4272, %v4273
  %v4275 = vrot.slane %v4267, 4
  %v4276 = vmax.f32 %v4267, %v4275
  %v4277 = vrot.slane %v4276, 2
  %v4278 = vmax.f32 %v4276, %v4277
  %v4279 = vrot.slane %v4278, 1
  %v4280 = vmax.f32 %v4278, %v4279
  %v4281 = vsub.f32 %v4265, %v4274
  %v4282 = vsub.f32 %v4267, %v4280
  %v4283 = vmul.f32 %v4281, 1.442695
  %v4284 = vpow.pop %v4283
  %v4285 = vmul.f32 %v4282, 1.442695
  %v4286 = vpow.pop %v4285
  %v4287 = vrot.slane %v4284, 4
  %v4288 = vadd.f32 %v4284, %v4287
  %v4289 = vrot.slane %v4288, 2
  %v4290 = vadd.f32 %v4288, %v4289
  %v4291 = vrot.slane %v4290, 1
  %v4292 = vadd.f32 %v4290, %v4291
  %v4293 = vrot.slane %v4286, 4
  %v4294 = vadd.f32 %v4286, %v4293
  %v4295 = vrot.slane %v4294, 2
  %v4296 = vadd.f32 %v4294, %v4295
  %v4297 = vrot.slane %v4296, 1
  %v4298 = vadd.f32 %v4296, %v4297
  %v4299 = vrcp.pop %v4292
  %v4300 = vrcp.pop %v4298
  %v4301 = vmul.f32 %v4284, %v4299
  %v4302 = vmul.f32 %v4286, %v4300
  %v4304 = vsel %vm650, %v3994, 0
  %4306 = vmatprep.subr.mxu0 %v4302
  %4307 = vmatpush1.msra.mxu0 %v4301
  %4308 = vmatprep.subr.mxu0 0.0
  %4309 = vmatpush1.msra.mxu0 0.0
  %4310 = vmatprep.subr.mxu0 0.0
  %4311 = vmatpush1.msra.mxu0 0.0
  %4312 = vmatprep.subr.mxu0 0.0
  %4313 = vmatpush1.msra.mxu0 0.0
  %4314 = vmatprep.subr.mxu0 0.0
  %4315 = vmatpush1.msra.mxu0 0.0
  %4316 = vmatprep.subr.mxu0 0.0
  %4317 = vmatpush1.msra.mxu0 0.0
  %4318 = vmatprep.subr.mxu0 0.0
  %4319 = vmatpush1.msra.mxu0 0.0
  %4320 = vmatprep.subr.mxu0 0.0
  %4321 = vmatpush1.msra.mxu0 0.0
  %4322 = vmatprep.subr.mxu0 0.0
  %4323 = vmatpush1.msra.mxu0 0.0
  %4324 = vmatprep.subr.mxu0 0.0
  %4325 = vmatpush1.msra.mxu0 0.0
  %4326 = vmatprep.subr.mxu0 0.0
  %4327 = vmatpush1.msra.mxu0 0.0
  %4328 = vmatprep.subr.mxu0 0.0
  %4329 = vmatpush1.msra.mxu0 0.0
  %4330 = vmatprep.subr.mxu0 0.0
  %4331 = vmatpush1.msra.mxu0 0.0
  %4332 = vmatprep.subr.mxu0 0.0
  %4333 = vmatpush1.msra.mxu0 0.0
  %4334 = vmatprep.subr.mxu0 0.0
  %4335 = vmatpush1.msra.mxu0 0.0
  %4336 = vmatprep.subr.mxu0 0.0
  %4337 = vmatpush1.msra.mxu0 0.0
  %4338 = vmatprep.subr.mxu0 0.0
  %4339 = vmatpush1.msra.mxu0 0.0
  %4340 = vmatprep.subr.mxu0 0.0
  %4341 = vmatpush1.msra.mxu0 0.0
  %4342 = vmatprep.subr.mxu0 0.0
  %4343 = vmatpush1.msra.mxu0 0.0
  %4344 = vmatprep.subr.mxu0 0.0
  %4345 = vmatpush1.msra.mxu0 0.0
  %4346 = vmatprep.subr.mxu0 0.0
  %4347 = vmatpush1.msra.mxu0 0.0
  %4348 = vmatprep.subr.mxu0 0.0
  %4349 = vmatpush1.msra.mxu0 0.0
  %4350 = vmatprep.subr.mxu0 0.0
  %4351 = vmatpush1.msra.mxu0 0.0
  %4352 = vmatprep.subr.mxu0 0.0
  %4353 = vmatpush1.msra.mxu0 0.0
  %4354 = vmatprep.subr.mxu0 0.0
  %4355 = vmatpush1.msra.mxu0 0.0
  %4356 = vmatprep.subr.mxu0 0.0
  %4357 = vmatpush1.msra.mxu0 0.0
  %4358 = vmatprep.subr.mxu0 0.0
  %4359 = vmatpush1.msra.mxu0 0.0
  %4360 = vmatprep.subr.mxu0 0.0
  %4361 = vmatpush1.msra.mxu0 0.0
  %4362 = vmatprep.subr.mxu0 0.0
  %4363 = vmatpush1.msra.mxu0 0.0
  %4364 = vmatprep.subr.mxu0 0.0
  %4365 = vmatpush1.msra.mxu0 0.0
  %4366 = vmatprep.subr.mxu0 0.0
  %4367 = vmatpush1.msra.mxu0 0.0
  %4368 = vmatprep.subr.mxu0 0.0
  %4369 = vmatpush1.msra.mxu0 0.0
  %4370 = vmatprep.mubr.f32.mxu0 0.0
  %4371 = vmatmul.mubr.f32.gmra.mrb[0].mxu0 %v4304
  %v4372 = vpop.f32.mrb[0].mxu0
  %v4373 = vadd.f32 0.0, %v4372
  %v4374 = vpop.f32.mrb[0].mxu0
  %v4375 = vadd.f32 0.0, %v4374
  %4376 = vdwg.mxu0
  %4377 = vrot.lane.b32.xlu0 %v3919, 112
  %v4378 = vpop.permute.xlu0 %4377
  %v4379 = vsel %vm650, %v4378, 0
  %4381 = vmatprep.subr.mxu0 %v3841
  %4382 = vmatpush1.msra.mxu0 %v3839
  %4383 = vmatprep.subr.mxu0 0.0
  %4384 = vmatpush1.msra.mxu0 0.0
  %4385 = vmatprep.subr.mxu0 0.0
  %4386 = vmatpush1.msra.mxu0 0.0
  %4387 = vmatprep.subr.mxu0 0.0
  %4388 = vmatpush1.msra.mxu0 0.0
  %4389 = vmatprep.subr.mxu0 0.0
  %4390 = vmatpush1.msra.mxu0 0.0
  %4391 = vmatprep.subr.mxu0 0.0
  %4392 = vmatpush1.msra.mxu0 0.0
  %4393 = vmatprep.subr.mxu0 0.0
  %4394 = vmatpush1.msra.mxu0 0.0
  %4395 = vmatprep.subr.mxu0 0.0
  %4396 = vmatpush1.msra.mxu0 0.0
  %4397 = vmatprep.subr.mxu0 0.0
  %4398 = vmatpush1.msra.mxu0 0.0
  %4399 = vmatprep.subr.mxu0 0.0
  %4400 = vmatpush1.msra.mxu0 0.0
  %4401 = vmatprep.subr.mxu0 0.0
  %4402 = vmatpush1.msra.mxu0 0.0
  %4403 = vmatprep.subr.mxu0 0.0
  %4404 = vmatpush1.msra.mxu0 0.0
  %4405 = vmatprep.subr.mxu0 0.0
  %4406 = vmatpush1.msra.mxu0 0.0
  %4407 = vmatprep.subr.mxu0 0.0
  %4408 = vmatpush1.msra.mxu0 0.0
  %4409 = vmatprep.subr.mxu0 0.0
  %4410 = vmatpush1.msra.mxu0 0.0
  %4411 = vmatprep.subr.mxu0 0.0
  %4412 = vmatpush1.msra.mxu0 0.0
  %4413 = vmatprep.subr.mxu0 0.0
  %4414 = vmatpush1.msra.mxu0 0.0
  %4415 = vmatprep.subr.mxu0 0.0
  %4416 = vmatpush1.msra.mxu0 0.0
  %4417 = vmatprep.subr.mxu0 0.0
  %4418 = vmatpush1.msra.mxu0 0.0
  %4419 = vmatprep.subr.mxu0 0.0
  %4420 = vmatpush1.msra.mxu0 0.0
  %4421 = vmatprep.subr.mxu0 0.0
  %4422 = vmatpush1.msra.mxu0 0.0
  %4423 = vmatprep.subr.mxu0 0.0
  %4424 = vmatpush1.msra.mxu0 0.0
  %4425 = vmatprep.subr.mxu0 0.0
  %4426 = vmatpush1.msra.mxu0 0.0
  %4427 = vmatprep.subr.mxu0 0.0
  %4428 = vmatpush1.msra.mxu0 0.0
  %4429 = vmatprep.subr.mxu0 0.0
  %4430 = vmatpush1.msra.mxu0 0.0
  %4431 = vmatprep.subr.mxu0 0.0
  %4432 = vmatpush1.msra.mxu0 0.0
  %4433 = vmatprep.subr.mxu0 0.0
  %4434 = vmatpush1.msra.mxu0 0.0
  %4435 = vmatprep.subr.mxu0 0.0
  %4436 = vmatpush1.msra.mxu0 0.0
  %4437 = vmatprep.subr.mxu0 0.0
  %4438 = vmatpush1.msra.mxu0 0.0
  %4439 = vmatprep.subr.mxu0 0.0
  %4440 = vmatpush1.msra.mxu0 0.0
  %4441 = vmatprep.subr.mxu0 0.0
  %4442 = vmatpush1.msra.mxu0 0.0
  %4443 = vmatprep.subr.mxu0 0.0
  %4444 = vmatpush1.msra.mxu0 0.0
  %4445 = vmatprep.mubr.f32.mxu0 0.0
  %4446 = vmatmul.mubr.f32.gmra.mrb[0].mxu0 %v4379
  %v4447 = vpop.f32.mrb[0].mxu0
  %v4448 = vadd.f32 %v4010, %v4447
  %v4449 = vpop.f32.mrb[0].mxu0
  %v4450 = vadd.f32 %v4010, %v4449
  %4451 = vdwg.mxu0
  %v4452 = vrot.slane %v4448, 4
  %v4453 = vmax.f32 %v4448, %v4452
  %v4454 = vrot.slane %v4453, 2
  %v4455 = vmax.f32 %v4453, %v4454
  %v4456 = vrot.slane %v4455, 1
  %v4457 = vmax.f32 %v4455, %v4456
  %v4458 = vrot.slane %v4450, 4
  %v4459 = vmax.f32 %v4450, %v4458
  %v4460 = vrot.slane %v4459, 2
  %v4461 = vmax.f32 %v4459, %v4460
  %v4462 = vrot.slane %v4461, 1
  %v4463 = vmax.f32 %v4461, %v4462
  %v4464 = vsub.f32 %v4448, %v4457
  %v4465 = vsub.f32 %v4450, %v4463
  %v4466 = vmul.f32 %v4464, 1.442695
  %v4467 = vpow.pop %v4466
  %v4468 = vmul.f32 %v4465, 1.442695
  %v4469 = vpow.pop %v4468
  %v4470 = vrot.slane %v4467, 4
  %v4471 = vadd.f32 %v4467, %v4470
  %v4472 = vrot.slane %v4471, 2
  %v4473 = vadd.f32 %v4471, %v4472
  %v4474 = vrot.slane %v4473, 1
  %v4475 = vadd.f32 %v4473, %v4474
  %v4476 = vrot.slane %v4469, 4
  %v4477 = vadd.f32 %v4469, %v4476
  %v4478 = vrot.slane %v4477, 2
  %v4479 = vadd.f32 %v4477, %v4478
  %v4480 = vrot.slane %v4479, 1
  %v4481 = vadd.f32 %v4479, %v4480
  %v4482 = vrcp.pop %v4475
  %v4483 = vrcp.pop %v4481
  %v4484 = vmul.f32 %v4467, %v4482
  %v4485 = vmul.f32 %v4469, %v4483
  %v4487 = vsel %vm650, %v3999, 0
  %4489 = vmatprep.subr.mxu0 %v4485
  %4490 = vmatpush1.msra.mxu0 %v4484
  %4491 = vmatprep.subr.mxu0 0.0
  %4492 = vmatpush1.msra.mxu0 0.0
  %4493 = vmatprep.subr.mxu0 0.0
  %4494 = vmatpush1.msra.mxu0 0.0
  %4495 = vmatprep.subr.mxu0 0.0
  %4496 = vmatpush1.msra.mxu0 0.0
  %4497 = vmatprep.subr.mxu0 0.0
  %4498 = vmatpush1.msra.mxu0 0.0
  %4499 = vmatprep.subr.mxu0 0.0
  %4500 = vmatpush1.msra.mxu0 0.0
  %4501 = vmatprep.subr.mxu0 0.0
  %4502 = vmatpush1.msra.mxu0 0.0
  %4503 = vmatprep.subr.mxu0 0.0
  %4504 = vmatpush1.msra.mxu0 0.0
  %4505 = vmatprep.subr.mxu0 0.0
  %4506 = vmatpush1.msra.mxu0 0.0
  %4507 = vmatprep.subr.mxu0 0.0
  %4508 = vmatpush1.msra.mxu0 0.0
  %4509 = vmatprep.subr.mxu0 0.0
  %4510 = vmatpush1.msra.mxu0 0.0
  %4511 = vmatprep.subr.mxu0 0.0
  %4512 = vmatpush1.msra.mxu0 0.0
  %4513 = vmatprep.subr.mxu0 0.0
  %4514 = vmatpush1.msra.mxu0 0.0
  %4515 = vmatprep.subr.mxu0 0.0
  %4516 = vmatpush1.msra.mxu0 0.0
  %4517 = vmatprep.subr.mxu0 0.0
  %4518 = vmatpush1.msra.mxu0 0.0
  %4519 = vmatprep.subr.mxu0 0.0
  %4520 = vmatpush1.msra.mxu0 0.0
  %4521 = vmatprep.subr.mxu0 0.0
  %4522 = vmatpush1.msra.mxu0 0.0
  %4523 = vmatprep.subr.mxu0 0.0
  %4524 = vmatpush1.msra.mxu0 0.0
  %4525 = vmatprep.subr.mxu0 0.0
  %4526 = vmatpush1.msra.mxu0 0.0
  %4527 = vmatprep.subr.mxu0 0.0
  %4528 = vmatpush1.msra.mxu0 0.0
  %4529 = vmatprep.subr.mxu0 0.0
  %4530 = vmatpush1.msra.mxu0 0.0
  %4531 = vmatprep.subr.mxu0 0.0
  %4532 = vmatpush1.msra.mxu0 0.0
  %4533 = vmatprep.subr.mxu0 0.0
  %4534 = vmatpush1.msra.mxu0 0.0
  %4535 = vmatprep.subr.mxu0 0.0
  %4536 = vmatpush1.msra.mxu0 0.0
  %4537 = vmatprep.subr.mxu0 0.0
  %4538 = vmatpush1.msra.mxu0 0.0
  %4539 = vmatprep.subr.mxu0 0.0
  %4540 = vmatpush1.msra.mxu0 0.0
  %4541 = vmatprep.subr.mxu0 0.0
  %4542 = vmatpush1.msra.mxu0 0.0
  %4543 = vmatprep.subr.mxu0 0.0
  %4544 = vmatpush1.msra.mxu0 0.0
  %4545 = vmatprep.subr.mxu0 0.0
  %4546 = vmatpush1.msra.mxu0 0.0
  %4547 = vmatprep.subr.mxu0 0.0
  %4548 = vmatpush1.msra.mxu0 0.0
  %4549 = vmatprep.subr.mxu0 0.0
  %4550 = vmatpush1.msra.mxu0 0.0
  %4551 = vmatprep.subr.mxu0 0.0
  %4552 = vmatpush1.msra.mxu0 0.0
  %4553 = vmatprep.mubr.f32.mxu0 0.0
  %4554 = vmatmul.mubr.f32.gmra.mrb[0].mxu0 %v4487
  %v4555 = vpop.f32.mrb[0].mxu0
  %v4556 = vadd.f32 0.0, %v4555
  %v4557 = vpop.f32.mrb[0].mxu0
  %v4558 = vadd.f32 0.0, %v4557
  %4559 = vdwg.mxu0
  %4560 = vrot.lane.b32.xlu0 %v3919, 104
  %v4561 = vpop.permute.xlu0 %4560
  %v4562 = vsel %vm650, %v4561, 0
  %4564 = vmatprep.subr.mxu0 %v3847
  %4565 = vmatpush1.msra.mxu0 %v3845
  %4566 = vmatprep.subr.mxu0 0.0
  %4567 = vmatpush1.msra.mxu0 0.0
  %4568 = vmatprep.subr.mxu0 0.0
  %4569 = vmatpush1.msra.mxu0 0.0
  %4570 = vmatprep.subr.mxu0 0.0
  %4571 = vmatpush1.msra.mxu0 0.0
  %4572 = vmatprep.subr.mxu0 0.0
  %4573 = vmatpush1.msra.mxu0 0.0
  %4574 = vmatprep.subr.mxu0 0.0
  %4575 = vmatpush1.msra.mxu0 0.0
  %4576 = vmatprep.subr.mxu0 0.0
  %4577 = vmatpush1.msra.mxu0 0.0
  %4578 = vmatprep.subr.mxu0 0.0
  %4579 = vmatpush1.msra.mxu0 0.0
  %4580 = vmatprep.subr.mxu0 0.0
  %4581 = vmatpush1.msra.mxu0 0.0
  %4582 = vmatprep.subr.mxu0 0.0
  %4583 = vmatpush1.msra.mxu0 0.0
  %4584 = vmatprep.subr.mxu0 0.0
  %4585 = vmatpush1.msra.mxu0 0.0
  %4586 = vmatprep.subr.mxu0 0.0
  %4587 = vmatpush1.msra.mxu0 0.0
  %4588 = vmatprep.subr.mxu0 0.0
  %4589 = vmatpush1.msra.mxu0 0.0
  %4590 = vmatprep.subr.mxu0 0.0
  %4591 = vmatpush1.msra.mxu0 0.0
  %4592 = vmatprep.subr.mxu0 0.0
  %4593 = vmatpush1.msra.mxu0 0.0
  %4594 = vmatprep.subr.mxu0 0.0
  %4595 = vmatpush1.msra.mxu0 0.0
  %4596 = vmatprep.subr.mxu0 0.0
  %4597 = vmatpush1.msra.mxu0 0.0
  %4598 = vmatprep.subr.mxu0 0.0
  %4599 = vmatpush1.msra.mxu0 0.0
  %4600 = vmatprep.subr.mxu0 0.0
  %4601 = vmatpush1.msra.mxu0 0.0
  %4602 = vmatprep.subr.mxu0 0.0
  %4603 = vmatpush1.msra.mxu0 0.0
  %4604 = vmatprep.subr.mxu0 0.0
  %4605 = vmatpush1.msra.mxu0 0.0
  %4606 = vmatprep.subr.mxu0 0.0
  %4607 = vmatpush1.msra.mxu0 0.0
  %4608 = vmatprep.subr.mxu0 0.0
  %4609 = vmatpush1.msra.mxu0 0.0
  %4610 = vmatprep.subr.mxu0 0.0
  %4611 = vmatpush1.msra.mxu0 0.0
  %4612 = vmatprep.subr.mxu0 0.0
  %4613 = vmatpush1.msra.mxu0 0.0
  %4614 = vmatprep.subr.mxu0 0.0
  %4615 = vmatpush1.msra.mxu0 0.0
  %4616 = vmatprep.subr.mxu0 0.0
  %4617 = vmatpush1.msra.mxu0 0.0
  %4618 = vmatprep.subr.mxu0 0.0
  %4619 = vmatpush1.msra.mxu0 0.0
  %4620 = vmatprep.subr.mxu0 0.0
  %4621 = vmatpush1.msra.mxu0 0.0
  %4622 = vmatprep.subr.mxu0 0.0
  %4623 = vmatpush1.msra.mxu0 0.0
  %4624 = vmatprep.subr.mxu0 0.0
  %4625 = vmatpush1.msra.mxu0 0.0
  %4626 = vmatprep.subr.mxu0 0.0
  %4627 = vmatpush1.msra.mxu0 0.0
  %4628 = vmatprep.mubr.f32.mxu0 0.0
  %4629 = vmatmul.mubr.f32.gmra.mrb[0].mxu0 %v4562
  %v4630 = vpop.f32.mrb[0].mxu0
  %v4631 = vadd.f32 %v4010, %v4630
  %v4632 = vpop.f32.mrb[0].mxu0
  %v4633 = vadd.f32 %v4010, %v4632
  %4634 = vdwg.mxu0
  %v4635 = vrot.slane %v4631, 4
  %v4636 = vmax.f32 %v4631, %v4635
  %v4637 = vrot.slane %v4636, 2
  %v4638 = vmax.f32 %v4636, %v4637
  %v4639 = vrot.slane %v4638, 1
  %v4640 = vmax.f32 %v4638, %v4639
  %v4641 = vrot.slane %v4633, 4
  %v4642 = vmax.f32 %v4633, %v4641
  %v4643 = vrot.slane %v4642, 2
  %v4644 = vmax.f32 %v4642, %v4643
  %v4645 = vrot.slane %v4644, 1
  %v4646 = vmax.f32 %v4644, %v4645
  %v4647 = vsub.f32 %v4631, %v4640
  %v4648 = vsub.f32 %v4633, %v4646
  %v4649 = vmul.f32 %v4647, 1.442695
  %v4650 = vpow.pop %v4649
  %v4651 = vmul.f32 %v4648, 1.442695
  %v4652 = vpow.pop %v4651
  %v4653 = vrot.slane %v4650, 4
  %v4654 = vadd.f32 %v4650, %v4653
  %v4655 = vrot.slane %v4654, 2
  %v4656 = vadd.f32 %v4654, %v4655
  %v4657 = vrot.slane %v4656, 1
  %v4658 = vadd.f32 %v4656, %v4657
  %v4659 = vrot.slane %v4652, 4
  %v4660 = vadd.f32 %v4652, %v4659
  %v4661 = vrot.slane %v4660, 2
  %v4662 = vadd.f32 %v4660, %v4661
  %v4663 = vrot.slane %v4662, 1
  %v4664 = vadd.f32 %v4662, %v4663
  %v4665 = vrcp.pop %v4658
  %v4666 = vrcp.pop %v4664
  %v4667 = vmul.f32 %v4650, %v4665
  %v4668 = vmul.f32 %v4652, %v4666
  %v4670 = vsel %vm650, %v4004, 0
  %4672 = vmatprep.subr.mxu0 %v4668
  %4673 = vmatpush1.msra.mxu0 %v4667
  %4674 = vmatprep.subr.mxu0 0.0
  %4675 = vmatpush1.msra.mxu0 0.0
  %4676 = vmatprep.subr.mxu0 0.0
  %4677 = vmatpush1.msra.mxu0 0.0
  %4678 = vmatprep.subr.mxu0 0.0
  %4679 = vmatpush1.msra.mxu0 0.0
  %4680 = vmatprep.subr.mxu0 0.0
  %4681 = vmatpush1.msra.mxu0 0.0
  %4682 = vmatprep.subr.mxu0 0.0
  %4683 = vmatpush1.msra.mxu0 0.0
  %4684 = vmatprep.subr.mxu0 0.0
  %4685 = vmatpush1.msra.mxu0 0.0
  %4686 = vmatprep.subr.mxu0 0.0
  %4687 = vmatpush1.msra.mxu0 0.0
  %4688 = vmatprep.subr.mxu0 0.0
  %4689 = vmatpush1.msra.mxu0 0.0
  %4690 = vmatprep.subr.mxu0 0.0
  %4691 = vmatpush1.msra.mxu0 0.0
  %4692 = vmatprep.subr.mxu0 0.0
  %4693 = vmatpush1.msra.mxu0 0.0
  %4694 = vmatprep.subr.mxu0 0.0
  %4695 = vmatpush1.msra.mxu0 0.0
  %4696 = vmatprep.subr.mxu0 0.0
  %4697 = vmatpush1.msra.mxu0 0.0
  %4698 = vmatprep.subr.mxu0 0.0
  %4699 = vmatpush1.msra.mxu0 0.0
  %4700 = vmatprep.subr.mxu0 0.0
  %4701 = vmatpush1.msra.mxu0 0.0
  %4702 = vmatprep.subr.mxu0 0.0
  %4703 = vmatpush1.msra.mxu0 0.0
  %4704 = vmatprep.subr.mxu0 0.0
  %4705 = vmatpush1.msra.mxu0 0.0
  %4706 = vmatprep.subr.mxu0 0.0
  %4707 = vmatpush1.msra.mxu0 0.0
  %4708 = vmatprep.subr.mxu0 0.0
  %4709 = vmatpush1.msra.mxu0 0.0
  %4710 = vmatprep.subr.mxu0 0.0
  %4711 = vmatpush1.msra.mxu0 0.0
  %4712 = vmatprep.subr.mxu0 0.0
  %4713 = vmatpush1.msra.mxu0 0.0
  %4714 = vmatprep.subr.mxu0 0.0
  %4715 = vmatpush1.msra.mxu0 0.0
  %4716 = vmatprep.subr.mxu0 0.0
  %4717 = vmatpush1.msra.mxu0 0.0
  %4718 = vmatprep.subr.mxu0 0.0
  %4719 = vmatpush1.msra.mxu0 0.0
  %4720 = vmatprep.subr.mxu0 0.0
  %4721 = vmatpush1.msra.mxu0 0.0
  %4722 = vmatprep.subr.mxu0 0.0
  %4723 = vmatpush1.msra.mxu0 0.0
  %4724 = vmatprep.subr.mxu0 0.0
  %4725 = vmatpush1.msra.mxu0 0.0
  %4726 = vmatprep.subr.mxu0 0.0
  %4727 = vmatpush1.msra.mxu0 0.0
  %4728 = vmatprep.subr.mxu0 0.0
  %4729 = vmatpush1.msra.mxu0 0.0
  %4730 = vmatprep.subr.mxu0 0.0
  %4731 = vmatpush1.msra.mxu0 0.0
  %4732 = vmatprep.subr.mxu0 0.0
  %4733 = vmatpush1.msra.mxu0 0.0
  %4734 = vmatprep.subr.mxu0 0.0
  %4735 = vmatpush1.msra.mxu0 0.0
  %4736 = vmatprep.mubr.f32.mxu0 0.0
  %4737 = vmatmul.mubr.f32.gmra.mrb[0].mxu0 %v4670
  %v4738 = vpop.f32.mrb[0].mxu0
  %v4739 = vadd.f32 0.0, %v4738
  %v4740 = vpop.f32.mrb[0].mxu0
  %v4741 = vadd.f32 0.0, %v4740
  %4742 = vdwg.mxu0
  %4743 = vmatprep.subr.mxu0 %v4192
  %4744 = vmatpush1.msra.mxu0 %v4190
  %4745 = vmatprep.subr.mxu0 %v4375
  %4746 = vmatpush1.msra.mxu0 %v4373
  %4747 = vmatprep.subr.mxu0 %v4558
  %4748 = vmatpush1.msra.mxu0 %v4556
  %4749 = vmatprep.subr.mxu0 %v4741
  %4750 = vmatpush1.msra.mxu0 %v4739
  %4751 = vmatprep.subr.mxu0 0.0
  %4752 = vmatpush1.msra.mxu0 0.0
  %4753 = vmatprep.subr.mxu0 0.0
  %4754 = vmatpush1.msra.mxu0 0.0
  %4755 = vmatprep.subr.mxu0 0.0
  %4756 = vmatpush1.msra.mxu0 0.0
  %4757 = vmatprep.subr.mxu0 0.0
  %4758 = vmatpush1.msra.mxu0 0.0
  %4759 = vmatprep.subr.mxu0 0.0
  %4760 = vmatpush1.msra.mxu0 0.0
  %4761 = vmatprep.subr.mxu0 0.0
  %4762 = vmatpush1.msra.mxu0 0.0
  %4763 = vmatprep.subr.mxu0 0.0
  %4764 = vmatpush1.msra.mxu0 0.0
  %4765 = vmatprep.subr.mxu0 0.0
  %4766 = vmatpush1.msra.mxu0 0.0
  %4767 = vmatprep.subr.mxu0 0.0
  %4768 = vmatpush1.msra.mxu0 0.0
  %4769 = vmatprep.subr.mxu0 0.0
  %4770 = vmatpush1.msra.mxu0 0.0
  %4771 = vmatprep.subr.mxu0 0.0
  %4772 = vmatpush1.msra.mxu0 0.0
  %4773 = vmatprep.subr.mxu0 0.0
  %4774 = vmatpush1.msra.mxu0 0.0
  %4775 = vmatprep.subr.mxu0 0.0
  %4776 = vmatpush1.msra.mxu0 0.0
  %4777 = vmatprep.subr.mxu0 0.0
  %4778 = vmatpush1.msra.mxu0 0.0
  %4779 = vmatprep.subr.mxu0 0.0
  %4780 = vmatpush1.msra.mxu0 0.0
  %4781 = vmatprep.subr.mxu0 0.0
  %4782 = vmatpush1.msra.mxu0 0.0
  %4783 = vmatprep.subr.mxu0 0.0
  %4784 = vmatpush1.msra.mxu0 0.0
  %4785 = vmatprep.subr.mxu0 0.0
  %4786 = vmatpush1.msra.mxu0 0.0
  %4787 = vmatprep.subr.mxu0 0.0
  %4788 = vmatpush1.msra.mxu0 0.0
  %4789 = vmatprep.subr.mxu0 0.0
  %4790 = vmatpush1.msra.mxu0 0.0
  %4791 = vmatprep.subr.mxu0 0.0
  %4792 = vmatpush1.msra.mxu0 0.0
  %4793 = vmatprep.subr.mxu0 0.0
  %4794 = vmatpush1.msra.mxu0 0.0
  %4795 = vmatprep.subr.mxu0 0.0
  %4796 = vmatpush1.msra.mxu0 0.0
  %4797 = vmatprep.subr.mxu0 0.0
  %4798 = vmatpush1.msra.mxu0 0.0
  %4799 = vmatprep.subr.mxu0 0.0
  %4800 = vmatpush1.msra.mxu0 0.0
  %4801 = vmatprep.subr.mxu0 0.0
  %4802 = vmatpush1.msra.mxu0 0.0
  %4803 = vmatprep.subr.mxu0 0.0
  %4804 = vmatpush1.msra.mxu0 0.0
  %4805 = vmatprep.subr.mxu0 0.0
  %4806 = vmatpush1.msra.mxu0 0.0
  %4807 = vmatprep.mubr.f32.mxu0 0.0
  %4808 = vmatmul.mubr.f32.gmra.mrb[0].mxu0 %v2477
  %v4809 = vpop.f32.mrb[0].mxu0
  %v4810 = vadd.f32 %v2459, %v4809
  %v4811 = vpop.f32.mrb[0].mxu0
  %v4812 = vadd.f32 %v2459, %v4811
  %4813 = vmatprep.mubr.f32.mxu0 0.0
  %4814 = vmatmul.mubr.f32.gmra.mrb[0].mxu0 %v2480
  %v4815 = vpop.f32.mrb[0].mxu0
  %v4816 = vadd.f32 %v2464, %v4815
  %v4817 = vpop.f32.mrb[0].mxu0
  %v4818 = vadd.f32 %v2464, %v4817
  %4819 = vmatprep.mubr.f32.mxu0 0.0
  %4820 = vmatmul.mubr.f32.gmra.mrb[0].mxu0 %v2483
  %v4821 = vpop.f32.mrb[0].mxu0
  %v4822 = vadd.f32 %v2469, %v4821
  %v4823 = vpop.f32.mrb[0].mxu0
  %v4824 = vadd.f32 %v2469, %v4823
  %4825 = vmatprep.mubr.f32.mxu0 0.0
  %4826 = vmatmul.mubr.f32.gmra.mrb[0].mxu0 %v2486
  %v4827 = vpop.f32.mrb[0].mxu0
  %v4828 = vadd.f32 %v2474, %v4827
  %v4829 = vpop.f32.mrb[0].mxu0
  %v4830 = vadd.f32 %v2474, %v4829
  %4831 = vdwg.mxu0
  %v4832 = vadd.f32 %v2775, %v4810
  %v4833 = vadd.f32 %v2777, %v4812
  %v4834 = vadd.f32 %v2781, %v4816
  %v4835 = vadd.f32 %v2783, %v4818
  %v4836 = vadd.f32 %v2787, %v4822
  %v4837 = vadd.f32 %v2789, %v4824
  %v4838 = vadd.f32 %v2793, %v4828
  %v4839 = vadd.f32 %v2795, %v4830
  %v4840 = vadd.f32 %v4832, %v4833
  %4841 = vadd.xlane.f32.xlu0 %v4840
  %v4842 = vpop.xlane.xlu0 %4841
  %v4843 = vadd.f32 %v4834, %v4835
  %4844 = vadd.xlane.f32.xlu0 %v4843
  %v4845 = vpop.xlane.xlu0 %4844
  %v4846 = vadd.f32 %v4836, %v4837
  %4847 = vadd.xlane.f32.xlu0 %v4846
  %v4848 = vpop.xlane.xlu0 %4847
  %v4849 = vadd.f32 %v4838, %v4839
  %4850 = vadd.xlane.f32.xlu0 %v4849
  %v4851 = vpop.xlane.xlu0 %4850
  %vm4852 = vcmask 7168
  %v4853 = vsel %vm4852, %v2587, %v4842
  %v4854 = vsel %vm4852, %v2590, %v4845
  %v4855 = vsel %vm4852, %v2593, %v4848
  %v4856 = vsel %vm4852, %v2596, %v4851
  %v4857 = vmax.f32 %v4853, 0.0
  %v4858 = vmax.f32 %v4854, 0.0
  %v4859 = vmax.f32 %v4855, 0.0
  %v4860 = vmax.f32 %v4856, 0.0
  %4862 = vset.pattern.permute.xlu0 0
  %4863 = vperm.xlu0 %4862, %v149
  %v4864 = vpop.permute.xlu0 %4863
  %v4867 = vsel %vm311, %v148, 0
  %4869 = vmatprep.subr.mxu0 0.0
  %4870 = vmatpush1.msra.mxu0 %v4857
  %4871 = vmatprep.subr.mxu0 0.0
  %4872 = vmatpush1.msra.mxu0 %v4858
  %4873 = vmatprep.subr.mxu0 0.0
  %4874 = vmatpush1.msra.mxu0 %v4859
  %4875 = vmatprep.subr.mxu0 0.0
  %4876 = vmatpush1.msra.mxu0 %v4860
  %4877 = vmatprep.subr.mxu0 0.0
  %4878 = vmatpush1.msra.mxu0 0.0
  %4879 = vmatprep.subr.mxu0 0.0
  %4880 = vmatpush1.msra.mxu0 0.0
  %4881 = vmatprep.subr.mxu0 0.0
  %4882 = vmatpush1.msra.mxu0 0.0
  %4883 = vmatprep.subr.mxu0 0.0
  %4884 = vmatpush1.msra.mxu0 0.0
  %4885 = vmatprep.subr.mxu0 0.0
  %4886 = vmatpush1.msra.mxu0 0.0
  %4887 = vmatprep.subr.mxu0 0.0
  %4888 = vmatpush1.msra.mxu0 0.0
  %4889 = vmatprep.subr.mxu0 0.0
  %4890 = vmatpush1.msra.mxu0 0.0
  %4891 = vmatprep.subr.mxu0 0.0
  %4892 = vmatpush1.msra.mxu0 0.0
  %4893 = vmatprep.subr.mxu0 0.0
  %4894 = vmatpush1.msra.mxu0 0.0
  %4895 = vmatprep.subr.mxu0 0.0
  %4896 = vmatpush1.msra.mxu0 0.0
  %4897 = vmatprep.subr.mxu0 0.0
  %4898 = vmatpush1.msra.mxu0 0.0
  %4899 = vmatprep.subr.mxu0 0.0
  %4900 = vmatpush1.msra.mxu0 0.0
  %4901 = vmatprep.subr.mxu0 0.0
  %4902 = vmatpush1.msra.mxu0 0.0
  %4903 = vmatprep.subr.mxu0 0.0
  %4904 = vmatpush1.msra.mxu0 0.0
  %4905 = vmatprep.subr.mxu0 0.0
  %4906 = vmatpush1.msra.mxu0 0.0
  %4907 = vmatprep.subr.mxu0 0.0
  %4908 = vmatpush1.msra.mxu0 0.0
  %4909 = vmatprep.subr.mxu0 0.0
  %4910 = vmatpush1.msra.mxu0 0.0
  %4911 = vmatprep.subr.mxu0 0.0
  %4912 = vmatpush1.msra.mxu0 0.0
  %4913 = vmatprep.subr.mxu0 0.0
  %4914 = vmatpush1.msra.mxu0 0.0
  %4915 = vmatprep.subr.mxu0 0.0
  %4916 = vmatpush1.msra.mxu0 0.0
  %4917 = vmatprep.subr.mxu0 0.0
  %4918 = vmatpush1.msra.mxu0 0.0
  %4919 = vmatprep.subr.mxu0 0.0
  %4920 = vmatpush1.msra.mxu0 0.0
  %4921 = vmatprep.subr.mxu0 0.0
  %4922 = vmatpush1.msra.mxu0 0.0
  %4923 = vmatprep.subr.mxu0 0.0
  %4924 = vmatpush1.msra.mxu0 0.0
  %4925 = vmatprep.subr.mxu0 0.0
  %4926 = vmatpush1.msra.mxu0 0.0
  %4927 = vmatprep.subr.mxu0 0.0
  %4928 = vmatpush1.msra.mxu0 0.0
  %4929 = vmatprep.subr.mxu0 0.0
  %4930 = vmatpush1.msra.mxu0 0.0
  %4931 = vmatprep.subr.mxu0 0.0
  %4932 = vmatpush1.msra.mxu0 0.0
  %4933 = vmatprep.mubr.f32.mxu0 0.0
  %4934 = vmatmul.mubr.f32.gmra.mrb[0].mxu0 %v4867
  %v4935 = vpop.f32.mrb[0].mxu0
  %v4936 = vadd.f32 %v4864, %v4935
  %v4937 = vpop.f32.mrb[0].mxu0
  %4938 = vdwg.mxu0
  %vm4939 = vcmask 9216
  %4940 = vst.msk [vmem:[%s26] sm:$0x3] %vm4939, %v4936
  // Predicated region
  $region106: #{discriminator_forward.1} parent=0 // pred_check
    _
  $region107: #{discriminator_forward.1} parent=0 // pred_check_branch
    %4942 = sbr.rel (0) target = $region109
  $region108: #{discriminator_forward.1} parent=0 // pred_region
    _
  $region109: #{discriminator_forward.1} parent=0 // pred_fallthru
    _
  // Predicated region
  $region110: #{discriminator_forward.1} parent=0 // pred_check
    _
  $region111: #{discriminator_forward.1} parent=0 // pred_check_branch
    %4944 = sbr.rel (0) target = $region113
  $region112: #{discriminator_forward.1} parent=0 // pred_region
    _
  $region113: #{discriminator_forward.1} parent=0 // pred_fallthru
    _

</llo_original>
